<compile_context>
chip_gen: v7x
topology: tpu7x:2x2x1
jax: 0.10.0
libtpu: 0.0.40
codegen_flags: <defaults>
</compile_context>

<pallas_src>
import functools

import jax
import jax.numpy as jnp
from jax.experimental import pallas as pl
from jax.experimental.pallas import tpu as pltpu


def _vmem():
    return pl.BlockSpec(memory_space=pltpu.MemorySpace.VMEM)


# --------------------------------------------------------------------------------------
# Kernel A: fused conv stack (Conv1d(k=3,p=1) + folded BN + ELU + AvgPool(2)) x 3.
# Layout: rows = b*C + c on sublanes, padded length Lp on lanes.
# After block i, valid samples sit at lane positions that are multiples of 2^i; the last
# AvgPool + the stride-8 compaction are folded into one selection matmul (sp_ref), so the
# kernel writes the compact (B*nc3, L/8) result (== torch conv output flattened row-major).
# --------------------------------------------------------------------------------------
def conv_stack_kernel(x_ref, w1_ref, s1_ref, w2_ref, s2_ref, w3_ref, s3_ref, sp_ref,
                      out_ref, *, L):
    n = x_ref.shape[1]                                          # Lp (multiple of 128)
    pos = jax.lax.broadcasted_iota(jnp.int32, (1, n), 1)        # lane position

    def conv_elu(cur, w_ref, sh_ref, d):
        # cur: (B*Cin, n), valid at lanes that are multiples of d, lane < L
        keep_prev = (pos >= d).astype(jnp.float32)              # left zero-pad
        keep_next = (pos < L - d).astype(jnp.float32)           # right zero-pad
        x_prev = pltpu.roll(cur, d, axis=1) * keep_prev         # x[l-1] at each valid lane
        x_next = pltpu.roll(cur, n - d, axis=1) * keep_next     # x[l+1] at each valid lane
        xcol = jnp.concatenate([x_prev, cur, x_next], axis=0)   # (3*B*Cin, n), 8-aligned stack
        z = jnp.dot(w_ref[...], xcol.astype(jnp.bfloat16),
                    preferred_element_type=jnp.float32) + sh_ref[...]   # conv + folded BN
        return jnp.where(z > 0.0, z, jnp.exp(jnp.minimum(z, 0.0)) - 1.0)  # ELU(alpha=1)

    e1 = conv_elu(x_ref[...], w1_ref, s1_ref, 1)
    p1 = 0.5 * (e1 + pltpu.roll(e1, n - 1, axis=1))             # AvgPool(2): valid -> multiples of 2
    e2 = conv_elu(p1, w2_ref, s2_ref, 2)
    p2 = 0.5 * (e2 + pltpu.roll(e2, n - 2, axis=1))             # valid -> multiples of 4
    e3 = conv_elu(p2, w3_ref, s3_ref, 4)
    # AvgPool(2) of block 3 + stride-8 compaction folded into one selection matmul:
    # sp_ref[8t, t] = sp_ref[8t+4, t] = 0.5  ->  out[:, t] = 0.5*(e3[:, 8t] + e3[:, 8t+4])
    out_ref[...] = jnp.dot(e3.astype(jnp.bfloat16), sp_ref[...],
                           preferred_element_type=jnp.float32)


def _fold_conv_bn_blockdiag(w, bias, gamma, beta, mean, var, B, eps=1e-5):
    """Fold conv bias + BN into block-diagonal (over batch) tap-major weights."""
    cout = w.shape[0]
    s = gamma / jnp.sqrt(var + eps)
    wf = w * s[:, None, None]                                   # (Cout, Cin, 3)
    eye_b = jnp.eye(B, dtype=w.dtype)
    blocks = [jnp.kron(eye_b, wf[:, :, k]) for k in range(3)]   # taps: x[l-1], x[l], x[l+1]
    w_bd = jnp.concatenate(blocks, axis=1).astype(jnp.bfloat16)  # (B*Cout, 3*B*Cin)
    shift = beta - mean * s + bias * s
    shift_bd = jnp.tile(shift, (B,)).reshape(B * cout, 1)        # (B*Cout, 1)
    return w_bd, shift_bd


def _pool_compact_matrix(lp, t_out):
    # folds block-3 AvgPool(2) (neighbour distance 4) + stride-8 compaction into one matmul
    p = jnp.arange(lp)[:, None]
    t = jnp.arange(t_out)[None, :]
    sel = (p == 8 * t) | (p == 8 * t + 4)
    return (0.5 * sel.astype(jnp.float32)).astype(jnp.bfloat16)  # (Lp, T)


def conv_stack(x, p1, p2, p3):
    B, c0, L = x.shape
    assert L % 8 == 0, "length must be divisible by 8 (3x AvgPool(2))"
    lp = max(128, ((L + 127) // 128) * 128)
    nc3 = p3[0].shape[0]
    t_out = L // 8
    w1, s1 = _fold_conv_bn_blockdiag(*p1, B=B)
    w2, s2 = _fold_conv_bn_blockdiag(*p2, B=B)
    w3, s3 = _fold_conv_bn_blockdiag(*p3, B=B)
    spool = _pool_compact_matrix(lp, t_out)
    xin = jnp.pad(x.reshape(B * c0, L), ((0, 0), (0, lp - L)))   # rows = b*C0 + c
    return pl.pallas_call(
        functools.partial(conv_stack_kernel, L=L),
        out_shape=jax.ShapeDtypeStruct((B * nc3, t_out), jnp.float32),
        in_specs=[_vmem()] * 8,
        out_specs=_vmem(),
    )(xin, w1, s1, w2, s2, w3, s3, spool)                        # (B*nc3, T), row-major == torch flat


# --------------------------------------------------------------------------------------
# Kernel B: input projections + bidirectional single-layer LSTM (PyTorch gate order
# i, f, g, o; h0=c0=0) + final Linear, fully fused.
# Working layout: gates/hidden on lanes, (direction x batch) on sublanes:
#   state h, c : (2B, H);  block-diagonal carry hd : (2B, 2H);  gates z : (2B, 4H).
# The torch  rnn_out.reshape(B, -1)  scramble is reproduced when assembling the FC input.
# --------------------------------------------------------------------------------------
def lstm_fc_kernel(seq_ref, wih_ref, bih_ref, wrec_ref, wfc_ref, bfc_ref, out_ref,
                   *, T, B, H):
    # Input projections for both directions, hoisted out of the recurrence (one matmul).
    zin = jnp.dot(seq_ref[...].astype(jnp.bfloat16), wih_ref[...],
                  preferred_element_type=jnp.float32) + bih_ref[...]     # (T*B, 8H)
    wrec = wrec_ref[...]                                                 # (2H, 4H) bf16

    rows = jax.lax.broadcasted_iota(jnp.int32, (2 * B, 2 * H), 0)
    cols = jax.lax.broadcasted_iota(jnp.int32, (2 * B, 2 * H), 1)
    dmask = jnp.where(((rows < B) & (cols < H)) | ((rows >= B) & (cols >= H)), 1.0, 0.0)

    def sigmoid(v):                                   # exact, single EUP push
        return 0.5 * jnp.tanh(0.5 * v) + 0.5

    hd = jnp.zeros((2 * B, 2 * H), jnp.float32)       # block-diagonal carry [h_f | 0 ; 0 | h_b]
    c = jnp.zeros((2 * B, H), jnp.float32)
    h_steps = []
    for k in range(T):                                # fully unrolled, all offsets static
        zf = zin[k * B:(k + 1) * B, 0:4 * H]                      # fwd dir: input t = k
        zb = zin[(T - 1 - k) * B:(T - k) * B, 4 * H:8 * H]        # bwd dir: input t = T-1-k
        z = jnp.concatenate([zf, zb], axis=0) + jnp.dot(
            hd.astype(jnp.bfloat16), wrec, preferred_element_type=jnp.float32)   # (2B, 4H)
        i = sigmoid(z[:, 0:H])
        f = sigmoid(z[:, H:2 * H])
        g = jnp.tanh(z[:, 2 * H:3 * H])
        o = sigmoid(z[:, 3 * H:4 * H])
        c = f * c + i * g
        h = o * jnp.tanh(c)                                       # (2B, H)
        hd = jnp.concatenate([h, h], axis=1) * dmask              # next block-diagonal carry
        h_steps.append(h)

    # Assemble torch's rnn_out (T, B, 2H) flattened row-major, split into B rows of T*2H
    # (this IS torch's out.reshape(B, -1), bug-for-bug).
    chunks = []
    for s in range(T):
        for b in range(B):
            chunks.append(h_steps[s][b:b + 1, :])                 # forward output at time s
            chunks.append(h_steps[T - 1 - s][B + b:B + b + 1, :])  # backward output at time s
    per_row = len(chunks) // B                                    # = T*2 chunks of H lanes
    hs = jnp.concatenate(
        [jnp.concatenate(chunks[r * per_row:(r + 1) * per_row], axis=1) for r in range(B)],
        axis=0)                                                   # (B, T*2H), lane-dense
    out_ref[...] = jnp.dot(hs.astype(jnp.bfloat16), wfc_ref[...],
                           preferred_element_type=jnp.float32) + bfc_ref[...]


def lstm_fc(seq2d, lstm_params, fc_w, fc_b, T, B):
    H = seq2d.shape[1]
    (wih_f, whh_f, bih_f, bhh_f, wih_b, whh_b, bih_b, bhh_b) = lstm_params
    wih = jnp.concatenate([wih_f.T, wih_b.T], axis=1).astype(jnp.bfloat16)     # (H, 8H)
    bih = jnp.concatenate([bih_f + bhh_f, bih_b + bhh_b]).reshape(1, 8 * H)    # (1, 8H)
    wrec = jnp.concatenate([whh_f.T, whh_b.T], axis=0).astype(jnp.bfloat16)    # (2H, 4H)
    wfc = fc_w.T.astype(jnp.bfloat16)                                          # (T*2H, O)
    bfc = fc_b.reshape(1, -1)
    O = fc_w.shape[0]
    return pl.pallas_call(
        functools.partial(lstm_fc_kernel, T=T, B=B, H=H),
        out_shape=jax.ShapeDtypeStruct((B, O), jnp.float32),
        in_specs=[_vmem()] * 6,
        out_specs=_vmem(),
    )(seq2d, wih, bih, wrec, wfc, bfc)


# --------------------------------------------------------------------------------------
# Full model forward (mirrors ThrCOneLBOneF.forward, including its raw .view semantics).
# --------------------------------------------------------------------------------------
def model_forward(x, params):
    B, _, L = x.shape
    nc3 = params["conv3"][0].shape[0]
    conv_out = conv_stack(x, params["conv1"], params["conv2"], params["conv3"])  # (B*nc3, L/8)
    T = L // 8
    assert params["fc_w"].shape[1] == nc3 * T * 2, "fc1 expects L/8 == 25"
    # torch: out.view(-1, B, nc3)  ==  raw flat reshape (free bitwise reshape of contiguous buffer)
    seq2d = conv_out.reshape(T * B, nc3)
    return lstm_fc(seq2d, params["lstm"], params["fc_w"], params["fc_b"], T, B)


def init_params(key, nc0, nc1, nc2, nc3, out_features):
    ks = iter(jax.random.split(key, 32))

    def conv_params(cin, cout):
        kw = 1.0 / jnp.sqrt(cin * 3.0)
        w = jax.random.uniform(next(ks), (cout, cin, 3), jnp.float32, -kw, kw)
        b = jax.random.uniform(next(ks), (cout,), jnp.float32, -kw, kw)
        gamma = 1.0 + 0.1 * jax.random.normal(next(ks), (cout,), jnp.float32)
        beta = 0.1 * jax.random.normal(next(ks), (cout,), jnp.float32)
        mean = 0.1 * jax.random.normal(next(ks), (cout,), jnp.float32)
        var = 1.0 + 0.1 * jnp.abs(jax.random.normal(next(ks), (cout,), jnp.float32))
        return (w, b, gamma, beta, mean, var)

    p = {}
    p["conv1"] = conv_params(nc0, nc1)
    p["conv2"] = conv_params(nc1, nc2)
    p["conv3"] = conv_params(nc2, nc3)

    H = nc3
    kh = 1.0 / jnp.sqrt(float(H))

    def lw(shape):
        return jax.random.uniform(next(ks), shape, jnp.float32, -kh, kh)

    p["lstm"] = (lw((4 * H, H)), lw((4 * H, H)), lw((4 * H,)), lw((4 * H,)),
                 lw((4 * H, H)), lw((4 * H, H)), lw((4 * H,)), lw((4 * H,)))

    F = nc3 * 25 * 2
    kf = 1.0 / jnp.sqrt(float(F))
    p["fc_w"] = jax.random.uniform(next(ks), (out_features, F), jnp.float32, -kf, kf)
    p["fc_b"] = jax.random.uniform(next(ks), (out_features,), jnp.float32, -kf, kf)
    return p


if __name__ == "__main__":
    nc0, nc1, nc2, nc3 = 4, 8, 8, 8
    out_features = 16
    B, L = 2, 200          # L/8 == 25 is required by fc1 (nc3 * 25 * 2 input features)

    key = jax.random.PRNGKey(0)
    pkey, xkey = jax.random.split(key)
    params = init_params(pkey, nc0, nc1, nc2, nc3, out_features)
    x = jax.random.normal(xkey, (B, nc0, L), jnp.float32)

    fwd = jax.jit(model_forward)
    y = fwd(x, params)
    jax.block_until_ready(y)
    assert y.shape == (B, out_features), y.shape
    print("KERNEL_OK")
</pallas_src>

<mosaic_0001>
module attributes {stable_mosaic.version = 11 : i64} {
  func.func @conv_stack_kernel(%arg0: memref<8x256xf32, #tpu.memory_space<vmem>>, %arg1: memref<16x24xbf16, #tpu.memory_space<vmem>>, %arg2: memref<16x1xf32, #tpu.memory_space<vmem>>, %arg3: memref<16x48xbf16, #tpu.memory_space<vmem>>, %arg4: memref<16x1xf32, #tpu.memory_space<vmem>>, %arg5: memref<16x48xbf16, #tpu.memory_space<vmem>>, %arg6: memref<16x1xf32, #tpu.memory_space<vmem>>, %arg7: memref<256x25xbf16, #tpu.memory_space<vmem>>, %arg8: memref<16x25xf32, #tpu.memory_space<vmem>>) attributes {dimension_semantics = [], scalar_prefetch = 0 : i64, scratch_operands = 0 : i64, tpu.core_type = #tpu.core_type<tc>} {
    %0 = tpu.iota {dimensions = array<i32: 1>} : vector<1x256xi32>
    %c0 = arith.constant 0 : index
    %c0_0 = arith.constant 0 : index
    %1 = vector.load %arg0[%c0, %c0_0] : memref<8x256xf32, #tpu.memory_space<vmem>>, vector<8x256xf32>
    %c1_i32 = arith.constant 1 : i32
    %2 = vector.broadcast %c1_i32 : i32 to vector<1x256xi32>
    %3 = arith.cmpi sge, %0, %2 : vector<1x256xi32>
    %4 = arith.extui %3 : vector<1x256xi1> to vector<1x256xi32>
    %5 = arith.sitofp %4 : vector<1x256xi32> to vector<1x256xf32>
    %c199_i32 = arith.constant 199 : i32
    %6 = vector.broadcast %c199_i32 : i32 to vector<1x256xi32>
    %7 = arith.cmpi slt, %0, %6 : vector<1x256xi32>
    %8 = arith.extui %7 : vector<1x256xi1> to vector<1x256xi32>
    %9 = arith.sitofp %8 : vector<1x256xi32> to vector<1x256xf32>
    %c1_i32_1 = arith.constant 1 : i32
    %10 = tpu.dynamic_rotate %1 by %c1_i32_1 dim 1 : vector<8x256xf32>, i32 -> vector<8x256xf32>
    %11 = vector.broadcast %5 : vector<1x256xf32> to vector<8x256xf32>
    %12 = arith.mulf %10, %11 : vector<8x256xf32>
    %c255_i32 = arith.constant 255 : i32
    %13 = tpu.dynamic_rotate %1 by %c255_i32 dim 1 : vector<8x256xf32>, i32 -> vector<8x256xf32>
    %14 = vector.broadcast %9 : vector<1x256xf32> to vector<8x256xf32>
    %15 = arith.mulf %13, %14 : vector<8x256xf32>
    %16 = tpu.concatenate %12, %1, %15 in 0 : vector<8x256xf32>, vector<8x256xf32>, vector<8x256xf32> -> vector<24x256xf32>
    %c0_2 = arith.constant 0 : index
    %c0_3 = arith.constant 0 : index
    %17 = vector.load %arg1[%c0_2, %c0_3] : memref<16x24xbf16, #tpu.memory_space<vmem>>, vector<16x24xbf16>
    %18 = arith.truncf %16 : vector<24x256xf32> to vector<24x256xbf16>
    %cst = arith.constant dense<0.000000e+00> : vector<16x256xf32>
    %19 = tpu.matmul %17, %18, %cst {dimension_numbers = #tpu.dot_dimension_numbers<[1], [0], [0], [1], [0, 0, 1, 1], [], []>} : vector<16x24xbf16>, vector<24x256xbf16>, vector<16x256xf32> -> vector<16x256xf32>
    %c0_4 = arith.constant 0 : index
    %c0_5 = arith.constant 0 : index
    %20 = vector.load %arg2[%c0_4, %c0_5] : memref<16x1xf32, #tpu.memory_space<vmem>>, vector<16x1xf32>
    %21 = vector.broadcast %20 : vector<16x1xf32> to vector<16x256xf32>
    %22 = arith.addf %19, %21 : vector<16x256xf32>
    %cst_6 = arith.constant 0.000000e+00 : f32
    %23 = vector.broadcast %cst_6 : f32 to vector<16x256xf32>
    %24 = arith.cmpf ogt, %22, %23 : vector<16x256xf32>
    %cst_7 = arith.constant 0.000000e+00 : f32
    %25 = vector.broadcast %cst_7 : f32 to vector<16x256xf32>
    %26 = arith.minimumf %22, %25 : vector<16x256xf32>
    %27 = math.exp %26 : vector<16x256xf32>
    %cst_8 = arith.constant 1.000000e+00 : f32
    %28 = vector.broadcast %cst_8 : f32 to vector<16x256xf32>
    %29 = arith.subf %27, %28 : vector<16x256xf32>
    %30 = arith.select %24, %22, %29 : vector<16x256xi1>, vector<16x256xf32>
    %c255_i32_9 = arith.constant 255 : i32
    %31 = tpu.dynamic_rotate %30 by %c255_i32_9 dim 1 : vector<16x256xf32>, i32 -> vector<16x256xf32>
    %32 = arith.addf %30, %31 : vector<16x256xf32>
    %cst_10 = arith.constant 5.000000e-01 : f32
    %33 = vector.broadcast %cst_10 : f32 to vector<16x256xf32>
    %34 = arith.mulf %33, %32 : vector<16x256xf32>
    %c2_i32 = arith.constant 2 : i32
    %35 = vector.broadcast %c2_i32 : i32 to vector<1x256xi32>
    %36 = arith.cmpi sge, %0, %35 : vector<1x256xi32>
    %37 = arith.extui %36 : vector<1x256xi1> to vector<1x256xi32>
    %38 = arith.sitofp %37 : vector<1x256xi32> to vector<1x256xf32>
    %c198_i32 = arith.constant 198 : i32
    %39 = vector.broadcast %c198_i32 : i32 to vector<1x256xi32>
    %40 = arith.cmpi slt, %0, %39 : vector<1x256xi32>
    %41 = arith.extui %40 : vector<1x256xi1> to vector<1x256xi32>
    %42 = arith.sitofp %41 : vector<1x256xi32> to vector<1x256xf32>
    %c2_i32_11 = arith.constant 2 : i32
    %43 = tpu.dynamic_rotate %34 by %c2_i32_11 dim 1 : vector<16x256xf32>, i32 -> vector<16x256xf32>
    %44 = vector.broadcast %38 : vector<1x256xf32> to vector<16x256xf32>
    %45 = arith.mulf %43, %44 : vector<16x256xf32>
    %c254_i32 = arith.constant 254 : i32
    %46 = tpu.dynamic_rotate %34 by %c254_i32 dim 1 : vector<16x256xf32>, i32 -> vector<16x256xf32>
    %47 = vector.broadcast %42 : vector<1x256xf32> to vector<16x256xf32>
    %48 = arith.mulf %46, %47 : vector<16x256xf32>
    %49 = tpu.concatenate %45, %34, %48 in 0 : vector<16x256xf32>, vector<16x256xf32>, vector<16x256xf32> -> vector<48x256xf32>
    %c0_12 = arith.constant 0 : index
    %c0_13 = arith.constant 0 : index
    %50 = vector.load %arg3[%c0_12, %c0_13] : memref<16x48xbf16, #tpu.memory_space<vmem>>, vector<16x48xbf16>
    %51 = arith.truncf %49 : vector<48x256xf32> to vector<48x256xbf16>
    %cst_14 = arith.constant dense<0.000000e+00> : vector<16x256xf32>
    %52 = tpu.matmul %50, %51, %cst_14 {dimension_numbers = #tpu.dot_dimension_numbers<[1], [0], [0], [1], [0, 0, 1, 1], [], []>} : vector<16x48xbf16>, vector<48x256xbf16>, vector<16x256xf32> -> vector<16x256xf32>
    %c0_15 = arith.constant 0 : index
    %c0_16 = arith.constant 0 : index
    %53 = vector.load %arg4[%c0_15, %c0_16] : memref<16x1xf32, #tpu.memory_space<vmem>>, vector<16x1xf32>
    %54 = vector.broadcast %53 : vector<16x1xf32> to vector<16x256xf32>
    %55 = arith.addf %52, %54 : vector<16x256xf32>
    %cst_17 = arith.constant 0.000000e+00 : f32
    %56 = vector.broadcast %cst_17 : f32 to vector<16x256xf32>
    %57 = arith.cmpf ogt, %55, %56 : vector<16x256xf32>
    %cst_18 = arith.constant 0.000000e+00 : f32
    %58 = vector.broadcast %cst_18 : f32 to vector<16x256xf32>
    %59 = arith.minimumf %55, %58 : vector<16x256xf32>
    %60 = math.exp %59 : vector<16x256xf32>
    %cst_19 = arith.constant 1.000000e+00 : f32
    %61 = vector.broadcast %cst_19 : f32 to vector<16x256xf32>
    %62 = arith.subf %60, %61 : vector<16x256xf32>
    %63 = arith.select %57, %55, %62 : vector<16x256xi1>, vector<16x256xf32>
    %c254_i32_20 = arith.constant 254 : i32
    %64 = tpu.dynamic_rotate %63 by %c254_i32_20 dim 1 : vector<16x256xf32>, i32 -> vector<16x256xf32>
    %65 = arith.addf %63, %64 : vector<16x256xf32>
    %cst_21 = arith.constant 5.000000e-01 : f32
    %66 = vector.broadcast %cst_21 : f32 to vector<16x256xf32>
    %67 = arith.mulf %66, %65 : vector<16x256xf32>
    %c4_i32 = arith.constant 4 : i32
    %68 = vector.broadcast %c4_i32 : i32 to vector<1x256xi32>
    %69 = arith.cmpi sge, %0, %68 : vector<1x256xi32>
    %70 = arith.extui %69 : vector<1x256xi1> to vector<1x256xi32>
    %71 = arith.sitofp %70 : vector<1x256xi32> to vector<1x256xf32>
    %c196_i32 = arith.constant 196 : i32
    %72 = vector.broadcast %c196_i32 : i32 to vector<1x256xi32>
    %73 = arith.cmpi slt, %0, %72 : vector<1x256xi32>
    %74 = arith.extui %73 : vector<1x256xi1> to vector<1x256xi32>
    %75 = arith.sitofp %74 : vector<1x256xi32> to vector<1x256xf32>
    %c4_i32_22 = arith.constant 4 : i32
    %76 = tpu.dynamic_rotate %67 by %c4_i32_22 dim 1 : vector<16x256xf32>, i32 -> vector<16x256xf32>
    %77 = vector.broadcast %71 : vector<1x256xf32> to vector<16x256xf32>
    %78 = arith.mulf %76, %77 : vector<16x256xf32>
    %c252_i32 = arith.constant 252 : i32
    %79 = tpu.dynamic_rotate %67 by %c252_i32 dim 1 : vector<16x256xf32>, i32 -> vector<16x256xf32>
    %80 = vector.broadcast %75 : vector<1x256xf32> to vector<16x256xf32>
    %81 = arith.mulf %79, %80 : vector<16x256xf32>
    %82 = tpu.concatenate %78, %67, %81 in 0 : vector<16x256xf32>, vector<16x256xf32>, vector<16x256xf32> -> vector<48x256xf32>
    %c0_23 = arith.constant 0 : index
    %c0_24 = arith.constant 0 : index
    %83 = vector.load %arg5[%c0_23, %c0_24] : memref<16x48xbf16, #tpu.memory_space<vmem>>, vector<16x48xbf16>
    %84 = arith.truncf %82 : vector<48x256xf32> to vector<48x256xbf16>
    %cst_25 = arith.constant dense<0.000000e+00> : vector<16x256xf32>
    %85 = tpu.matmul %83, %84, %cst_25 {dimension_numbers = #tpu.dot_dimension_numbers<[1], [0], [0], [1], [0, 0, 1, 1], [], []>} : vector<16x48xbf16>, vector<48x256xbf16>, vector<16x256xf32> -> vector<16x256xf32>
    %c0_26 = arith.constant 0 : index
    %c0_27 = arith.constant 0 : index
    %86 = vector.load %arg6[%c0_26, %c0_27] : memref<16x1xf32, #tpu.memory_space<vmem>>, vector<16x1xf32>
    %87 = vector.broadcast %86 : vector<16x1xf32> to vector<16x256xf32>
    %88 = arith.addf %85, %87 : vector<16x256xf32>
    %cst_28 = arith.constant 0.000000e+00 : f32
    %89 = vector.broadcast %cst_28 : f32 to vector<16x256xf32>
    %90 = arith.cmpf ogt, %88, %89 : vector<16x256xf32>
    %cst_29 = arith.constant 0.000000e+00 : f32
    %91 = vector.broadcast %cst_29 : f32 to vector<16x256xf32>
    %92 = arith.minimumf %88, %91 : vector<16x256xf32>
    %93 = math.exp %92 : vector<16x256xf32>
    %cst_30 = arith.constant 1.000000e+00 : f32
    %94 = vector.broadcast %cst_30 : f32 to vector<16x256xf32>
    %95 = arith.subf %93, %94 : vector<16x256xf32>
    %96 = arith.select %90, %88, %95 : vector<16x256xi1>, vector<16x256xf32>
    %97 = arith.truncf %96 : vector<16x256xf32> to vector<16x256xbf16>
    %c0_31 = arith.constant 0 : index
    %c0_32 = arith.constant 0 : index
    %98 = vector.load %arg7[%c0_31, %c0_32] : memref<256x25xbf16, #tpu.memory_space<vmem>>, vector<256x25xbf16>
    %cst_33 = arith.constant dense<0.000000e+00> : vector<16x25xf32>
    %99 = tpu.matmul %97, %98, %cst_33 {dimension_numbers = #tpu.dot_dimension_numbers<[1], [0], [0], [1], [0, 0, 1, 1], [], []>} : vector<16x256xbf16>, vector<256x25xbf16>, vector<16x25xf32> -> vector<16x25xf32>
    %c0_34 = arith.constant 0 : index
    %c0_35 = arith.constant 0 : index
    %100 = vector.load %arg8[%c0_34, %c0_35] : memref<16x25xf32, #tpu.memory_space<vmem>>, vector<16x25xf32>
    tpu.vector_store %arg8[%c0_34, %c0_35], %99 {strides = array<i32>} : memref<16x25xf32, #tpu.memory_space<vmem>>, vector<16x25xf32>,
    return
  }
}

module attributes {stable_mosaic.version = 11 : i64} {
  func.func @lstm_fc_kernel(%arg0: memref<50x8xf32, #tpu.memory_space<vmem>>, %arg1: memref<8x64xbf16, #tpu.memory_space<vmem>>, %arg2: memref<1x64xf32, #tpu.memory_space<vmem>>, %arg3: memref<16x32xbf16, #tpu.memory_space<vmem>>, %arg4: memref<400x16xbf16, #tpu.memory_space<vmem>>, %arg5: memref<1x16xf32, #tpu.memory_space<vmem>>, %arg6: memref<2x16xf32, #tpu.memory_space<vmem>>) attributes {dimension_semantics = [], scalar_prefetch = 0 : i64, scratch_operands = 0 : i64, tpu.core_type = #tpu.core_type<tc>} {
    %c0 = arith.constant 0 : index
    %c0_0 = arith.constant 0 : index
    %0 = vector.load %arg0[%c0, %c0_0] : memref<50x8xf32, #tpu.memory_space<vmem>>, vector<50x8xf32>
    %1 = arith.truncf %0 : vector<50x8xf32> to vector<50x8xbf16>
    %c0_1 = arith.constant 0 : index
    %c0_2 = arith.constant 0 : index
    %2 = vector.load %arg1[%c0_1, %c0_2] : memref<8x64xbf16, #tpu.memory_space<vmem>>, vector<8x64xbf16>
    %cst = arith.constant dense<0.000000e+00> : vector<50x64xf32>
    %3 = tpu.matmul %1, %2, %cst {dimension_numbers = #tpu.dot_dimension_numbers<[1], [0], [0], [1], [0, 0, 1, 1], [], []>} : vector<50x8xbf16>, vector<8x64xbf16>, vector<50x64xf32> -> vector<50x64xf32>
    %c0_3 = arith.constant 0 : index
    %c0_4 = arith.constant 0 : index
    %4 = vector.load %arg2[%c0_3, %c0_4] : memref<1x64xf32, #tpu.memory_space<vmem>>, vector<1x64xf32>
    %5 = vector.broadcast %4 : vector<1x64xf32> to vector<50x64xf32>
    %6 = arith.addf %3, %5 : vector<50x64xf32>
    %c0_5 = arith.constant 0 : index
    %c0_6 = arith.constant 0 : index
    %7 = vector.load %arg3[%c0_5, %c0_6] : memref<16x32xbf16, #tpu.memory_space<vmem>>, vector<16x32xbf16>
    %8 = tpu.iota {dimensions = array<i32: 0>} : vector<4x16xi32>
    %9 = tpu.iota {dimensions = array<i32: 1>} : vector<4x16xi32>
    %c2_i32 = arith.constant 2 : i32
    %10 = vector.broadcast %c2_i32 : i32 to vector<4x16xi32>
    %11 = arith.cmpi slt, %8, %10 : vector<4x16xi32>
    %c8_i32 = arith.constant 8 : i32
    %12 = vector.broadcast %c8_i32 : i32 to vector<4x16xi32>
    %13 = arith.cmpi slt, %9, %12 : vector<4x16xi32>
    %14 = arith.andi %11, %13 : vector<4x16xi1>
    %c2_i32_7 = arith.constant 2 : i32
    %15 = vector.broadcast %c2_i32_7 : i32 to vector<4x16xi32>
    %16 = arith.cmpi sge, %8, %15 : vector<4x16xi32>
    %c8_i32_8 = arith.constant 8 : i32
    %17 = vector.broadcast %c8_i32_8 : i32 to vector<4x16xi32>
    %18 = arith.cmpi sge, %9, %17 : vector<4x16xi32>
    %19 = arith.andi %16, %18 : vector<4x16xi1>
    %20 = arith.ori %14, %19 : vector<4x16xi1>
    %cst_9 = arith.constant 1.000000e+00 : f32
    %cst_10 = arith.constant 0.000000e+00 : f32
    %21 = vector.broadcast %cst_9 : f32 to vector<4x16xf32>
    %22 = vector.broadcast %cst_10 : f32 to vector<4x16xf32>
    %23 = arith.select %20, %21, %22 : vector<4x16xi1>, vector<4x16xf32>
    %cst_11 = arith.constant 0.000000e+00 : f32
    %24 = vector.broadcast %cst_11 : f32 to vector<4x16xf32>
    %cst_12 = arith.constant 0.000000e+00 : f32
    %25 = vector.broadcast %cst_12 : f32 to vector<4x8xf32>
    %26 = vector.extract_strided_slice %6 {offsets = [0, 0], sizes = [2, 32], strides = [1, 1]} : vector<50x64xf32> to vector<2x32xf32>
    %27 = vector.extract_strided_slice %6 {offsets = [48, 32], sizes = [2, 32], strides = [1, 1]} : vector<50x64xf32> to vector<2x32xf32>
    %28 = tpu.concatenate %26, %27 in 0 : vector<2x32xf32>, vector<2x32xf32> -> vector<4x32xf32>
    %29 = arith.truncf %24 : vector<4x16xf32> to vector<4x16xbf16>
    %cst_13 = arith.constant dense<0.000000e+00> : vector<4x32xf32>
    %30 = tpu.matmul %29, %7, %cst_13 {dimension_numbers = #tpu.dot_dimension_numbers<[1], [0], [0], [1], [0, 0, 1, 1], [], []>} : vector<4x16xbf16>, vector<16x32xbf16>, vector<4x32xf32> -> vector<4x32xf32>
    %31 = arith.addf %28, %30 : vector<4x32xf32>
    %32 = vector.extract_strided_slice %31 {offsets = [0, 0], sizes = [4, 8], strides = [1, 1]} : vector<4x32xf32> to vector<4x8xf32>
    %cst_14 = arith.constant 5.000000e-01 : f32
    %33 = vector.broadcast %cst_14 : f32 to vector<4x8xf32>
    %34 = arith.mulf %33, %32 : vector<4x8xf32>
    %35 = math.tanh %34 : vector<4x8xf32>
    %cst_15 = arith.constant 5.000000e-01 : f32
    %36 = vector.broadcast %cst_15 : f32 to vector<4x8xf32>
    %37 = arith.mulf %36, %35 : vector<4x8xf32>
    %cst_16 = arith.constant 5.000000e-01 : f32
    %38 = vector.broadcast %cst_16 : f32 to vector<4x8xf32>
    %39 = arith.addf %37, %38 : vector<4x8xf32>
    %40 = vector.extract_strided_slice %31 {offsets = [0, 8], sizes = [4, 8], strides = [1, 1]} : vector<4x32xf32> to vector<4x8xf32>
    %cst_17 = arith.constant 5.000000e-01 : f32
    %41 = vector.broadcast %cst_17 : f32 to vector<4x8xf32>
    %42 = arith.mulf %41, %40 : vector<4x8xf32>
    %43 = math.tanh %42 : vector<4x8xf32>
    %cst_18 = arith.constant 5.000000e-01 : f32
    %44 = vector.broadcast %cst_18 : f32 to vector<4x8xf32>
    %45 = arith.mulf %44, %43 : vector<4x8xf32>
    %cst_19 = arith.constant 5.000000e-01 : f32
    %46 = vector.broadcast %cst_19 : f32 to vector<4x8xf32>
    %47 = arith.addf %45, %46 : vector<4x8xf32>
    %48 = vector.extract_strided_slice %31 {offsets = [0, 16], sizes = [4, 8], strides = [1, 1]} : vector<4x32xf32> to vector<4x8xf32>
    %49 = math.tanh %48 : vector<4x8xf32>
    %50 = vector.extract_strided_slice %31 {offsets = [0, 24], sizes = [4, 8], strides = [1, 1]} : vector<4x32xf32> to vector<4x8xf32>
    %cst_20 = arith.constant 5.000000e-01 : f32
    %51 = vector.broadcast %cst_20 : f32 to vector<4x8xf32>
    %52 = arith.mulf %51, %50 : vector<4x8xf32>
    %53 = math.tanh %52 : vector<4x8xf32>
    %cst_21 = arith.constant 5.000000e-01 : f32
    %54 = vector.broadcast %cst_21 : f32 to vector<4x8xf32>
    %55 = arith.mulf %54, %53 : vector<4x8xf32>
    %cst_22 = arith.constant 5.000000e-01 : f32
    %56 = vector.broadcast %cst_22 : f32 to vector<4x8xf32>
    %57 = arith.addf %55, %56 : vector<4x8xf32>
    %58 = arith.mulf %47, %25 : vector<4x8xf32>
    %59 = arith.mulf %39, %49 : vector<4x8xf32>
    %60 = arith.addf %58, %59 : vector<4x8xf32>
    %61 = math.tanh %60 : vector<4x8xf32>
    %62 = arith.mulf %57, %61 : vector<4x8xf32>
    %63 = tpu.concatenate %62, %62 in 1 : vector<4x8xf32>, vector<4x8xf32> -> vector<4x16xf32>
    %64 = arith.mulf %63, %23 : vector<4x16xf32>
    %65 = vector.extract_strided_slice %6 {offsets = [2, 0], sizes = [2, 32], strides = [1, 1]} : vector<50x64xf32> to vector<2x32xf32>
    %66 = vector.extract_strided_slice %6 {offsets = [46, 32], sizes = [2, 32], strides = [1, 1]} : vector<50x64xf32> to vector<2x32xf32>
    %67 = tpu.concatenate %65, %66 in 0 : vector<2x32xf32>, vector<2x32xf32> -> vector<4x32xf32>
    %68 = arith.truncf %64 : vector<4x16xf32> to vector<4x16xbf16>
    %cst_23 = arith.constant dense<0.000000e+00> : vector<4x32xf32>
    %69 = tpu.matmul %68, %7, %cst_23 {dimension_numbers = #tpu.dot_dimension_numbers<[1], [0], [0], [1], [0, 0, 1, 1], [], []>} : vector<4x16xbf16>, vector<16x32xbf16>, vector<4x32xf32> -> vector<4x32xf32>
    %70 = arith.addf %67, %69 : vector<4x32xf32>
    %71 = vector.extract_strided_slice %70 {offsets = [0, 0], sizes = [4, 8], strides = [1, 1]} : vector<4x32xf32> to vector<4x8xf32>
    %cst_24 = arith.constant 5.000000e-01 : f32
    %72 = vector.broadcast %cst_24 : f32 to vector<4x8xf32>
    %73 = arith.mulf %72, %71 : vector<4x8xf32>
    %74 = math.tanh %73 : vector<4x8xf32>
    %cst_25 = arith.constant 5.000000e-01 : f32
    %75 = vector.broadcast %cst_25 : f32 to vector<4x8xf32>
    %76 = arith.mulf %75, %74 : vector<4x8xf32>
    %cst_26 = arith.constant 5.000000e-01 : f32
    %77 = vector.broadcast %cst_26 : f32 to vector<4x8xf32>
    %78 = arith.addf %76, %77 : vector<4x8xf32>
    %79 = vector.extract_strided_slice %70 {offsets = [0, 8], sizes = [4, 8], strides = [1, 1]} : vector<4x32xf32> to vector<4x8xf32>
    %cst_27 = arith.constant 5.000000e-01 : f32
    %80 = vector.broadcast %cst_27 : f32 to vector<4x8xf32>
    %81 = arith.mulf %80, %79 : vector<4x8xf32>
    %82 = math.tanh %81 : vector<4x8xf32>
    %cst_28 = arith.constant 5.000000e-01 : f32
    %83 = vector.broadcast %cst_28 : f32 to vector<4x8xf32>
    %84 = arith.mulf %83, %82 : vector<4x8xf32>
    %cst_29 = arith.constant 5.000000e-01 : f32
    %85 = vector.broadcast %cst_29 : f32 to vector<4x8xf32>
    %86 = arith.addf %84, %85 : vector<4x8xf32>
    %87 = vector.extract_strided_slice %70 {offsets = [0, 16], sizes = [4, 8], strides = [1, 1]} : vector<4x32xf32> to vector<4x8xf32>
    %88 = math.tanh %87 : vector<4x8xf32>
    %89 = vector.extract_strided_slice %70 {offsets = [0, 24], sizes = [4, 8], strides = [1, 1]} : vector<4x32xf32> to vector<4x8xf32>
    %cst_30 = arith.constant 5.000000e-01 : f32
    %90 = vector.broadcast %cst_30 : f32 to vector<4x8xf32>
    %91 = arith.mulf %90, %89 : vector<4x8xf32>
    %92 = math.tanh %91 : vector<4x8xf32>
    %cst_31 = arith.constant 5.000000e-01 : f32
    %93 = vector.broadcast %cst_31 : f32 to vector<4x8xf32>
    %94 = arith.mulf %93, %92 : vector<4x8xf32>
    %cst_32 = arith.constant 5.000000e-01 : f32
    %95 = vector.broadcast %cst_32 : f32 to vector<4x8xf32>
    %96 = arith.addf %94, %95 : vector<4x8xf32>
    %97 = arith.mulf %86, %60 : vector<4x8xf32>
    %98 = arith.mulf %78, %88 : vector<4x8xf32>
    %99 = arith.addf %97, %98 : vector<4x8xf32>
    %100 = math.tanh %99 : vector<4x8xf32>
    %101 = arith.mulf %96, %100 : vector<4x8xf32>
    %102 = tpu.concatenate %101, %101 in 1 : vector<4x8xf32>, vector<4x8xf32> -> vector<4x16xf32>
    %103 = arith.mulf %102, %23 : vector<4x16xf32>
    %104 = vector.extract_strided_slice %6 {offsets = [4, 0], sizes = [2, 32], strides = [1, 1]} : vector<50x64xf32> to vector<2x32xf32>
    %105 = vector.extract_strided_slice %6 {offsets = [44, 32], sizes = [2, 32], strides = [1, 1]} : vector<50x64xf32> to vector<2x32xf32>
    %106 = tpu.concatenate %104, %105 in 0 : vector<2x32xf32>, vector<2x32xf32> -> vector<4x32xf32>
    %107 = arith.truncf %103 : vector<4x16xf32> to vector<4x16xbf16>
    %cst_33 = arith.constant dense<0.000000e+00> : vector<4x32xf32>
    %108 = tpu.matmul %107, %7, %cst_33 {dimension_numbers = #tpu.dot_dimension_numbers<[1], [0], [0], [1], [0, 0, 1, 1], [], []>} : vector<4x16xbf16>, vector<16x32xbf16>, vector<4x32xf32> -> vector<4x32xf32>
    %109 = arith.addf %106, %108 : vector<4x32xf32>
    %110 = vector.extract_strided_slice %109 {offsets = [0, 0], sizes = [4, 8], strides = [1, 1]} : vector<4x32xf32> to vector<4x8xf32>
    %cst_34 = arith.constant 5.000000e-01 : f32
    %111 = vector.broadcast %cst_34 : f32 to vector<4x8xf32>
    %112 = arith.mulf %111, %110 : vector<4x8xf32>
    %113 = math.tanh %112 : vector<4x8xf32>
    %cst_35 = arith.constant 5.000000e-01 : f32
    %114 = vector.broadcast %cst_35 : f32 to vector<4x8xf32>
    %115 = arith.mulf %114, %113 : vector<4x8xf32>
    %cst_36 = arith.constant 5.000000e-01 : f32
    %116 = vector.broadcast %cst_36 : f32 to vector<4x8xf32>
    %117 = arith.addf %115, %116 : vector<4x8xf32>
    %118 = vector.extract_strided_slice %109 {offsets = [0, 8], sizes = [4, 8], strides = [1, 1]} : vector<4x32xf32> to vector<4x8xf32>
    %cst_37 = arith.constant 5.000000e-01 : f32
    %119 = vector.broadcast %cst_37 : f32 to vector<4x8xf32>
    %120 = arith.mulf %119, %118 : vector<4x8xf32>
    %121 = math.tanh %120 : vector<4x8xf32>
    %cst_38 = arith.constant 5.000000e-01 : f32
    %122 = vector.broadcast %cst_38 : f32 to vector<4x8xf32>
    %123 = arith.mulf %122, %121 : vector<4x8xf32>
    %cst_39 = arith.constant 5.000000e-01 : f32
    %124 = vector.broadcast %cst_39 : f32 to vector<4x8xf32>
    %125 = arith.addf %123, %124 : vector<4x8xf32>
    %126 = vector.extract_strided_slice %109 {offsets = [0, 16], sizes = [4, 8], strides = [1, 1]} : vector<4x32xf32> to vector<4x8xf32>
    %127 = math.tanh %126 : vector<4x8xf32>
    %128 = vector.extract_strided_slice %109 {offsets = [0, 24], sizes = [4, 8], strides = [1, 1]} : vector<4x32xf32> to vector<4x8xf32>
    %cst_40 = arith.constant 5.000000e-01 : f32
    %129 = vector.broadcast %cst_40 : f32 to vector<4x8xf32>
    %130 = arith.mulf %129, %128 : vector<4x8xf32>
    %131 = math.tanh %130 : vector<4x8xf32>
    %cst_41 = arith.constant 5.000000e-01 : f32
    %132 = vector.broadcast %cst_41 : f32 to vector<4x8xf32>
    %133 = arith.mulf %132, %131 : vector<4x8xf32>
    %cst_42 = arith.constant 5.000000e-01 : f32
    %134 = vector.broadcast %cst_42 : f32 to vector<4x8xf32>
    %135 = arith.addf %133, %134 : vector<4x8xf32>
    %136 = arith.mulf %125, %99 : vector<4x8xf32>
    %137 = arith.mulf %117, %127 : vector<4x8xf32>
    %138 = arith.addf %136, %137 : vector<4x8xf32>
    %139 = math.tanh %138 : vector<4x8xf32>
    %140 = arith.mulf %135, %139 : vector<4x8xf32>
    %141 = tpu.concatenate %140, %140 in 1 : vector<4x8xf32>, vector<4x8xf32> -> vector<4x16xf32>
    %142 = arith.mulf %141, %23 : vector<4x16xf32>
    %143 = vector.extract_strided_slice %6 {offsets = [6, 0], sizes = [2, 32], strides = [1, 1]} : vector<50x64xf32> to vector<2x32xf32>
    %144 = vector.extract_strided_slice %6 {offsets = [42, 32], sizes = [2, 32], strides = [1, 1]} : vector<50x64xf32> to vector<2x32xf32>
    %145 = tpu.concatenate %143, %144 in 0 : vector<2x32xf32>, vector<2x32xf32> -> vector<4x32xf32>
    %146 = arith.truncf %142 : vector<4x16xf32> to vector<4x16xbf16>
    %cst_43 = arith.constant dense<0.000000e+00> : vector<4x32xf32>
    %147 = tpu.matmul %146, %7, %cst_43 {dimension_numbers = #tpu.dot_dimension_numbers<[1], [0], [0], [1], [0, 0, 1, 1], [], []>} : vector<4x16xbf16>, vector<16x32xbf16>, vector<4x32xf32> -> vector<4x32xf32>
    %148 = arith.addf %145, %147 : vector<4x32xf32>
    %149 = vector.extract_strided_slice %148 {offsets = [0, 0], sizes = [4, 8], strides = [1, 1]} : vector<4x32xf32> to vector<4x8xf32>
    %cst_44 = arith.constant 5.000000e-01 : f32
    %150 = vector.broadcast %cst_44 : f32 to vector<4x8xf32>
    %151 = arith.mulf %150, %149 : vector<4x8xf32>
    %152 = math.tanh %151 : vector<4x8xf32>
    %cst_45 = arith.constant 5.000000e-01 : f32
    %153 = vector.broadcast %cst_45 : f32 to vector<4x8xf32>
    %154 = arith.mulf %153, %152 : vector<4x8xf32>
    %cst_46 = arith.constant 5.000000e-01 : f32
    %155 = vector.broadcast %cst_46 : f32 to vector<4x8xf32>
    %156 = arith.addf %154, %155 : vector<4x8xf32>
    %157 = vector.extract_strided_slice %148 {offsets = [0, 8], sizes = [4, 8], strides = [1, 1]} : vector<4x32xf32> to vector<4x8xf32>
    %cst_47 = arith.constant 5.000000e-01 : f32
    %158 = vector.broadcast %cst_47 : f32 to vector<4x8xf32>
    %159 = arith.mulf %158, %157 : vector<4x8xf32>
    %160 = math.tanh %159 : vector<4x8xf32>
    %cst_48 = arith.constant 5.000000e-01 : f32
    %161 = vector.broadcast %cst_48 : f32 to vector<4x8xf32>
    %162 = arith.mulf %161, %160 : vector<4x8xf32>
    %cst_49 = arith.constant 5.000000e-01 : f32
    %163 = vector.broadcast %cst_49 : f32 to vector<4x8xf32>
    %164 = arith.addf %162, %163 : vector<4x8xf32>
    %165 = vector.extract_strided_slice %148 {offsets = [0, 16], sizes = [4, 8], strides = [1, 1]} : vector<4x32xf32> to vector<4x8xf32>
    %166 = math.tanh %165 : vector<4x8xf32>
    %167 = vector.extract_strided_slice %148 {offsets = [0, 24], sizes = [4, 8], strides = [1, 1]} : vector<4x32xf32> to vector<4x8xf32>
    %cst_50 = arith.constant 5.000000e-01 : f32
    %168 = vector.broadcast %cst_50 : f32 to vector<4x8xf32>
    %169 = arith.mulf %168, %167 : vector<4x8xf32>
    %170 = math.tanh %169 : vector<4x8xf32>
    %cst_51 = arith.constant 5.000000e-01 : f32
    %171 = vector.broadcast %cst_51 : f32 to vector<4x8xf32>
    %172 = arith.mulf %171, %170 : vector<4x8xf32>
    %cst_52 = arith.constant 5.000000e-01 : f32
    %173 = vector.broadcast %cst_52 : f32 to vector<4x8xf32>
    %174 = arith.addf %172, %173 : vector<4x8xf32>
    %175 = arith.mulf %164, %138 : vector<4x8xf32>
    %176 = arith.mulf %156, %166 : vector<4x8xf32>
    %177 = arith.addf %175, %176 : vector<4x8xf32>
    %178 = math.tanh %177 : vector<4x8xf32>
    %179 = arith.mulf %174, %178 : vector<4x8xf32>
    %180 = tpu.concatenate %179, %179 in 1 : vector<4x8xf32>, vector<4x8xf32> -> vector<4x16xf32>
    %181 = arith.mulf %180, %23 : vector<4x16xf32>
    %182 = vector.extract_strided_slice %6 {offsets = [8, 0], sizes = [2, 32], strides = [1, 1]} : vector<50x64xf32> to vector<2x32xf32>
    %183 = vector.extract_strided_slice %6 {offsets = [40, 32], sizes = [2, 32], strides = [1, 1]} : vector<50x64xf32> to vector<2x32xf32>
    %184 = tpu.concatenate %182, %183 in 0 : vector<2x32xf32>, vector<2x32xf32> -> vector<4x32xf32>
    %185 = arith.truncf %181 : vector<4x16xf32> to vector<4x16xbf16>
    %cst_53 = arith.constant dense<0.000000e+00> : vector<4x32xf32>
    %186 = tpu.matmul %185, %7, %cst_53 {dimension_numbers = #tpu.dot_dimension_numbers<[1], [0], [0], [1], [0, 0, 1, 1], [], []>} : vector<4x16xbf16>, vector<16x32xbf16>, vector<4x32xf32> -> vector<4x32xf32>
    %187 = arith.addf %184, %186 : vector<4x32xf32>
    %188 = vector.extract_strided_slice %187 {offsets = [0, 0], sizes = [4, 8], strides = [1, 1]} : vector<4x32xf32> to vector<4x8xf32>
    %cst_54 = arith.constant 5.000000e-01 : f32
    %189 = vector.broadcast %cst_54 : f32 to vector<4x8xf32>
    %190 = arith.mulf %189, %188 : vector<4x8xf32>
    %191 = math.tanh %190 : vector<4x8xf32>
    %cst_55 = arith.constant 5.000000e-01 : f32
    %192 = vector.broadcast %cst_55 : f32 to vector<4x8xf32>
    %193 = arith.mulf %192, %191 : vector<4x8xf32>
    %cst_56 = arith.constant 5.000000e-01 : f32
    %194 = vector.broadcast %cst_56 : f32 to vector<4x8xf32>
    %195 = arith.addf %193, %194 : vector<4x8xf32>
    %196 = vector.extract_strided_slice %187 {offsets = [0, 8], sizes = [4, 8], strides = [1, 1]} : vector<4x32xf32> to vector<4x8xf32>
    %cst_57 = arith.constant 5.000000e-01 : f32
    %197 = vector.broadcast %cst_57 : f32 to vector<4x8xf32>
    %198 = arith.mulf %197, %196 : vector<4x8xf32>
    %199 = math.tanh %198 : vector<4x8xf32>
    %cst_58 = arith.constant 5.000000e-01 : f32
    %200 = vector.broadcast %cst_58 : f32 to vector<4x8xf32>
    %201 = arith.mulf %200, %199 : vector<4x8xf32>
    %cst_59 = arith.constant 5.000000e-01 : f32
    %202 = vector.broadcast %cst_59 : f32 to vector<4x8xf32>
    %203 = arith.addf %201, %202 : vector<4x8xf32>
    %204 = vector.extract_strided_slice %187 {offsets = [0, 16], sizes = [4, 8], strides = [1, 1]} : vector<4x32xf32> to vector<4x8xf32>
    %205 = math.tanh %204 : vector<4x8xf32>
    %206 = vector.extract_strided_slice %187 {offsets = [0, 24], sizes = [4, 8], strides = [1, 1]} : vector<4x32xf32> to vector<4x8xf32>
    %cst_60 = arith.constant 5.000000e-01 : f32
    %207 = vector.broadcast %cst_60 : f32 to vector<4x8xf32>
    %208 = arith.mulf %207, %206 : vector<4x8xf32>
    %209 = math.tanh %208 : vector<4x8xf32>
    %cst_61 = arith.constant 5.000000e-01 : f32
    %210 = vector.broadcast %cst_61 : f32 to vector<4x8xf32>
    %211 = arith.mulf %210, %209 : vector<4x8xf32>
    %cst_62 = arith.constant 5.000000e-01 : f32
    %212 = vector.broadcast %cst_62 : f32 to vector<4x8xf32>
    %213 = arith.addf %211, %212 : vector<4x8xf32>
    %214 = arith.mulf %203, %177 : vector<4x8xf32>
    %215 = arith.mulf %195, %205 : vector<4x8xf32>
    %216 = arith.addf %214, %215 : vector<4x8xf32>
    %217 = math.tanh %216 : vector<4x8xf32>
    %218 = arith.mulf %213, %217 : vector<4x8xf32>
    %219 = tpu.concatenate %218, %218 in 1 : vector<4x8xf32>, vector<4x8xf32> -> vector<4x16xf32>
    %220 = arith.mulf %219, %23 : vector<4x16xf32>
    %221 = vector.extract_strided_slice %6 {offsets = [10, 0], sizes = [2, 32], strides = [1, 1]} : vector<50x64xf32> to vector<2x32xf32>
    %222 = vector.extract_strided_slice %6 {offsets = [38, 32], sizes = [2, 32], strides = [1, 1]} : vector<50x64xf32> to vector<2x32xf32>
    %223 = tpu.concatenate %221, %222 in 0 : vector<2x32xf32>, vector<2x32xf32> -> vector<4x32xf32>
    %224 = arith.truncf %220 : vector<4x16xf32> to vector<4x16xbf16>
    %cst_63 = arith.constant dense<0.000000e+00> : vector<4x32xf32>
    %225 = tpu.matmul %224, %7, %cst_63 {dimension_numbers = #tpu.dot_dimension_numbers<[1], [0], [0], [1], [0, 0, 1, 1], [], []>} : vector<4x16xbf16>, vector<16x32xbf16>, vector<4x32xf32> -> vector<4x32xf32>
    %226 = arith.addf %223, %225 : vector<4x32xf32>
    %227 = vector.extract_strided_slice %226 {offsets = [0, 0], sizes = [4, 8], strides = [1, 1]} : vector<4x32xf32> to vector<4x8xf32>
    %cst_64 = arith.constant 5.000000e-01 : f32
    %228 = vector.broadcast %cst_64 : f32 to vector<4x8xf32>
    %229 = arith.mulf %228, %227 : vector<4x8xf32>
    %230 = math.tanh %229 : vector<4x8xf32>
    %cst_65 = arith.constant 5.000000e-01 : f32
    %231 = vector.broadcast %cst_65 : f32 to vector<4x8xf32>
    %232 = arith.mulf %231, %230 : vector<4x8xf32>
    %cst_66 = arith.constant 5.000000e-01 : f32
    %233 = vector.broadcast %cst_66 : f32 to vector<4x8xf32>
    %234 = arith.addf %232, %233 : vector<4x8xf32>
    %235 = vector.extract_strided_slice %226 {offsets = [0, 8], sizes = [4, 8], strides = [1, 1]} : vector<4x32xf32> to vector<4x8xf32>
    %cst_67 = arith.constant 5.000000e-01 : f32
    %236 = vector.broadcast %cst_67 : f32 to vector<4x8xf32>
    %237 = arith.mulf %236, %235 : vector<4x8xf32>
    %238 = math.tanh %237 : vector<4x8xf32>
    %cst_68 = arith.constant 5.000000e-01 : f32
    %239 = vector.broadcast %cst_68 : f32 to vector<4x8xf32>
    %240 = arith.mulf %239, %238 : vector<4x8xf32>
    %cst_69 = arith.constant 5.000000e-01 : f32
    %241 = vector.broadcast %cst_69 : f32 to vector<4x8xf32>
    %242 = arith.addf %240, %241 : vector<4x8xf32>
    %243 = vector.extract_strided_slice %226 {offsets = [0, 16], sizes = [4, 8], strides = [1, 1]} : vector<4x32xf32> to vector<4x8xf32>
    %244 = math.tanh %243 : vector<4x8xf32>
    %245 = vector.extract_strided_slice %226 {offsets = [0, 24], sizes = [4, 8], strides = [1, 1]} : vector<4x32xf32> to vector<4x8xf32>
    %cst_70 = arith.constant 5.000000e-01 : f32
    %246 = vector.broadcast %cst_70 : f32 to vector<4x8xf32>
    %247 = arith.mulf %246, %245 : vector<4x8xf32>
    %248 = math.tanh %247 : vector<4x8xf32>
    %cst_71 = arith.constant 5.000000e-01 : f32
    %249 = vector.broadcast %cst_71 : f32 to vector<4x8xf32>
    %250 = arith.mulf %249, %248 : vector<4x8xf32>
    %cst_72 = arith.constant 5.000000e-01 : f32
    %251 = vector.broadcast %cst_72 : f32 to vector<4x8xf32>
    %252 = arith.addf %250, %251 : vector<4x8xf32>
    %253 = arith.mulf %242, %216 : vector<4x8xf32>
    %254 = arith.mulf %234, %244 : vector<4x8xf32>
    %255 = arith.addf %253, %254 : vector<4x8xf32>
    %256 = math.tanh %255 : vector<4x8xf32>
    %257 = arith.mulf %252, %256 : vector<4x8xf32>
    %258 = tpu.concatenate %257, %257 in 1 : vector<4x8xf32>, vector<4x8xf32> -> vector<4x16xf32>
    %259 = arith.mulf %258, %23 : vector<4x16xf32>
    %260 = vector.extract_strided_slice %6 {offsets = [12, 0], sizes = [2, 32], strides = [1, 1]} : vector<50x64xf32> to vector<2x32xf32>
    %261 = vector.extract_strided_slice %6 {offsets = [36, 32], sizes = [2, 32], strides = [1, 1]} : vector<50x64xf32> to vector<2x32xf32>
    %262 = tpu.concatenate %260, %261 in 0 : vector<2x32xf32>, vector<2x32xf32> -> vector<4x32xf32>
    %263 = arith.truncf %259 : vector<4x16xf32> to vector<4x16xbf16>
    %cst_73 = arith.constant dense<0.000000e+00> : vector<4x32xf32>
    %264 = tpu.matmul %263, %7, %cst_73 {dimension_numbers = #tpu.dot_dimension_numbers<[1], [0], [0], [1], [0, 0, 1, 1], [], []>} : vector<4x16xbf16>, vector<16x32xbf16>, vector<4x32xf32> -> vector<4x32xf32>
    %265 = arith.addf %262, %264 : vector<4x32xf32>
    %266 = vector.extract_strided_slice %265 {offsets = [0, 0], sizes = [4, 8], strides = [1, 1]} : vector<4x32xf32> to vector<4x8xf32>
    %cst_74 = arith.constant 5.000000e-01 : f32
    %267 = vector.broadcast %cst_74 : f32 to vector<4x8xf32>
    %268 = arith.mulf %267, %266 : vector<4x8xf32>
    %269 = math.tanh %268 : vector<4x8xf32>
    %cst_75 = arith.constant 5.000000e-01 : f32
    %270 = vector.broadcast %cst_75 : f32 to vector<4x8xf32>
    %271 = arith.mulf %270, %269 : vector<4x8xf32>
    %cst_76 = arith.constant 5.000000e-01 : f32
    %272 = vector.broadcast %cst_76 : f32 to vector<4x8xf32>
    %273 = arith.addf %271, %272 : vector<4x8xf32>
    %274 = vector.extract_strided_slice %265 {offsets = [0, 8], sizes = [4, 8], strides = [1, 1]} : vector<4x32xf32> to vector<4x8xf32>
    %cst_77 = arith.constant 5.000000e-01 : f32
    %275 = vector.broadcast %cst_77 : f32 to vector<4x8xf32>
    %276 = arith.mulf %275, %274 : vector<4x8xf32>
    %277 = math.tanh %276 : vector<4x8xf32>
    %cst_78 = arith.constant 5.000000e-01 : f32
    %278 = vector.broadcast %cst_78 : f32 to vector<4x8xf32>
    %279 = arith.mulf %278, %277 : vector<4x8xf32>
    %cst_79 = arith.constant 5.000000e-01 : f32
    %280 = vector.broadcast %cst_79 : f32 to vector<4x8xf32>
    %281 = arith.addf %279, %280 : vector<4x8xf32>
    %282 = vector.extract_strided_slice %265 {offsets = [0, 16], sizes = [4, 8], strides = [1, 1]} : vector<4x32xf32> to vector<4x8xf32>
    %283 = math.tanh %282 : vector<4x8xf32>
    %284 = vector.extract_strided_slice %265 {offsets = [0, 24], sizes = [4, 8], strides = [1, 1]} : vector<4x32xf32> to vector<4x8xf32>
    %cst_80 = arith.constant 5.000000e-01 : f32
    %285 = vector.broadcast %cst_80 : f32 to vector<4x8xf32>
    %286 = arith.mulf %285, %284 : vector<4x8xf32>
    %287 = math.tanh %286 : vector<4x8xf32>
    %cst_81 = arith.constant 5.000000e-01 : f32
    %288 = vector.broadcast %cst_81 : f32 to vector<4x8xf32>
    %289 = arith.mulf %288, %287 : vector<4x8xf32>
    %cst_82 = arith.constant 5.000000e-01 : f32
    %290 = vector.broadcast %cst_82 : f32 to vector<4x8xf32>
    %291 = arith.addf %289, %290 : vector<4x8xf32>
    %292 = arith.mulf %281, %255 : vector<4x8xf32>
    %293 = arith.mulf %273, %283 : vector<4x8xf32>
    %294 = arith.addf %292, %293 : vector<4x8xf32>
    %295 = math.tanh %294 : vector<4x8xf32>
    %296 = arith.mulf %291, %295 : vector<4x8xf32>
    %297 = tpu.concatenate %296, %296 in 1 : vector<4x8xf32>, vector<4x8xf32> -> vector<4x16xf32>
    %298 = arith.mulf %297, %23 : vector<4x16xf32>
    %299 = vector.extract_strided_slice %6 {offsets = [14, 0], sizes = [2, 32], strides = [1, 1]} : vector<50x64xf32> to vector<2x32xf32>
    %300 = vector.extract_strided_slice %6 {offsets = [34, 32], sizes = [2, 32], strides = [1, 1]} : vector<50x64xf32> to vector<2x32xf32>
    %301 = tpu.concatenate %299, %300 in 0 : vector<2x32xf32>, vector<2x32xf32> -> vector<4x32xf32>
    %302 = arith.truncf %298 : vector<4x16xf32> to vector<4x16xbf16>
    %cst_83 = arith.constant dense<0.000000e+00> : vector<4x32xf32>
    %303 = tpu.matmul %302, %7, %cst_83 {dimension_numbers = #tpu.dot_dimension_numbers<[1], [0], [0], [1], [0, 0, 1, 1], [], []>} : vector<4x16xbf16>, vector<16x32xbf16>, vector<4x32xf32> -> vector<4x32xf32>
    %304 = arith.addf %301, %303 : vector<4x32xf32>
    %305 = vector.extract_strided_slice %304 {offsets = [0, 0], sizes = [4, 8], strides = [1, 1]} : vector<4x32xf32> to vector<4x8xf32>
    %cst_84 = arith.constant 5.000000e-01 : f32
    %306 = vector.broadcast %cst_84 : f32 to vector<4x8xf32>
    %307 = arith.mulf %306, %305 : vector<4x8xf32>
    %308 = math.tanh %307 : vector<4x8xf32>
    %cst_85 = arith.constant 5.000000e-01 : f32
    %309 = vector.broadcast %cst_85 : f32 to vector<4x8xf32>
    %310 = arith.mulf %309, %308 : vector<4x8xf32>
    %cst_86 = arith.constant 5.000000e-01 : f32
    %311 = vector.broadcast %cst_86 : f32 to vector<4x8xf32>
    %312 = arith.addf %310, %311 : vector<4x8xf32>
    %313 = vector.extract_strided_slice %304 {offsets = [0, 8], sizes = [4, 8], strides = [1, 1]} : vector<4x32xf32> to vector<4x8xf32>
    %cst_87 = arith.constant 5.000000e-01 : f32
    %314 = vector.broadcast %cst_87 : f32 to vector<4x8xf32>
    %315 = arith.mulf %314, %313 : vector<4x8xf32>
    %316 = math.tanh %315 : vector<4x8xf32>
    %cst_88 = arith.constant 5.000000e-01 : f32
    %317 = vector.broadcast %cst_88 : f32 to vector<4x8xf32>
    %318 = arith.mulf %317, %316 : vector<4x8xf32>
    %cst_89 = arith.constant 5.000000e-01 : f32
    %319 = vector.broadcast %cst_89 : f32 to vector<4x8xf32>
    %320 = arith.addf %318, %319 : vector<4x8xf32>
    %321 = vector.extract_strided_slice %304 {offsets = [0, 16], sizes = [4, 8], strides = [1, 1]} : vector<4x32xf32> to vector<4x8xf32>
    %322 = math.tanh %321 : vector<4x8xf32>
    %323 = vector.extract_strided_slice %304 {offsets = [0, 24], sizes = [4, 8], strides = [1, 1]} : vector<4x32xf32> to vector<4x8xf32>
    %cst_90 = arith.constant 5.000000e-01 : f32
    %324 = vector.broadcast %cst_90 : f32 to vector<4x8xf32>
    %325 = arith.mulf %324, %323 : vector<4x8xf32>
    %326 = math.tanh %325 : vector<4x8xf32>
    %cst_91 = arith.constant 5.000000e-01 : f32
    %327 = vector.broadcast %cst_91 : f32 to vector<4x8xf32>
    %328 = arith.mulf %327, %326 : vector<4x8xf32>
    %cst_92 = arith.constant 5.000000e-01 : f32
    %329 = vector.broadcast %cst_92 : f32 to vector<4x8xf32>
    %330 = arith.addf %328, %329 : vector<4x8xf32>
    %331 = arith.mulf %320, %294 : vector<4x8xf32>
    %332 = arith.mulf %312, %322 : vector<4x8xf32>
    %333 = arith.addf %331, %332 : vector<4x8xf32>
    %334 = math.tanh %333 : vector<4x8xf32>
    %335 = arith.mulf %330, %334 : vector<4x8xf32>
    %336 = tpu.concatenate %335, %335 in 1 : vector<4x8xf32>, vector<4x8xf32> -> vector<4x16xf32>
    %337 = arith.mulf %336, %23 : vector<4x16xf32>
    %338 = vector.extract_strided_slice %6 {offsets = [16, 0], sizes = [2, 32], strides = [1, 1]} : vector<50x64xf32> to vector<2x32xf32>
    %339 = vector.extract_strided_slice %6 {offsets = [32, 32], sizes = [2, 32], strides = [1, 1]} : vector<50x64xf32> to vector<2x32xf32>
    %340 = tpu.concatenate %338, %339 in 0 : vector<2x32xf32>, vector<2x32xf32> -> vector<4x32xf32>
    %341 = arith.truncf %337 : vector<4x16xf32> to vector<4x16xbf16>
    %cst_93 = arith.constant dense<0.000000e+00> : vector<4x32xf32>
    %342 = tpu.matmul %341, %7, %cst_93 {dimension_numbers = #tpu.dot_dimension_numbers<[1], [0], [0], [1], [0, 0, 1, 1], [], []>} : vector<4x16xbf16>, vector<16x32xbf16>, vector<4x32xf32> -> vector<4x32xf32>
    %343 = arith.addf %340, %342 : vector<4x32xf32>
    %344 = vector.extract_strided_slice %343 {offsets = [0, 0], sizes = [4, 8], strides = [1, 1]} : vector<4x32xf32> to vector<4x8xf32>
    %cst_94 = arith.constant 5.000000e-01 : f32
    %345 = vector.broadcast %cst_94 : f32 to vector<4x8xf32>
    %346 = arith.mulf %345, %344 : vector<4x8xf32>
    %347 = math.tanh %346 : vector<4x8xf32>
    %cst_95 = arith.constant 5.000000e-01 : f32
    %348 = vector.broadcast %cst_95 : f32 to vector<4x8xf32>
    %349 = arith.mulf %348, %347 : vector<4x8xf32>
    %cst_96 = arith.constant 5.000000e-01 : f32
    %350 = vector.broadcast %cst_96 : f32 to vector<4x8xf32>
    %351 = arith.addf %349, %350 : vector<4x8xf32>
    %352 = vector.extract_strided_slice %343 {offsets = [0, 8], sizes = [4, 8], strides = [1, 1]} : vector<4x32xf32> to vector<4x8xf32>
    %cst_97 = arith.constant 5.000000e-01 : f32
    %353 = vector.broadcast %cst_97 : f32 to vector<4x8xf32>
    %354 = arith.mulf %353, %352 : vector<4x8xf32>
    %355 = math.tanh %354 : vector<4x8xf32>
    %cst_98 = arith.constant 5.000000e-01 : f32
    %356 = vector.broadcast %cst_98 : f32 to vector<4x8xf32>
    %357 = arith.mulf %356, %355 : vector<4x8xf32>
    %cst_99 = arith.constant 5.000000e-01 : f32
    %358 = vector.broadcast %cst_99 : f32 to vector<4x8xf32>
    %359 = arith.addf %357, %358 : vector<4x8xf32>
    %360 = vector.extract_strided_slice %343 {offsets = [0, 16], sizes = [4, 8], strides = [1, 1]} : vector<4x32xf32> to vector<4x8xf32>
    %361 = math.tanh %360 : vector<4x8xf32>
    %362 = vector.extract_strided_slice %343 {offsets = [0, 24], sizes = [4, 8], strides = [1, 1]} : vector<4x32xf32> to vector<4x8xf32>
    %cst_100 = arith.constant 5.000000e-01 : f32
    %363 = vector.broadcast %cst_100 : f32 to vector<4x8xf32>
    %364 = arith.mulf %363, %362 : vector<4x8xf32>
    %365 = math.tanh %364 : vector<4x8xf32>
    %cst_101 = arith.constant 5.000000e-01 : f32
    %366 = vector.broadcast %cst_101 : f32 to vector<4x8xf32>
    %367 = arith.mulf %366, %365 : vector<4x8xf32>
    %cst_102 = arith.constant 5.000000e-01 : f32
    %368 = vector.broadcast %cst_102 : f32 to vector<4x8xf32>
    %369 = arith.addf %367, %368 : vector<4x8xf32>
    %370 = arith.mulf %359, %333 : vector<4x8xf32>
    %371 = arith.mulf %351, %361 : vector<4x8xf32>
    %372 = arith.addf %370, %371 : vector<4x8xf32>
    %373 = math.tanh %372 : vector<4x8xf32>
    %374 = arith.mulf %369, %373 : vector<4x8xf32>
    %375 = tpu.concatenate %374, %374 in 1 : vector<4x8xf32>, vector<4x8xf32> -> vector<4x16xf32>
    %376 = arith.mulf %375, %23 : vector<4x16xf32>
    %377 = vector.extract_strided_slice %6 {offsets = [18, 0], sizes = [2, 32], strides = [1, 1]} : vector<50x64xf32> to vector<2x32xf32>
    %378 = vector.extract_strided_slice %6 {offsets = [30, 32], sizes = [2, 32], strides = [1, 1]} : vector<50x64xf32> to vector<2x32xf32>
    %379 = tpu.concatenate %377, %378 in 0 : vector<2x32xf32>, vector<2x32xf32> -> vector<4x32xf32>
    %380 = arith.truncf %376 : vector<4x16xf32> to vector<4x16xbf16>
    %cst_103 = arith.constant dense<0.000000e+00> : vector<4x32xf32>
    %381 = tpu.matmul %380, %7, %cst_103 {dimension_numbers = #tpu.dot_dimension_numbers<[1], [0], [0], [1], [0, 0, 1, 1], [], []>} : vector<4x16xbf16>, vector<16x32xbf16>, vector<4x32xf32> -> vector<4x32xf32>
    %382 = arith.addf %379, %381 : vector<4x32xf32>
    %383 = vector.extract_strided_slice %382 {offsets = [0, 0], sizes = [4, 8], strides = [1, 1]} : vector<4x32xf32> to vector<4x8xf32>
    %cst_104 = arith.constant 5.000000e-01 : f32
    %384 = vector.broadcast %cst_104 : f32 to vector<4x8xf32>
    %385 = arith.mulf %384, %383 : vector<4x8xf32>
    %386 = math.tanh %385 : vector<4x8xf32>
    %cst_105 = arith.constant 5.000000e-01 : f32
    %387 = vector.broadcast %cst_105 : f32 to vector<4x8xf32>
    %388 = arith.mulf %387, %386 : vector<4x8xf32>
    %cst_106 = arith.constant 5.000000e-01 : f32
    %389 = vector.broadcast %cst_106 : f32 to vector<4x8xf32>
    %390 = arith.addf %388, %389 : vector<4x8xf32>
    %391 = vector.extract_strided_slice %382 {offsets = [0, 8], sizes = [4, 8], strides = [1, 1]} : vector<4x32xf32> to vector<4x8xf32>
    %cst_107 = arith.constant 5.000000e-01 : f32
    %392 = vector.broadcast %cst_107 : f32 to vector<4x8xf32>
    %393 = arith.mulf %392, %391 : vector<4x8xf32>
    %394 = math.tanh %393 : vector<4x8xf32>
    %cst_108 = arith.constant 5.000000e-01 : f32
    %395 = vector.broadcast %cst_108 : f32 to vector<4x8xf32>
    %396 = arith.mulf %395, %394 : vector<4x8xf32>
    %cst_109 = arith.constant 5.000000e-01 : f32
    %397 = vector.broadcast %cst_109 : f32 to vector<4x8xf32>
    %398 = arith.addf %396, %397 : vector<4x8xf32>
    %399 = vector.extract_strided_slice %382 {offsets = [0, 16], sizes = [4, 8], strides = [1, 1]} : vector<4x32xf32> to vector<4x8xf32>
    %400 = math.tanh %399 : vector<4x8xf32>
    %401 = vector.extract_strided_slice %382 {offsets = [0, 24], sizes = [4, 8], strides = [1, 1]} : vector<4x32xf32> to vector<4x8xf32>
    %cst_110 = arith.constant 5.000000e-01 : f32
    %402 = vector.broadcast %cst_110 : f32 to vector<4x8xf32>
    %403 = arith.mulf %402, %401 : vector<4x8xf32>
    %404 = math.tanh %403 : vector<4x8xf32>
    %cst_111 = arith.constant 5.000000e-01 : f32
    %405 = vector.broadcast %cst_111 : f32 to vector<4x8xf32>
    %406 = arith.mulf %405, %404 : vector<4x8xf32>
    %cst_112 = arith.constant 5.000000e-01 : f32
    %407 = vector.broadcast %cst_112 : f32 to vector<4x8xf32>
    %408 = arith.addf %406, %407 : vector<4x8xf32>
    %409 = arith.mulf %398, %372 : vector<4x8xf32>
    %410 = arith.mulf %390, %400 : vector<4x8xf32>
    %411 = arith.addf %409, %410 : vector<4x8xf32>
    %412 = math.tanh %411 : vector<4x8xf32>
    %413 = arith.mulf %408, %412 : vector<4x8xf32>
    %414 = tpu.concatenate %413, %413 in 1 : vector<4x8xf32>, vector<4x8xf32> -> vector<4x16xf32>
    %415 = arith.mulf %414, %23 : vector<4x16xf32>
    %416 = vector.extract_strided_slice %6 {offsets = [20, 0], sizes = [2, 32], strides = [1, 1]} : vector<50x64xf32> to vector<2x32xf32>
    %417 = vector.extract_strided_slice %6 {offsets = [28, 32], sizes = [2, 32], strides = [1, 1]} : vector<50x64xf32> to vector<2x32xf32>
    %418 = tpu.concatenate %416, %417 in 0 : vector<2x32xf32>, vector<2x32xf32> -> vector<4x32xf32>
    %419 = arith.truncf %415 : vector<4x16xf32> to vector<4x16xbf16>
    %cst_113 = arith.constant dense<0.000000e+00> : vector<4x32xf32>
    %420 = tpu.matmul %419, %7, %cst_113 {dimension_numbers = #tpu.dot_dimension_numbers<[1], [0], [0], [1], [0, 0, 1, 1], [], []>} : vector<4x16xbf16>, vector<16x32xbf16>, vector<4x32xf32> -> vector<4x32xf32>
    %421 = arith.addf %418, %420 : vector<4x32xf32>
    %422 = vector.extract_strided_slice %421 {offsets = [0, 0], sizes = [4, 8], strides = [1, 1]} : vector<4x32xf32> to vector<4x8xf32>
    %cst_114 = arith.constant 5.000000e-01 : f32
    %423 = vector.broadcast %cst_114 : f32 to vector<4x8xf32>
    %424 = arith.mulf %423, %422 : vector<4x8xf32>
    %425 = math.tanh %424 : vector<4x8xf32>
    %cst_115 = arith.constant 5.000000e-01 : f32
    %426 = vector.broadcast %cst_115 : f32 to vector<4x8xf32>
    %427 = arith.mulf %426, %425 : vector<4x8xf32>
    %cst_116 = arith.constant 5.000000e-01 : f32
    %428 = vector.broadcast %cst_116 : f32 to vector<4x8xf32>
    %429 = arith.addf %427, %428 : vector<4x8xf32>
    %430 = vector.extract_strided_slice %421 {offsets = [0, 8], sizes = [4, 8], strides = [1, 1]} : vector<4x32xf32> to vector<4x8xf32>
    %cst_117 = arith.constant 5.000000e-01 : f32
    %431 = vector.broadcast %cst_117 : f32 to vector<4x8xf32>
    %432 = arith.mulf %431, %430 : vector<4x8xf32>
    %433 = math.tanh %432 : vector<4x8xf32>
    %cst_118 = arith.constant 5.000000e-01 : f32
    %434 = vector.broadcast %cst_118 : f32 to vector<4x8xf32>
    %435 = arith.mulf %434, %433 : vector<4x8xf32>
    %cst_119 = arith.constant 5.000000e-01 : f32
    %436 = vector.broadcast %cst_119 : f32 to vector<4x8xf32>
    %437 = arith.addf %435, %436 : vector<4x8xf32>
    %438 = vector.extract_strided_slice %421 {offsets = [0, 16], sizes = [4, 8], strides = [1, 1]} : vector<4x32xf32> to vector<4x8xf32>
    %439 = math.tanh %438 : vector<4x8xf32>
    %440 = vector.extract_strided_slice %421 {offsets = [0, 24], sizes = [4, 8], strides = [1, 1]} : vector<4x32xf32> to vector<4x8xf32>
    %cst_120 = arith.constant 5.000000e-01 : f32
    %441 = vector.broadcast %cst_120 : f32 to vector<4x8xf32>
    %442 = arith.mulf %441, %440 : vector<4x8xf32>
    %443 = math.tanh %442 : vector<4x8xf32>
    %cst_121 = arith.constant 5.000000e-01 : f32
    %444 = vector.broadcast %cst_121 : f32 to vector<4x8xf32>
    %445 = arith.mulf %444, %443 : vector<4x8xf32>
    %cst_122 = arith.constant 5.000000e-01 : f32
    %446 = vector.broadcast %cst_122 : f32 to vector<4x8xf32>
    %447 = arith.addf %445, %446 : vector<4x8xf32>
    %448 = arith.mulf %437, %411 : vector<4x8xf32>
    %449 = arith.mulf %429, %439 : vector<4x8xf32>
    %450 = arith.addf %448, %449 : vector<4x8xf32>
    %451 = math.tanh %450 : vector<4x8xf32>
    %452 = arith.mulf %447, %451 : vector<4x8xf32>
    %453 = tpu.concatenate %452, %452 in 1 : vector<4x8xf32>, vector<4x8xf32> -> vector<4x16xf32>
    %454 = arith.mulf %453, %23 : vector<4x16xf32>
    %455 = vector.extract_strided_slice %6 {offsets = [22, 0], sizes = [2, 32], strides = [1, 1]} : vector<50x64xf32> to vector<2x32xf32>
    %456 = vector.extract_strided_slice %6 {offsets = [26, 32], sizes = [2, 32], strides = [1, 1]} : vector<50x64xf32> to vector<2x32xf32>
    %457 = tpu.concatenate %455, %456 in 0 : vector<2x32xf32>, vector<2x32xf32> -> vector<4x32xf32>
    %458 = arith.truncf %454 : vector<4x16xf32> to vector<4x16xbf16>
    %cst_123 = arith.constant dense<0.000000e+00> : vector<4x32xf32>
    %459 = tpu.matmul %458, %7, %cst_123 {dimension_numbers = #tpu.dot_dimension_numbers<[1], [0], [0], [1], [0, 0, 1, 1], [], []>} : vector<4x16xbf16>, vector<16x32xbf16>, vector<4x32xf32> -> vector<4x32xf32>
    %460 = arith.addf %457, %459 : vector<4x32xf32>
    %461 = vector.extract_strided_slice %460 {offsets = [0, 0], sizes = [4, 8], strides = [1, 1]} : vector<4x32xf32> to vector<4x8xf32>
    %cst_124 = arith.constant 5.000000e-01 : f32
    %462 = vector.broadcast %cst_124 : f32 to vector<4x8xf32>
    %463 = arith.mulf %462, %461 : vector<4x8xf32>
    %464 = math.tanh %463 : vector<4x8xf32>
    %cst_125 = arith.constant 5.000000e-01 : f32
    %465 = vector.broadcast %cst_125 : f32 to vector<4x8xf32>
    %466 = arith.mulf %465, %464 : vector<4x8xf32>
    %cst_126 = arith.constant 5.000000e-01 : f32
    %467 = vector.broadcast %cst_126 : f32 to vector<4x8xf32>
    %468 = arith.addf %466, %467 : vector<4x8xf32>
    %469 = vector.extract_strided_slice %460 {offsets = [0, 8], sizes = [4, 8], strides = [1, 1]} : vector<4x32xf32> to vector<4x8xf32>
    %cst_127 = arith.constant 5.000000e-01 : f32
    %470 = vector.broadcast %cst_127 : f32 to vector<4x8xf32>
    %471 = arith.mulf %470, %469 : vector<4x8xf32>
    %472 = math.tanh %471 : vector<4x8xf32>
    %cst_128 = arith.constant 5.000000e-01 : f32
    %473 = vector.broadcast %cst_128 : f32 to vector<4x8xf32>
    %474 = arith.mulf %473, %472 : vector<4x8xf32>
    %cst_129 = arith.constant 5.000000e-01 : f32
    %475 = vector.broadcast %cst_129 : f32 to vector<4x8xf32>
    %476 = arith.addf %474, %475 : vector<4x8xf32>
    %477 = vector.extract_strided_slice %460 {offsets = [0, 16], sizes = [4, 8], strides = [1, 1]} : vector<4x32xf32> to vector<4x8xf32>
    %478 = math.tanh %477 : vector<4x8xf32>
    %479 = vector.extract_strided_slice %460 {offsets = [0, 24], sizes = [4, 8], strides = [1, 1]} : vector<4x32xf32> to vector<4x8xf32>
    %cst_130 = arith.constant 5.000000e-01 : f32
    %480 = vector.broadcast %cst_130 : f32 to vector<4x8xf32>
    %481 = arith.mulf %480, %479 : vector<4x8xf32>
    %482 = math.tanh %481 : vector<4x8xf32>
    %cst_131 = arith.constant 5.000000e-01 : f32
    %483 = vector.broadcast %cst_131 : f32 to vector<4x8xf32>
    %484 = arith.mulf %483, %482 : vector<4x8xf32>
    %cst_132 = arith.constant 5.000000e-01 : f32
    %485 = vector.broadcast %cst_132 : f32 to vector<4x8xf32>
    %486 = arith.addf %484, %485 : vector<4x8xf32>
    %487 = arith.mulf %476, %450 : vector<4x8xf32>
    %488 = arith.mulf %468, %478 : vector<4x8xf32>
    %489 = arith.addf %487, %488 : vector<4x8xf32>
    %490 = math.tanh %489 : vector<4x8xf32>
    %491 = arith.mulf %486, %490 : vector<4x8xf32>
    %492 = tpu.concatenate %491, %491 in 1 : vector<4x8xf32>, vector<4x8xf32> -> vector<4x16xf32>
    %493 = arith.mulf %492, %23 : vector<4x16xf32>
    %494 = vector.extract_strided_slice %6 {offsets = [24, 0], sizes = [2, 32], strides = [1, 1]} : vector<50x64xf32> to vector<2x32xf32>
    %495 = vector.extract_strided_slice %6 {offsets = [24, 32], sizes = [2, 32], strides = [1, 1]} : vector<50x64xf32> to vector<2x32xf32>
    %496 = tpu.concatenate %494, %495 in 0 : vector<2x32xf32>, vector<2x32xf32> -> vector<4x32xf32>
    %497 = arith.truncf %493 : vector<4x16xf32> to vector<4x16xbf16>
    %cst_133 = arith.constant dense<0.000000e+00> : vector<4x32xf32>
    %498 = tpu.matmul %497, %7, %cst_133 {dimension_numbers = #tpu.dot_dimension_numbers<[1], [0], [0], [1], [0, 0, 1, 1], [], []>} : vector<4x16xbf16>, vector<16x32xbf16>, vector<4x32xf32> -> vector<4x32xf32>
    %499 = arith.addf %496, %498 : vector<4x32xf32>
    %500 = vector.extract_strided_slice %499 {offsets = [0, 0], sizes = [4, 8], strides = [1, 1]} : vector<4x32xf32> to vector<4x8xf32>
    %cst_134 = arith.constant 5.000000e-01 : f32
    %501 = vector.broadcast %cst_134 : f32 to vector<4x8xf32>
    %502 = arith.mulf %501, %500 : vector<4x8xf32>
    %503 = math.tanh %502 : vector<4x8xf32>
    %cst_135 = arith.constant 5.000000e-01 : f32
    %504 = vector.broadcast %cst_135 : f32 to vector<4x8xf32>
    %505 = arith.mulf %504, %503 : vector<4x8xf32>
    %cst_136 = arith.constant 5.000000e-01 : f32
    %506 = vector.broadcast %cst_136 : f32 to vector<4x8xf32>
    %507 = arith.addf %505, %506 : vector<4x8xf32>
    %508 = vector.extract_strided_slice %499 {offsets = [0, 8], sizes = [4, 8], strides = [1, 1]} : vector<4x32xf32> to vector<4x8xf32>
    %cst_137 = arith.constant 5.000000e-01 : f32
    %509 = vector.broadcast %cst_137 : f32 to vector<4x8xf32>
    %510 = arith.mulf %509, %508 : vector<4x8xf32>
    %511 = math.tanh %510 : vector<4x8xf32>
    %cst_138 = arith.constant 5.000000e-01 : f32
    %512 = vector.broadcast %cst_138 : f32 to vector<4x8xf32>
    %513 = arith.mulf %512, %511 : vector<4x8xf32>
    %cst_139 = arith.constant 5.000000e-01 : f32
    %514 = vector.broadcast %cst_139 : f32 to vector<4x8xf32>
    %515 = arith.addf %513, %514 : vector<4x8xf32>
    %516 = vector.extract_strided_slice %499 {offsets = [0, 16], sizes = [4, 8], strides = [1, 1]} : vector<4x32xf32> to vector<4x8xf32>
    %517 = math.tanh %516 : vector<4x8xf32>
    %518 = vector.extract_strided_slice %499 {offsets = [0, 24], sizes = [4, 8], strides = [1, 1]} : vector<4x32xf32> to vector<4x8xf32>
    %cst_140 = arith.constant 5.000000e-01 : f32
    %519 = vector.broadcast %cst_140 : f32 to vector<4x8xf32>
    %520 = arith.mulf %519, %518 : vector<4x8xf32>
    %521 = math.tanh %520 : vector<4x8xf32>
    %cst_141 = arith.constant 5.000000e-01 : f32
    %522 = vector.broadcast %cst_141 : f32 to vector<4x8xf32>
    %523 = arith.mulf %522, %521 : vector<4x8xf32>
    %cst_142 = arith.constant 5.000000e-01 : f32
    %524 = vector.broadcast %cst_142 : f32 to vector<4x8xf32>
    %525 = arith.addf %523, %524 : vector<4x8xf32>
    %526 = arith.mulf %515, %489 : vector<4x8xf32>
    %527 = arith.mulf %507, %517 : vector<4x8xf32>
    %528 = arith.addf %526, %527 : vector<4x8xf32>
    %529 = math.tanh %528 : vector<4x8xf32>
    %530 = arith.mulf %525, %529 : vector<4x8xf32>
    %531 = tpu.concatenate %530, %530 in 1 : vector<4x8xf32>, vector<4x8xf32> -> vector<4x16xf32>
    %532 = arith.mulf %531, %23 : vector<4x16xf32>
    %533 = vector.extract_strided_slice %6 {offsets = [26, 0], sizes = [2, 32], strides = [1, 1]} : vector<50x64xf32> to vector<2x32xf32>
    %534 = vector.extract_strided_slice %6 {offsets = [22, 32], sizes = [2, 32], strides = [1, 1]} : vector<50x64xf32> to vector<2x32xf32>
    %535 = tpu.concatenate %533, %534 in 0 : vector<2x32xf32>, vector<2x32xf32> -> vector<4x32xf32>
    %536 = arith.truncf %532 : vector<4x16xf32> to vector<4x16xbf16>
    %cst_143 = arith.constant dense<0.000000e+00> : vector<4x32xf32>
    %537 = tpu.matmul %536, %7, %cst_143 {dimension_numbers = #tpu.dot_dimension_numbers<[1], [0], [0], [1], [0, 0, 1, 1], [], []>} : vector<4x16xbf16>, vector<16x32xbf16>, vector<4x32xf32> -> vector<4x32xf32>
    %538 = arith.addf %535, %537 : vector<4x32xf32>
    %539 = vector.extract_strided_slice %538 {offsets = [0, 0], sizes = [4, 8], strides = [1, 1]} : vector<4x32xf32> to vector<4x8xf32>
    %cst_144 = arith.constant 5.000000e-01 : f32
    %540 = vector.broadcast %cst_144 : f32 to vector<4x8xf32>
    %541 = arith.mulf %540, %539 : vector<4x8xf32>
    %542 = math.tanh %541 : vector<4x8xf32>
    %cst_145 = arith.constant 5.000000e-01 : f32
    %543 = vector.broadcast %cst_145 : f32 to vector<4x8xf32>
    %544 = arith.mulf %543, %542 : vector<4x8xf32>
    %cst_146 = arith.constant 5.000000e-01 : f32
    %545 = vector.broadcast %cst_146 : f32 to vector<4x8xf32>
    %546 = arith.addf %544, %545 : vector<4x8xf32>
    %547 = vector.extract_strided_slice %538 {offsets = [0, 8], sizes = [4, 8], strides = [1, 1]} : vector<4x32xf32> to vector<4x8xf32>
    %cst_147 = arith.constant 5.000000e-01 : f32
    %548 = vector.broadcast %cst_147 : f32 to vector<4x8xf32>
    %549 = arith.mulf %548, %547 : vector<4x8xf32>
    %550 = math.tanh %549 : vector<4x8xf32>
    %cst_148 = arith.constant 5.000000e-01 : f32
    %551 = vector.broadcast %cst_148 : f32 to vector<4x8xf32>
    %552 = arith.mulf %551, %550 : vector<4x8xf32>
    %cst_149 = arith.constant 5.000000e-01 : f32
    %553 = vector.broadcast %cst_149 : f32 to vector<4x8xf32>
    %554 = arith.addf %552, %553 : vector<4x8xf32>
    %555 = vector.extract_strided_slice %538 {offsets = [0, 16], sizes = [4, 8], strides = [1, 1]} : vector<4x32xf32> to vector<4x8xf32>
    %556 = math.tanh %555 : vector<4x8xf32>
    %557 = vector.extract_strided_slice %538 {offsets = [0, 24], sizes = [4, 8], strides = [1, 1]} : vector<4x32xf32> to vector<4x8xf32>
    %cst_150 = arith.constant 5.000000e-01 : f32
    %558 = vector.broadcast %cst_150 : f32 to vector<4x8xf32>
    %559 = arith.mulf %558, %557 : vector<4x8xf32>
    %560 = math.tanh %559 : vector<4x8xf32>
    %cst_151 = arith.constant 5.000000e-01 : f32
    %561 = vector.broadcast %cst_151 : f32 to vector<4x8xf32>
    %562 = arith.mulf %561, %560 : vector<4x8xf32>
    %cst_152 = arith.constant 5.000000e-01 : f32
    %563 = vector.broadcast %cst_152 : f32 to vector<4x8xf32>
    %564 = arith.addf %562, %563 : vector<4x8xf32>
    %565 = arith.mulf %554, %528 : vector<4x8xf32>
    %566 = arith.mulf %546, %556 : vector<4x8xf32>
    %567 = arith.addf %565, %566 : vector<4x8xf32>
    %568 = math.tanh %567 : vector<4x8xf32>
    %569 = arith.mulf %564, %568 : vector<4x8xf32>
    %570 = tpu.concatenate %569, %569 in 1 : vector<4x8xf32>, vector<4x8xf32> -> vector<4x16xf32>
    %571 = arith.mulf %570, %23 : vector<4x16xf32>
    %572 = vector.extract_strided_slice %6 {offsets = [28, 0], sizes = [2, 32], strides = [1, 1]} : vector<50x64xf32> to vector<2x32xf32>
    %573 = vector.extract_strided_slice %6 {offsets = [20, 32], sizes = [2, 32], strides = [1, 1]} : vector<50x64xf32> to vector<2x32xf32>
    %574 = tpu.concatenate %572, %573 in 0 : vector<2x32xf32>, vector<2x32xf32> -> vector<4x32xf32>
    %575 = arith.truncf %571 : vector<4x16xf32> to vector<4x16xbf16>
    %cst_153 = arith.constant dense<0.000000e+00> : vector<4x32xf32>
    %576 = tpu.matmul %575, %7, %cst_153 {dimension_numbers = #tpu.dot_dimension_numbers<[1], [0], [0], [1], [0, 0, 1, 1], [], []>} : vector<4x16xbf16>, vector<16x32xbf16>, vector<4x32xf32> -> vector<4x32xf32>
    %577 = arith.addf %574, %576 : vector<4x32xf32>
    %578 = vector.extract_strided_slice %577 {offsets = [0, 0], sizes = [4, 8], strides = [1, 1]} : vector<4x32xf32> to vector<4x8xf32>
    %cst_154 = arith.constant 5.000000e-01 : f32
    %579 = vector.broadcast %cst_154 : f32 to vector<4x8xf32>
    %580 = arith.mulf %579, %578 : vector<4x8xf32>
    %581 = math.tanh %580 : vector<4x8xf32>
    %cst_155 = arith.constant 5.000000e-01 : f32
    %582 = vector.broadcast %cst_155 : f32 to vector<4x8xf32>
    %583 = arith.mulf %582, %581 : vector<4x8xf32>
    %cst_156 = arith.constant 5.000000e-01 : f32
    %584 = vector.broadcast %cst_156 : f32 to vector<4x8xf32>
    %585 = arith.addf %583, %584 : vector<4x8xf32>
    %586 = vector.extract_strided_slice %577 {offsets = [0, 8], sizes = [4, 8], strides = [1, 1]} : vector<4x32xf32> to vector<4x8xf32>
    %cst_157 = arith.constant 5.000000e-01 : f32
    %587 = vector.broadcast %cst_157 : f32 to vector<4x8xf32>
    %588 = arith.mulf %587, %586 : vector<4x8xf32>
    %589 = math.tanh %588 : vector<4x8xf32>
    %cst_158 = arith.constant 5.000000e-01 : f32
    %590 = vector.broadcast %cst_158 : f32 to vector<4x8xf32>
    %591 = arith.mulf %590, %589 : vector<4x8xf32>
    %cst_159 = arith.constant 5.000000e-01 : f32
    %592 = vector.broadcast %cst_159 : f32 to vector<4x8xf32>
    %593 = arith.addf %591, %592 : vector<4x8xf32>
    %594 = vector.extract_strided_slice %577 {offsets = [0, 16], sizes = [4, 8], strides = [1, 1]} : vector<4x32xf32> to vector<4x8xf32>
    %595 = math.tanh %594 : vector<4x8xf32>
    %596 = vector.extract_strided_slice %577 {offsets = [0, 24], sizes = [4, 8], strides = [1, 1]} : vector<4x32xf32> to vector<4x8xf32>
    %cst_160 = arith.constant 5.000000e-01 : f32
    %597 = vector.broadcast %cst_160 : f32 to vector<4x8xf32>
    %598 = arith.mulf %597, %596 : vector<4x8xf32>
    %599 = math.tanh %598 : vector<4x8xf32>
    %cst_161 = arith.constant 5.000000e-01 : f32
    %600 = vector.broadcast %cst_161 : f32 to vector<4x8xf32>
    %601 = arith.mulf %600, %599 : vector<4x8xf32>
    %cst_162 = arith.constant 5.000000e-01 : f32
    %602 = vector.broadcast %cst_162 : f32 to vector<4x8xf32>
    %603 = arith.addf %601, %602 : vector<4x8xf32>
    %604 = arith.mulf %593, %567 : vector<4x8xf32>
    %605 = arith.mulf %585, %595 : vector<4x8xf32>
    %606 = arith.addf %604, %605 : vector<4x8xf32>
    %607 = math.tanh %606 : vector<4x8xf32>
    %608 = arith.mulf %603, %607 : vector<4x8xf32>
    %609 = tpu.concatenate %608, %608 in 1 : vector<4x8xf32>, vector<4x8xf32> -> vector<4x16xf32>
    %610 = arith.mulf %609, %23 : vector<4x16xf32>
    %611 = vector.extract_strided_slice %6 {offsets = [30, 0], sizes = [2, 32], strides = [1, 1]} : vector<50x64xf32> to vector<2x32xf32>
    %612 = vector.extract_strided_slice %6 {offsets = [18, 32], sizes = [2, 32], strides = [1, 1]} : vector<50x64xf32> to vector<2x32xf32>
    %613 = tpu.concatenate %611, %612 in 0 : vector<2x32xf32>, vector<2x32xf32> -> vector<4x32xf32>
    %614 = arith.truncf %610 : vector<4x16xf32> to vector<4x16xbf16>
    %cst_163 = arith.constant dense<0.000000e+00> : vector<4x32xf32>
    %615 = tpu.matmul %614, %7, %cst_163 {dimension_numbers = #tpu.dot_dimension_numbers<[1], [0], [0], [1], [0, 0, 1, 1], [], []>} : vector<4x16xbf16>, vector<16x32xbf16>, vector<4x32xf32> -> vector<4x32xf32>
    %616 = arith.addf %613, %615 : vector<4x32xf32>
    %617 = vector.extract_strided_slice %616 {offsets = [0, 0], sizes = [4, 8], strides = [1, 1]} : vector<4x32xf32> to vector<4x8xf32>
    %cst_164 = arith.constant 5.000000e-01 : f32
    %618 = vector.broadcast %cst_164 : f32 to vector<4x8xf32>
    %619 = arith.mulf %618, %617 : vector<4x8xf32>
    %620 = math.tanh %619 : vector<4x8xf32>
    %cst_165 = arith.constant 5.000000e-01 : f32
    %621 = vector.broadcast %cst_165 : f32 to vector<4x8xf32>
    %622 = arith.mulf %621, %620 : vector<4x8xf32>
    %cst_166 = arith.constant 5.000000e-01 : f32
    %623 = vector.broadcast %cst_166 : f32 to vector<4x8xf32>
    %624 = arith.addf %622, %623 : vector<4x8xf32>
    %625 = vector.extract_strided_slice %616 {offsets = [0, 8], sizes = [4, 8], strides = [1, 1]} : vector<4x32xf32> to vector<4x8xf32>
    %cst_167 = arith.constant 5.000000e-01 : f32
    %626 = vector.broadcast %cst_167 : f32 to vector<4x8xf32>
    %627 = arith.mulf %626, %625 : vector<4x8xf32>
    %628 = math.tanh %627 : vector<4x8xf32>
    %cst_168 = arith.constant 5.000000e-01 : f32
    %629 = vector.broadcast %cst_168 : f32 to vector<4x8xf32>
    %630 = arith.mulf %629, %628 : vector<4x8xf32>
    %cst_169 = arith.constant 5.000000e-01 : f32
    %631 = vector.broadcast %cst_169 : f32 to vector<4x8xf32>
    %632 = arith.addf %630, %631 : vector<4x8xf32>
    %633 = vector.extract_strided_slice %616 {offsets = [0, 16], sizes = [4, 8], strides = [1, 1]} : vector<4x32xf32> to vector<4x8xf32>
    %634 = math.tanh %633 : vector<4x8xf32>
    %635 = vector.extract_strided_slice %616 {offsets = [0, 24], sizes = [4, 8], strides = [1, 1]} : vector<4x32xf32> to vector<4x8xf32>
    %cst_170 = arith.constant 5.000000e-01 : f32
    %636 = vector.broadcast %cst_170 : f32 to vector<4x8xf32>
    %637 = arith.mulf %636, %635 : vector<4x8xf32>
    %638 = math.tanh %637 : vector<4x8xf32>
    %cst_171 = arith.constant 5.000000e-01 : f32
    %639 = vector.broadcast %cst_171 : f32 to vector<4x8xf32>
    %640 = arith.mulf %639, %638 : vector<4x8xf32>
    %cst_172 = arith.constant 5.000000e-01 : f32
    %641 = vector.broadcast %cst_172 : f32 to vector<4x8xf32>
    %642 = arith.addf %640, %641 : vector<4x8xf32>
    %643 = arith.mulf %632, %606 : vector<4x8xf32>
    %644 = arith.mulf %624, %634 : vector<4x8xf32>
    %645 = arith.addf %643, %644 : vector<4x8xf32>
    %646 = math.tanh %645 : vector<4x8xf32>
    %647 = arith.mulf %642, %646 : vector<4x8xf32>
    %648 = tpu.concatenate %647, %647 in 1 : vector<4x8xf32>, vector<4x8xf32> -> vector<4x16xf32>
    %649 = arith.mulf %648, %23 : vector<4x16xf32>
    %650 = vector.extract_strided_slice %6 {offsets = [32, 0], sizes = [2, 32], strides = [1, 1]} : vector<50x64xf32> to vector<2x32xf32>
    %651 = vector.extract_strided_slice %6 {offsets = [16, 32], sizes = [2, 32], strides = [1, 1]} : vector<50x64xf32> to vector<2x32xf32>
    %652 = tpu.concatenate %650, %651 in 0 : vector<2x32xf32>, vector<2x32xf32> -> vector<4x32xf32>
    %653 = arith.truncf %649 : vector<4x16xf32> to vector<4x16xbf16>
    %cst_173 = arith.constant dense<0.000000e+00> : vector<4x32xf32>
    %654 = tpu.matmul %653, %7, %cst_173 {dimension_numbers = #tpu.dot_dimension_numbers<[1], [0], [0], [1], [0, 0, 1, 1], [], []>} : vector<4x16xbf16>, vector<16x32xbf16>, vector<4x32xf32> -> vector<4x32xf32>
    %655 = arith.addf %652, %654 : vector<4x32xf32>
    %656 = vector.extract_strided_slice %655 {offsets = [0, 0], sizes = [4, 8], strides = [1, 1]} : vector<4x32xf32> to vector<4x8xf32>
    %cst_174 = arith.constant 5.000000e-01 : f32
    %657 = vector.broadcast %cst_174 : f32 to vector<4x8xf32>
    %658 = arith.mulf %657, %656 : vector<4x8xf32>
    %659 = math.tanh %658 : vector<4x8xf32>
    %cst_175 = arith.constant 5.000000e-01 : f32
    %660 = vector.broadcast %cst_175 : f32 to vector<4x8xf32>
    %661 = arith.mulf %660, %659 : vector<4x8xf32>
    %cst_176 = arith.constant 5.000000e-01 : f32
    %662 = vector.broadcast %cst_176 : f32 to vector<4x8xf32>
    %663 = arith.addf %661, %662 : vector<4x8xf32>
    %664 = vector.extract_strided_slice %655 {offsets = [0, 8], sizes = [4, 8], strides = [1, 1]} : vector<4x32xf32> to vector<4x8xf32>
    %cst_177 = arith.constant 5.000000e-01 : f32
    %665 = vector.broadcast %cst_177 : f32 to vector<4x8xf32>
    %666 = arith.mulf %665, %664 : vector<4x8xf32>
    %667 = math.tanh %666 : vector<4x8xf32>
    %cst_178 = arith.constant 5.000000e-01 : f32
    %668 = vector.broadcast %cst_178 : f32 to vector<4x8xf32>
    %669 = arith.mulf %668, %667 : vector<4x8xf32>
    %cst_179 = arith.constant 5.000000e-01 : f32
    %670 = vector.broadcast %cst_179 : f32 to vector<4x8xf32>
    %671 = arith.addf %669, %670 : vector<4x8xf32>
    %672 = vector.extract_strided_slice %655 {offsets = [0, 16], sizes = [4, 8], strides = [1, 1]} : vector<4x32xf32> to vector<4x8xf32>
    %673 = math.tanh %672 : vector<4x8xf32>
    %674 = vector.extract_strided_slice %655 {offsets = [0, 24], sizes = [4, 8], strides = [1, 1]} : vector<4x32xf32> to vector<4x8xf32>
    %cst_180 = arith.constant 5.000000e-01 : f32
    %675 = vector.broadcast %cst_180 : f32 to vector<4x8xf32>
    %676 = arith.mulf %675, %674 : vector<4x8xf32>
    %677 = math.tanh %676 : vector<4x8xf32>
    %cst_181 = arith.constant 5.000000e-01 : f32
    %678 = vector.broadcast %cst_181 : f32 to vector<4x8xf32>
    %679 = arith.mulf %678, %677 : vector<4x8xf32>
    %cst_182 = arith.constant 5.000000e-01 : f32
    %680 = vector.broadcast %cst_182 : f32 to vector<4x8xf32>
    %681 = arith.addf %679, %680 : vector<4x8xf32>
    %682 = arith.mulf %671, %645 : vector<4x8xf32>
    %683 = arith.mulf %663, %673 : vector<4x8xf32>
    %684 = arith.addf %682, %683 : vector<4x8xf32>
    %685 = math.tanh %684 : vector<4x8xf32>
    %686 = arith.mulf %681, %685 : vector<4x8xf32>
    %687 = tpu.concatenate %686, %686 in 1 : vector<4x8xf32>, vector<4x8xf32> -> vector<4x16xf32>
    %688 = arith.mulf %687, %23 : vector<4x16xf32>
    %689 = vector.extract_strided_slice %6 {offsets = [34, 0], sizes = [2, 32], strides = [1, 1]} : vector<50x64xf32> to vector<2x32xf32>
    %690 = vector.extract_strided_slice %6 {offsets = [14, 32], sizes = [2, 32], strides = [1, 1]} : vector<50x64xf32> to vector<2x32xf32>
    %691 = tpu.concatenate %689, %690 in 0 : vector<2x32xf32>, vector<2x32xf32> -> vector<4x32xf32>
    %692 = arith.truncf %688 : vector<4x16xf32> to vector<4x16xbf16>
    %cst_183 = arith.constant dense<0.000000e+00> : vector<4x32xf32>
    %693 = tpu.matmul %692, %7, %cst_183 {dimension_numbers = #tpu.dot_dimension_numbers<[1], [0], [0], [1], [0, 0, 1, 1], [], []>} : vector<4x16xbf16>, vector<16x32xbf16>, vector<4x32xf32> -> vector<4x32xf32>
    %694 = arith.addf %691, %693 : vector<4x32xf32>
    %695 = vector.extract_strided_slice %694 {offsets = [0, 0], sizes = [4, 8], strides = [1, 1]} : vector<4x32xf32> to vector<4x8xf32>
    %cst_184 = arith.constant 5.000000e-01 : f32
    %696 = vector.broadcast %cst_184 : f32 to vector<4x8xf32>
    %697 = arith.mulf %696, %695 : vector<4x8xf32>
    %698 = math.tanh %697 : vector<4x8xf32>
    %cst_185 = arith.constant 5.000000e-01 : f32
    %699 = vector.broadcast %cst_185 : f32 to vector<4x8xf32>
    %700 = arith.mulf %699, %698 : vector<4x8xf32>
    %cst_186 = arith.constant 5.000000e-01 : f32
    %701 = vector.broadcast %cst_186 : f32 to vector<4x8xf32>
    %702 = arith.addf %700, %701 : vector<4x8xf32>
    %703 = vector.extract_strided_slice %694 {offsets = [0, 8], sizes = [4, 8], strides = [1, 1]} : vector<4x32xf32> to vector<4x8xf32>
    %cst_187 = arith.constant 5.000000e-01 : f32
    %704 = vector.broadcast %cst_187 : f32 to vector<4x8xf32>
    %705 = arith.mulf %704, %703 : vector<4x8xf32>
    %706 = math.tanh %705 : vector<4x8xf32>
    %cst_188 = arith.constant 5.000000e-01 : f32
    %707 = vector.broadcast %cst_188 : f32 to vector<4x8xf32>
    %708 = arith.mulf %707, %706 : vector<4x8xf32>
    %cst_189 = arith.constant 5.000000e-01 : f32
    %709 = vector.broadcast %cst_189 : f32 to vector<4x8xf32>
    %710 = arith.addf %708, %709 : vector<4x8xf32>
    %711 = vector.extract_strided_slice %694 {offsets = [0, 16], sizes = [4, 8], strides = [1, 1]} : vector<4x32xf32> to vector<4x8xf32>
    %712 = math.tanh %711 : vector<4x8xf32>
    %713 = vector.extract_strided_slice %694 {offsets = [0, 24], sizes = [4, 8], strides = [1, 1]} : vector<4x32xf32> to vector<4x8xf32>
    %cst_190 = arith.constant 5.000000e-01 : f32
    %714 = vector.broadcast %cst_190 : f32 to vector<4x8xf32>
    %715 = arith.mulf %714, %713 : vector<4x8xf32>
    %716 = math.tanh %715 : vector<4x8xf32>
    %cst_191 = arith.constant 5.000000e-01 : f32
    %717 = vector.broadcast %cst_191 : f32 to vector<4x8xf32>
    %718 = arith.mulf %717, %716 : vector<4x8xf32>
    %cst_192 = arith.constant 5.000000e-01 : f32
    %719 = vector.broadcast %cst_192 : f32 to vector<4x8xf32>
    %720 = arith.addf %718, %719 : vector<4x8xf32>
    %721 = arith.mulf %710, %684 : vector<4x8xf32>
    %722 = arith.mulf %702, %712 : vector<4x8xf32>
    %723 = arith.addf %721, %722 : vector<4x8xf32>
    %724 = math.tanh %723 : vector<4x8xf32>
    %725 = arith.mulf %720, %724 : vector<4x8xf32>
    %726 = tpu.concatenate %725, %725 in 1 : vector<4x8xf32>, vector<4x8xf32> -> vector<4x16xf32>
    %727 = arith.mulf %726, %23 : vector<4x16xf32>
    %728 = vector.extract_strided_slice %6 {offsets = [36, 0], sizes = [2, 32], strides = [1, 1]} : vector<50x64xf32> to vector<2x32xf32>
    %729 = vector.extract_strided_slice %6 {offsets = [12, 32], sizes = [2, 32], strides = [1, 1]} : vector<50x64xf32> to vector<2x32xf32>
    %730 = tpu.concatenate %728, %729 in 0 : vector<2x32xf32>, vector<2x32xf32> -> vector<4x32xf32>
    %731 = arith.truncf %727 : vector<4x16xf32> to vector<4x16xbf16>
    %cst_193 = arith.constant dense<0.000000e+00> : vector<4x32xf32>
    %732 = tpu.matmul %731, %7, %cst_193 {dimension_numbers = #tpu.dot_dimension_numbers<[1], [0], [0], [1], [0, 0, 1, 1], [], []>} : vector<4x16xbf16>, vector<16x32xbf16>, vector<4x32xf32> -> vector<4x32xf32>
    %733 = arith.addf %730, %732 : vector<4x32xf32>
    %734 = vector.extract_strided_slice %733 {offsets = [0, 0], sizes = [4, 8], strides = [1, 1]} : vector<4x32xf32> to vector<4x8xf32>
    %cst_194 = arith.constant 5.000000e-01 : f32
    %735 = vector.broadcast %cst_194 : f32 to vector<4x8xf32>
    %736 = arith.mulf %735, %734 : vector<4x8xf32>
    %737 = math.tanh %736 : vector<4x8xf32>
    %cst_195 = arith.constant 5.000000e-01 : f32
    %738 = vector.broadcast %cst_195 : f32 to vector<4x8xf32>
    %739 = arith.mulf %738, %737 : vector<4x8xf32>
    %cst_196 = arith.constant 5.000000e-01 : f32
    %740 = vector.broadcast %cst_196 : f32 to vector<4x8xf32>
    %741 = arith.addf %739, %740 : vector<4x8xf32>
    %742 = vector.extract_strided_slice %733 {offsets = [0, 8], sizes = [4, 8], strides = [1, 1]} : vector<4x32xf32> to vector<4x8xf32>
    %cst_197 = arith.constant 5.000000e-01 : f32
    %743 = vector.broadcast %cst_197 : f32 to vector<4x8xf32>
    %744 = arith.mulf %743, %742 : vector<4x8xf32>
    %745 = math.tanh %744 : vector<4x8xf32>
    %cst_198 = arith.constant 5.000000e-01 : f32
    %746 = vector.broadcast %cst_198 : f32 to vector<4x8xf32>
    %747 = arith.mulf %746, %745 : vector<4x8xf32>
    %cst_199 = arith.constant 5.000000e-01 : f32
    %748 = vector.broadcast %cst_199 : f32 to vector<4x8xf32>
    %749 = arith.addf %747, %748 : vector<4x8xf32>
    %750 = vector.extract_strided_slice %733 {offsets = [0, 16], sizes = [4, 8], strides = [1, 1]} : vector<4x32xf32> to vector<4x8xf32>
    %751 = math.tanh %750 : vector<4x8xf32>
    %752 = vector.extract_strided_slice %733 {offsets = [0, 24], sizes = [4, 8], strides = [1, 1]} : vector<4x32xf32> to vector<4x8xf32>
    %cst_200 = arith.constant 5.000000e-01 : f32
    %753 = vector.broadcast %cst_200 : f32 to vector<4x8xf32>
    %754 = arith.mulf %753, %752 : vector<4x8xf32>
    %755 = math.tanh %754 : vector<4x8xf32>
    %cst_201 = arith.constant 5.000000e-01 : f32
    %756 = vector.broadcast %cst_201 : f32 to vector<4x8xf32>
    %757 = arith.mulf %756, %755 : vector<4x8xf32>
    %cst_202 = arith.constant 5.000000e-01 : f32
    %758 = vector.broadcast %cst_202 : f32 to vector<4x8xf32>
    %759 = arith.addf %757, %758 : vector<4x8xf32>
    %760 = arith.mulf %749, %723 : vector<4x8xf32>
    %761 = arith.mulf %741, %751 : vector<4x8xf32>
    %762 = arith.addf %760, %761 : vector<4x8xf32>
    %763 = math.tanh %762 : vector<4x8xf32>
    %764 = arith.mulf %759, %763 : vector<4x8xf32>
    %765 = tpu.concatenate %764, %764 in 1 : vector<4x8xf32>, vector<4x8xf32> -> vector<4x16xf32>
    %766 = arith.mulf %765, %23 : vector<4x16xf32>
    %767 = vector.extract_strided_slice %6 {offsets = [38, 0], sizes = [2, 32], strides = [1, 1]} : vector<50x64xf32> to vector<2x32xf32>
    %768 = vector.extract_strided_slice %6 {offsets = [10, 32], sizes = [2, 32], strides = [1, 1]} : vector<50x64xf32> to vector<2x32xf32>
    %769 = tpu.concatenate %767, %768 in 0 : vector<2x32xf32>, vector<2x32xf32> -> vector<4x32xf32>
    %770 = arith.truncf %766 : vector<4x16xf32> to vector<4x16xbf16>
    %cst_203 = arith.constant dense<0.000000e+00> : vector<4x32xf32>
    %771 = tpu.matmul %770, %7, %cst_203 {dimension_numbers = #tpu.dot_dimension_numbers<[1], [0], [0], [1], [0, 0, 1, 1], [], []>} : vector<4x16xbf16>, vector<16x32xbf16>, vector<4x32xf32> -> vector<4x32xf32>
    %772 = arith.addf %769, %771 : vector<4x32xf32>
    %773 = vector.extract_strided_slice %772 {offsets = [0, 0], sizes = [4, 8], strides = [1, 1]} : vector<4x32xf32> to vector<4x8xf32>
    %cst_204 = arith.constant 5.000000e-01 : f32
    %774 = vector.broadcast %cst_204 : f32 to vector<4x8xf32>
    %775 = arith.mulf %774, %773 : vector<4x8xf32>
    %776 = math.tanh %775 : vector<4x8xf32>
    %cst_205 = arith.constant 5.000000e-01 : f32
    %777 = vector.broadcast %cst_205 : f32 to vector<4x8xf32>
    %778 = arith.mulf %777, %776 : vector<4x8xf32>
    %cst_206 = arith.constant 5.000000e-01 : f32
    %779 = vector.broadcast %cst_206 : f32 to vector<4x8xf32>
    %780 = arith.addf %778, %779 : vector<4x8xf32>
    %781 = vector.extract_strided_slice %772 {offsets = [0, 8], sizes = [4, 8], strides = [1, 1]} : vector<4x32xf32> to vector<4x8xf32>
    %cst_207 = arith.constant 5.000000e-01 : f32
    %782 = vector.broadcast %cst_207 : f32 to vector<4x8xf32>
    %783 = arith.mulf %782, %781 : vector<4x8xf32>
    %784 = math.tanh %783 : vector<4x8xf32>
    %cst_208 = arith.constant 5.000000e-01 : f32
    %785 = vector.broadcast %cst_208 : f32 to vector<4x8xf32>
    %786 = arith.mulf %785, %784 : vector<4x8xf32>
    %cst_209 = arith.constant 5.000000e-01 : f32
    %787 = vector.broadcast %cst_209 : f32 to vector<4x8xf32>
    %788 = arith.addf %786, %787 : vector<4x8xf32>
    %789 = vector.extract_strided_slice %772 {offsets = [0, 16], sizes = [4, 8], strides = [1, 1]} : vector<4x32xf32> to vector<4x8xf32>
    %790 = math.tanh %789 : vector<4x8xf32>
    %791 = vector.extract_strided_slice %772 {offsets = [0, 24], sizes = [4, 8], strides = [1, 1]} : vector<4x32xf32> to vector<4x8xf32>
    %cst_210 = arith.constant 5.000000e-01 : f32
    %792 = vector.broadcast %cst_210 : f32 to vector<4x8xf32>
    %793 = arith.mulf %792, %791 : vector<4x8xf32>
    %794 = math.tanh %793 : vector<4x8xf32>
    %cst_211 = arith.constant 5.000000e-01 : f32
    %795 = vector.broadcast %cst_211 : f32 to vector<4x8xf32>
    %796 = arith.mulf %795, %794 : vector<4x8xf32>
    %cst_212 = arith.constant 5.000000e-01 : f32
    %797 = vector.broadcast %cst_212 : f32 to vector<4x8xf32>
    %798 = arith.addf %796, %797 : vector<4x8xf32>
    %799 = arith.mulf %788, %762 : vector<4x8xf32>
    %800 = arith.mulf %780, %790 : vector<4x8xf32>
    %801 = arith.addf %799, %800 : vector<4x8xf32>
    %802 = math.tanh %801 : vector<4x8xf32>
    %803 = arith.mulf %798, %802 : vector<4x8xf32>
    %804 = tpu.concatenate %803, %803 in 1 : vector<4x8xf32>, vector<4x8xf32> -> vector<4x16xf32>
    %805 = arith.mulf %804, %23 : vector<4x16xf32>
    %806 = vector.extract_strided_slice %6 {offsets = [40, 0], sizes = [2, 32], strides = [1, 1]} : vector<50x64xf32> to vector<2x32xf32>
    %807 = vector.extract_strided_slice %6 {offsets = [8, 32], sizes = [2, 32], strides = [1, 1]} : vector<50x64xf32> to vector<2x32xf32>
    %808 = tpu.concatenate %806, %807 in 0 : vector<2x32xf32>, vector<2x32xf32> -> vector<4x32xf32>
    %809 = arith.truncf %805 : vector<4x16xf32> to vector<4x16xbf16>
    %cst_213 = arith.constant dense<0.000000e+00> : vector<4x32xf32>
    %810 = tpu.matmul %809, %7, %cst_213 {dimension_numbers = #tpu.dot_dimension_numbers<[1], [0], [0], [1], [0, 0, 1, 1], [], []>} : vector<4x16xbf16>, vector<16x32xbf16>, vector<4x32xf32> -> vector<4x32xf32>
    %811 = arith.addf %808, %810 : vector<4x32xf32>
    %812 = vector.extract_strided_slice %811 {offsets = [0, 0], sizes = [4, 8], strides = [1, 1]} : vector<4x32xf32> to vector<4x8xf32>
    %cst_214 = arith.constant 5.000000e-01 : f32
    %813 = vector.broadcast %cst_214 : f32 to vector<4x8xf32>
    %814 = arith.mulf %813, %812 : vector<4x8xf32>
    %815 = math.tanh %814 : vector<4x8xf32>
    %cst_215 = arith.constant 5.000000e-01 : f32
    %816 = vector.broadcast %cst_215 : f32 to vector<4x8xf32>
    %817 = arith.mulf %816, %815 : vector<4x8xf32>
    %cst_216 = arith.constant 5.000000e-01 : f32
    %818 = vector.broadcast %cst_216 : f32 to vector<4x8xf32>
    %819 = arith.addf %817, %818 : vector<4x8xf32>
    %820 = vector.extract_strided_slice %811 {offsets = [0, 8], sizes = [4, 8], strides = [1, 1]} : vector<4x32xf32> to vector<4x8xf32>
    %cst_217 = arith.constant 5.000000e-01 : f32
    %821 = vector.broadcast %cst_217 : f32 to vector<4x8xf32>
    %822 = arith.mulf %821, %820 : vector<4x8xf32>
    %823 = math.tanh %822 : vector<4x8xf32>
    %cst_218 = arith.constant 5.000000e-01 : f32
    %824 = vector.broadcast %cst_218 : f32 to vector<4x8xf32>
    %825 = arith.mulf %824, %823 : vector<4x8xf32>
    %cst_219 = arith.constant 5.000000e-01 : f32
    %826 = vector.broadcast %cst_219 : f32 to vector<4x8xf32>
    %827 = arith.addf %825, %826 : vector<4x8xf32>
    %828 = vector.extract_strided_slice %811 {offsets = [0, 16], sizes = [4, 8], strides = [1, 1]} : vector<4x32xf32> to vector<4x8xf32>
    %829 = math.tanh %828 : vector<4x8xf32>
    %830 = vector.extract_strided_slice %811 {offsets = [0, 24], sizes = [4, 8], strides = [1, 1]} : vector<4x32xf32> to vector<4x8xf32>
    %cst_220 = arith.constant 5.000000e-01 : f32
    %831 = vector.broadcast %cst_220 : f32 to vector<4x8xf32>
    %832 = arith.mulf %831, %830 : vector<4x8xf32>
    %833 = math.tanh %832 : vector<4x8xf32>
    %cst_221 = arith.constant 5.000000e-01 : f32
    %834 = vector.broadcast %cst_221 : f32 to vector<4x8xf32>
    %835 = arith.mulf %834, %833 : vector<4x8xf32>
    %cst_222 = arith.constant 5.000000e-01 : f32
    %836 = vector.broadcast %cst_222 : f32 to vector<4x8xf32>
    %837 = arith.addf %835, %836 : vector<4x8xf32>
    %838 = arith.mulf %827, %801 : vector<4x8xf32>
    %839 = arith.mulf %819, %829 : vector<4x8xf32>
    %840 = arith.addf %838, %839 : vector<4x8xf32>
    %841 = math.tanh %840 : vector<4x8xf32>
    %842 = arith.mulf %837, %841 : vector<4x8xf32>
    %843 = tpu.concatenate %842, %842 in 1 : vector<4x8xf32>, vector<4x8xf32> -> vector<4x16xf32>
    %844 = arith.mulf %843, %23 : vector<4x16xf32>
    %845 = vector.extract_strided_slice %6 {offsets = [42, 0], sizes = [2, 32], strides = [1, 1]} : vector<50x64xf32> to vector<2x32xf32>
    %846 = vector.extract_strided_slice %6 {offsets = [6, 32], sizes = [2, 32], strides = [1, 1]} : vector<50x64xf32> to vector<2x32xf32>
    %847 = tpu.concatenate %845, %846 in 0 : vector<2x32xf32>, vector<2x32xf32> -> vector<4x32xf32>
    %848 = arith.truncf %844 : vector<4x16xf32> to vector<4x16xbf16>
    %cst_223 = arith.constant dense<0.000000e+00> : vector<4x32xf32>
    %849 = tpu.matmul %848, %7, %cst_223 {dimension_numbers = #tpu.dot_dimension_numbers<[1], [0], [0], [1], [0, 0, 1, 1], [], []>} : vector<4x16xbf16>, vector<16x32xbf16>, vector<4x32xf32> -> vector<4x32xf32>
    %850 = arith.addf %847, %849 : vector<4x32xf32>
    %851 = vector.extract_strided_slice %850 {offsets = [0, 0], sizes = [4, 8], strides = [1, 1]} : vector<4x32xf32> to vector<4x8xf32>
    %cst_224 = arith.constant 5.000000e-01 : f32
    %852 = vector.broadcast %cst_224 : f32 to vector<4x8xf32>
    %853 = arith.mulf %852, %851 : vector<4x8xf32>
    %854 = math.tanh %853 : vector<4x8xf32>
    %cst_225 = arith.constant 5.000000e-01 : f32
    %855 = vector.broadcast %cst_225 : f32 to vector<4x8xf32>
    %856 = arith.mulf %855, %854 : vector<4x8xf32>
    %cst_226 = arith.constant 5.000000e-01 : f32
    %857 = vector.broadcast %cst_226 : f32 to vector<4x8xf32>
    %858 = arith.addf %856, %857 : vector<4x8xf32>
    %859 = vector.extract_strided_slice %850 {offsets = [0, 8], sizes = [4, 8], strides = [1, 1]} : vector<4x32xf32> to vector<4x8xf32>
    %cst_227 = arith.constant 5.000000e-01 : f32
    %860 = vector.broadcast %cst_227 : f32 to vector<4x8xf32>
    %861 = arith.mulf %860, %859 : vector<4x8xf32>
    %862 = math.tanh %861 : vector<4x8xf32>
    %cst_228 = arith.constant 5.000000e-01 : f32
    %863 = vector.broadcast %cst_228 : f32 to vector<4x8xf32>
    %864 = arith.mulf %863, %862 : vector<4x8xf32>
    %cst_229 = arith.constant 5.000000e-01 : f32
    %865 = vector.broadcast %cst_229 : f32 to vector<4x8xf32>
    %866 = arith.addf %864, %865 : vector<4x8xf32>
    %867 = vector.extract_strided_slice %850 {offsets = [0, 16], sizes = [4, 8], strides = [1, 1]} : vector<4x32xf32> to vector<4x8xf32>
    %868 = math.tanh %867 : vector<4x8xf32>
    %869 = vector.extract_strided_slice %850 {offsets = [0, 24], sizes = [4, 8], strides = [1, 1]} : vector<4x32xf32> to vector<4x8xf32>
    %cst_230 = arith.constant 5.000000e-01 : f32
    %870 = vector.broadcast %cst_230 : f32 to vector<4x8xf32>
    %871 = arith.mulf %870, %869 : vector<4x8xf32>
    %872 = math.tanh %871 : vector<4x8xf32>
    %cst_231 = arith.constant 5.000000e-01 : f32
    %873 = vector.broadcast %cst_231 : f32 to vector<4x8xf32>
    %874 = arith.mulf %873, %872 : vector<4x8xf32>
    %cst_232 = arith.constant 5.000000e-01 : f32
    %875 = vector.broadcast %cst_232 : f32 to vector<4x8xf32>
    %876 = arith.addf %874, %875 : vector<4x8xf32>
    %877 = arith.mulf %866, %840 : vector<4x8xf32>
    %878 = arith.mulf %858, %868 : vector<4x8xf32>
    %879 = arith.addf %877, %878 : vector<4x8xf32>
    %880 = math.tanh %879 : vector<4x8xf32>
    %881 = arith.mulf %876, %880 : vector<4x8xf32>
    %882 = tpu.concatenate %881, %881 in 1 : vector<4x8xf32>, vector<4x8xf32> -> vector<4x16xf32>
    %883 = arith.mulf %882, %23 : vector<4x16xf32>
    %884 = vector.extract_strided_slice %6 {offsets = [44, 0], sizes = [2, 32], strides = [1, 1]} : vector<50x64xf32> to vector<2x32xf32>
    %885 = vector.extract_strided_slice %6 {offsets = [4, 32], sizes = [2, 32], strides = [1, 1]} : vector<50x64xf32> to vector<2x32xf32>
    %886 = tpu.concatenate %884, %885 in 0 : vector<2x32xf32>, vector<2x32xf32> -> vector<4x32xf32>
    %887 = arith.truncf %883 : vector<4x16xf32> to vector<4x16xbf16>
    %cst_233 = arith.constant dense<0.000000e+00> : vector<4x32xf32>
    %888 = tpu.matmul %887, %7, %cst_233 {dimension_numbers = #tpu.dot_dimension_numbers<[1], [0], [0], [1], [0, 0, 1, 1], [], []>} : vector<4x16xbf16>, vector<16x32xbf16>, vector<4x32xf32> -> vector<4x32xf32>
    %889 = arith.addf %886, %888 : vector<4x32xf32>
    %890 = vector.extract_strided_slice %889 {offsets = [0, 0], sizes = [4, 8], strides = [1, 1]} : vector<4x32xf32> to vector<4x8xf32>
    %cst_234 = arith.constant 5.000000e-01 : f32
    %891 = vector.broadcast %cst_234 : f32 to vector<4x8xf32>
    %892 = arith.mulf %891, %890 : vector<4x8xf32>
    %893 = math.tanh %892 : vector<4x8xf32>
    %cst_235 = arith.constant 5.000000e-01 : f32
    %894 = vector.broadcast %cst_235 : f32 to vector<4x8xf32>
    %895 = arith.mulf %894, %893 : vector<4x8xf32>
    %cst_236 = arith.constant 5.000000e-01 : f32
    %896 = vector.broadcast %cst_236 : f32 to vector<4x8xf32>
    %897 = arith.addf %895, %896 : vector<4x8xf32>
    %898 = vector.extract_strided_slice %889 {offsets = [0, 8], sizes = [4, 8], strides = [1, 1]} : vector<4x32xf32> to vector<4x8xf32>
    %cst_237 = arith.constant 5.000000e-01 : f32
    %899 = vector.broadcast %cst_237 : f32 to vector<4x8xf32>
    %900 = arith.mulf %899, %898 : vector<4x8xf32>
    %901 = math.tanh %900 : vector<4x8xf32>
    %cst_238 = arith.constant 5.000000e-01 : f32
    %902 = vector.broadcast %cst_238 : f32 to vector<4x8xf32>
    %903 = arith.mulf %902, %901 : vector<4x8xf32>
    %cst_239 = arith.constant 5.000000e-01 : f32
    %904 = vector.broadcast %cst_239 : f32 to vector<4x8xf32>
    %905 = arith.addf %903, %904 : vector<4x8xf32>
    %906 = vector.extract_strided_slice %889 {offsets = [0, 16], sizes = [4, 8], strides = [1, 1]} : vector<4x32xf32> to vector<4x8xf32>
    %907 = math.tanh %906 : vector<4x8xf32>
    %908 = vector.extract_strided_slice %889 {offsets = [0, 24], sizes = [4, 8], strides = [1, 1]} : vector<4x32xf32> to vector<4x8xf32>
    %cst_240 = arith.constant 5.000000e-01 : f32
    %909 = vector.broadcast %cst_240 : f32 to vector<4x8xf32>
    %910 = arith.mulf %909, %908 : vector<4x8xf32>
    %911 = math.tanh %910 : vector<4x8xf32>
    %cst_241 = arith.constant 5.000000e-01 : f32
    %912 = vector.broadcast %cst_241 : f32 to vector<4x8xf32>
    %913 = arith.mulf %912, %911 : vector<4x8xf32>
    %cst_242 = arith.constant 5.000000e-01 : f32
    %914 = vector.broadcast %cst_242 : f32 to vector<4x8xf32>
    %915 = arith.addf %913, %914 : vector<4x8xf32>
    %916 = arith.mulf %905, %879 : vector<4x8xf32>
    %917 = arith.mulf %897, %907 : vector<4x8xf32>
    %918 = arith.addf %916, %917 : vector<4x8xf32>
    %919 = math.tanh %918 : vector<4x8xf32>
    %920 = arith.mulf %915, %919 : vector<4x8xf32>
    %921 = tpu.concatenate %920, %920 in 1 : vector<4x8xf32>, vector<4x8xf32> -> vector<4x16xf32>
    %922 = arith.mulf %921, %23 : vector<4x16xf32>
    %923 = vector.extract_strided_slice %6 {offsets = [46, 0], sizes = [2, 32], strides = [1, 1]} : vector<50x64xf32> to vector<2x32xf32>
    %924 = vector.extract_strided_slice %6 {offsets = [2, 32], sizes = [2, 32], strides = [1, 1]} : vector<50x64xf32> to vector<2x32xf32>
    %925 = tpu.concatenate %923, %924 in 0 : vector<2x32xf32>, vector<2x32xf32> -> vector<4x32xf32>
    %926 = arith.truncf %922 : vector<4x16xf32> to vector<4x16xbf16>
    %cst_243 = arith.constant dense<0.000000e+00> : vector<4x32xf32>
    %927 = tpu.matmul %926, %7, %cst_243 {dimension_numbers = #tpu.dot_dimension_numbers<[1], [0], [0], [1], [0, 0, 1, 1], [], []>} : vector<4x16xbf16>, vector<16x32xbf16>, vector<4x32xf32> -> vector<4x32xf32>
    %928 = arith.addf %925, %927 : vector<4x32xf32>
    %929 = vector.extract_strided_slice %928 {offsets = [0, 0], sizes = [4, 8], strides = [1, 1]} : vector<4x32xf32> to vector<4x8xf32>
    %cst_244 = arith.constant 5.000000e-01 : f32
    %930 = vector.broadcast %cst_244 : f32 to vector<4x8xf32>
    %931 = arith.mulf %930, %929 : vector<4x8xf32>
    %932 = math.tanh %931 : vector<4x8xf32>
    %cst_245 = arith.constant 5.000000e-01 : f32
    %933 = vector.broadcast %cst_245 : f32 to vector<4x8xf32>
    %934 = arith.mulf %933, %932 : vector<4x8xf32>
    %cst_246 = arith.constant 5.000000e-01 : f32
    %935 = vector.broadcast %cst_246 : f32 to vector<4x8xf32>
    %936 = arith.addf %934, %935 : vector<4x8xf32>
    %937 = vector.extract_strided_slice %928 {offsets = [0, 8], sizes = [4, 8], strides = [1, 1]} : vector<4x32xf32> to vector<4x8xf32>
    %cst_247 = arith.constant 5.000000e-01 : f32
    %938 = vector.broadcast %cst_247 : f32 to vector<4x8xf32>
    %939 = arith.mulf %938, %937 : vector<4x8xf32>
    %940 = math.tanh %939 : vector<4x8xf32>
    %cst_248 = arith.constant 5.000000e-01 : f32
    %941 = vector.broadcast %cst_248 : f32 to vector<4x8xf32>
    %942 = arith.mulf %941, %940 : vector<4x8xf32>
    %cst_249 = arith.constant 5.000000e-01 : f32
    %943 = vector.broadcast %cst_249 : f32 to vector<4x8xf32>
    %944 = arith.addf %942, %943 : vector<4x8xf32>
    %945 = vector.extract_strided_slice %928 {offsets = [0, 16], sizes = [4, 8], strides = [1, 1]} : vector<4x32xf32> to vector<4x8xf32>
    %946 = math.tanh %945 : vector<4x8xf32>
    %947 = vector.extract_strided_slice %928 {offsets = [0, 24], sizes = [4, 8], strides = [1, 1]} : vector<4x32xf32> to vector<4x8xf32>
    %cst_250 = arith.constant 5.000000e-01 : f32
    %948 = vector.broadcast %cst_250 : f32 to vector<4x8xf32>
    %949 = arith.mulf %948, %947 : vector<4x8xf32>
    %950 = math.tanh %949 : vector<4x8xf32>
    %cst_251 = arith.constant 5.000000e-01 : f32
    %951 = vector.broadcast %cst_251 : f32 to vector<4x8xf32>
    %952 = arith.mulf %951, %950 : vector<4x8xf32>
    %cst_252 = arith.constant 5.000000e-01 : f32
    %953 = vector.broadcast %cst_252 : f32 to vector<4x8xf32>
    %954 = arith.addf %952, %953 : vector<4x8xf32>
    %955 = arith.mulf %944, %918 : vector<4x8xf32>
    %956 = arith.mulf %936, %946 : vector<4x8xf32>
    %957 = arith.addf %955, %956 : vector<4x8xf32>
    %958 = math.tanh %957 : vector<4x8xf32>
    %959 = arith.mulf %954, %958 : vector<4x8xf32>
    %960 = tpu.concatenate %959, %959 in 1 : vector<4x8xf32>, vector<4x8xf32> -> vector<4x16xf32>
    %961 = arith.mulf %960, %23 : vector<4x16xf32>
    %962 = vector.extract_strided_slice %6 {offsets = [48, 0], sizes = [2, 32], strides = [1, 1]} : vector<50x64xf32> to vector<2x32xf32>
    %963 = vector.extract_strided_slice %6 {offsets = [0, 32], sizes = [2, 32], strides = [1, 1]} : vector<50x64xf32> to vector<2x32xf32>
    %964 = tpu.concatenate %962, %963 in 0 : vector<2x32xf32>, vector<2x32xf32> -> vector<4x32xf32>
    %965 = arith.truncf %961 : vector<4x16xf32> to vector<4x16xbf16>
    %cst_253 = arith.constant dense<0.000000e+00> : vector<4x32xf32>
    %966 = tpu.matmul %965, %7, %cst_253 {dimension_numbers = #tpu.dot_dimension_numbers<[1], [0], [0], [1], [0, 0, 1, 1], [], []>} : vector<4x16xbf16>, vector<16x32xbf16>, vector<4x32xf32> -> vector<4x32xf32>
    %967 = arith.addf %964, %966 : vector<4x32xf32>
    %968 = vector.extract_strided_slice %967 {offsets = [0, 0], sizes = [4, 8], strides = [1, 1]} : vector<4x32xf32> to vector<4x8xf32>
    %cst_254 = arith.constant 5.000000e-01 : f32
    %969 = vector.broadcast %cst_254 : f32 to vector<4x8xf32>
    %970 = arith.mulf %969, %968 : vector<4x8xf32>
    %971 = math.tanh %970 : vector<4x8xf32>
    %cst_255 = arith.constant 5.000000e-01 : f32
    %972 = vector.broadcast %cst_255 : f32 to vector<4x8xf32>
    %973 = arith.mulf %972, %971 : vector<4x8xf32>
    %cst_256 = arith.constant 5.000000e-01 : f32
    %974 = vector.broadcast %cst_256 : f32 to vector<4x8xf32>
    %975 = arith.addf %973, %974 : vector<4x8xf32>
    %976 = vector.extract_strided_slice %967 {offsets = [0, 8], sizes = [4, 8], strides = [1, 1]} : vector<4x32xf32> to vector<4x8xf32>
    %cst_257 = arith.constant 5.000000e-01 : f32
    %977 = vector.broadcast %cst_257 : f32 to vector<4x8xf32>
    %978 = arith.mulf %977, %976 : vector<4x8xf32>
    %979 = math.tanh %978 : vector<4x8xf32>
    %cst_258 = arith.constant 5.000000e-01 : f32
    %980 = vector.broadcast %cst_258 : f32 to vector<4x8xf32>
    %981 = arith.mulf %980, %979 : vector<4x8xf32>
    %cst_259 = arith.constant 5.000000e-01 : f32
    %982 = vector.broadcast %cst_259 : f32 to vector<4x8xf32>
    %983 = arith.addf %981, %982 : vector<4x8xf32>
    %984 = vector.extract_strided_slice %967 {offsets = [0, 16], sizes = [4, 8], strides = [1, 1]} : vector<4x32xf32> to vector<4x8xf32>
    %985 = math.tanh %984 : vector<4x8xf32>
    %986 = vector.extract_strided_slice %967 {offsets = [0, 24], sizes = [4, 8], strides = [1, 1]} : vector<4x32xf32> to vector<4x8xf32>
    %cst_260 = arith.constant 5.000000e-01 : f32
    %987 = vector.broadcast %cst_260 : f32 to vector<4x8xf32>
    %988 = arith.mulf %987, %986 : vector<4x8xf32>
    %989 = math.tanh %988 : vector<4x8xf32>
    %cst_261 = arith.constant 5.000000e-01 : f32
    %990 = vector.broadcast %cst_261 : f32 to vector<4x8xf32>
    %991 = arith.mulf %990, %989 : vector<4x8xf32>
    %cst_262 = arith.constant 5.000000e-01 : f32
    %992 = vector.broadcast %cst_262 : f32 to vector<4x8xf32>
    %993 = arith.addf %991, %992 : vector<4x8xf32>
    %994 = arith.mulf %983, %957 : vector<4x8xf32>
    %995 = arith.mulf %975, %985 : vector<4x8xf32>
    %996 = arith.addf %994, %995 : vector<4x8xf32>
    %997 = math.tanh %996 : vector<4x8xf32>
    %998 = arith.mulf %993, %997 : vector<4x8xf32>
    %999 = vector.extract_strided_slice %62 {offsets = [0, 0], sizes = [1, 8], strides = [1, 1]} : vector<4x8xf32> to vector<1x8xf32>
    %1000 = vector.extract_strided_slice %998 {offsets = [2, 0], sizes = [1, 8], strides = [1, 1]} : vector<4x8xf32> to vector<1x8xf32>
    %1001 = vector.extract_strided_slice %62 {offsets = [1, 0], sizes = [1, 8], strides = [1, 1]} : vector<4x8xf32> to vector<1x8xf32>
    %1002 = vector.extract_strided_slice %998 {offsets = [3, 0], sizes = [1, 8], strides = [1, 1]} : vector<4x8xf32> to vector<1x8xf32>
    %1003 = vector.extract_strided_slice %101 {offsets = [0, 0], sizes = [1, 8], strides = [1, 1]} : vector<4x8xf32> to vector<1x8xf32>
    %1004 = vector.extract_strided_slice %959 {offsets = [2, 0], sizes = [1, 8], strides = [1, 1]} : vector<4x8xf32> to vector<1x8xf32>
    %1005 = vector.extract_strided_slice %101 {offsets = [1, 0], sizes = [1, 8], strides = [1, 1]} : vector<4x8xf32> to vector<1x8xf32>
    %1006 = vector.extract_strided_slice %959 {offsets = [3, 0], sizes = [1, 8], strides = [1, 1]} : vector<4x8xf32> to vector<1x8xf32>
    %1007 = vector.extract_strided_slice %140 {offsets = [0, 0], sizes = [1, 8], strides = [1, 1]} : vector<4x8xf32> to vector<1x8xf32>
    %1008 = vector.extract_strided_slice %920 {offsets = [2, 0], sizes = [1, 8], strides = [1, 1]} : vector<4x8xf32> to vector<1x8xf32>
    %1009 = vector.extract_strided_slice %140 {offsets = [1, 0], sizes = [1, 8], strides = [1, 1]} : vector<4x8xf32> to vector<1x8xf32>
    %1010 = vector.extract_strided_slice %920 {offsets = [3, 0], sizes = [1, 8], strides = [1, 1]} : vector<4x8xf32> to vector<1x8xf32>
    %1011 = vector.extract_strided_slice %179 {offsets = [0, 0], sizes = [1, 8], strides = [1, 1]} : vector<4x8xf32> to vector<1x8xf32>
    %1012 = vector.extract_strided_slice %881 {offsets = [2, 0], sizes = [1, 8], strides = [1, 1]} : vector<4x8xf32> to vector<1x8xf32>
    %1013 = vector.extract_strided_slice %179 {offsets = [1, 0], sizes = [1, 8], strides = [1, 1]} : vector<4x8xf32> to vector<1x8xf32>
    %1014 = vector.extract_strided_slice %881 {offsets = [3, 0], sizes = [1, 8], strides = [1, 1]} : vector<4x8xf32> to vector<1x8xf32>
    %1015 = vector.extract_strided_slice %218 {offsets = [0, 0], sizes = [1, 8], strides = [1, 1]} : vector<4x8xf32> to vector<1x8xf32>
    %1016 = vector.extract_strided_slice %842 {offsets = [2, 0], sizes = [1, 8], strides = [1, 1]} : vector<4x8xf32> to vector<1x8xf32>
    %1017 = vector.extract_strided_slice %218 {offsets = [1, 0], sizes = [1, 8], strides = [1, 1]} : vector<4x8xf32> to vector<1x8xf32>
    %1018 = vector.extract_strided_slice %842 {offsets = [3, 0], sizes = [1, 8], strides = [1, 1]} : vector<4x8xf32> to vector<1x8xf32>
    %1019 = vector.extract_strided_slice %257 {offsets = [0, 0], sizes = [1, 8], strides = [1, 1]} : vector<4x8xf32> to vector<1x8xf32>
    %1020 = vector.extract_strided_slice %803 {offsets = [2, 0], sizes = [1, 8], strides = [1, 1]} : vector<4x8xf32> to vector<1x8xf32>
    %1021 = vector.extract_strided_slice %257 {offsets = [1, 0], sizes = [1, 8], strides = [1, 1]} : vector<4x8xf32> to vector<1x8xf32>
    %1022 = vector.extract_strided_slice %803 {offsets = [3, 0], sizes = [1, 8], strides = [1, 1]} : vector<4x8xf32> to vector<1x8xf32>
    %1023 = vector.extract_strided_slice %296 {offsets = [0, 0], sizes = [1, 8], strides = [1, 1]} : vector<4x8xf32> to vector<1x8xf32>
    %1024 = vector.extract_strided_slice %764 {offsets = [2, 0], sizes = [1, 8], strides = [1, 1]} : vector<4x8xf32> to vector<1x8xf32>
    %1025 = vector.extract_strided_slice %296 {offsets = [1, 0], sizes = [1, 8], strides = [1, 1]} : vector<4x8xf32> to vector<1x8xf32>
    %1026 = vector.extract_strided_slice %764 {offsets = [3, 0], sizes = [1, 8], strides = [1, 1]} : vector<4x8xf32> to vector<1x8xf32>
    %1027 = vector.extract_strided_slice %335 {offsets = [0, 0], sizes = [1, 8], strides = [1, 1]} : vector<4x8xf32> to vector<1x8xf32>
    %1028 = vector.extract_strided_slice %725 {offsets = [2, 0], sizes = [1, 8], strides = [1, 1]} : vector<4x8xf32> to vector<1x8xf32>
    %1029 = vector.extract_strided_slice %335 {offsets = [1, 0], sizes = [1, 8], strides = [1, 1]} : vector<4x8xf32> to vector<1x8xf32>
    %1030 = vector.extract_strided_slice %725 {offsets = [3, 0], sizes = [1, 8], strides = [1, 1]} : vector<4x8xf32> to vector<1x8xf32>
    %1031 = vector.extract_strided_slice %374 {offsets = [0, 0], sizes = [1, 8], strides = [1, 1]} : vector<4x8xf32> to vector<1x8xf32>
    %1032 = vector.extract_strided_slice %686 {offsets = [2, 0], sizes = [1, 8], strides = [1, 1]} : vector<4x8xf32> to vector<1x8xf32>
    %1033 = vector.extract_strided_slice %374 {offsets = [1, 0], sizes = [1, 8], strides = [1, 1]} : vector<4x8xf32> to vector<1x8xf32>
    %1034 = vector.extract_strided_slice %686 {offsets = [3, 0], sizes = [1, 8], strides = [1, 1]} : vector<4x8xf32> to vector<1x8xf32>
    %1035 = vector.extract_strided_slice %413 {offsets = [0, 0], sizes = [1, 8], strides = [1, 1]} : vector<4x8xf32> to vector<1x8xf32>
    %1036 = vector.extract_strided_slice %647 {offsets = [2, 0], sizes = [1, 8], strides = [1, 1]} : vector<4x8xf32> to vector<1x8xf32>
    %1037 = vector.extract_strided_slice %413 {offsets = [1, 0], sizes = [1, 8], strides = [1, 1]} : vector<4x8xf32> to vector<1x8xf32>
    %1038 = vector.extract_strided_slice %647 {offsets = [3, 0], sizes = [1, 8], strides = [1, 1]} : vector<4x8xf32> to vector<1x8xf32>
    %1039 = vector.extract_strided_slice %452 {offsets = [0, 0], sizes = [1, 8], strides = [1, 1]} : vector<4x8xf32> to vector<1x8xf32>
    %1040 = vector.extract_strided_slice %608 {offsets = [2, 0], sizes = [1, 8], strides = [1, 1]} : vector<4x8xf32> to vector<1x8xf32>
    %1041 = vector.extract_strided_slice %452 {offsets = [1, 0], sizes = [1, 8], strides = [1, 1]} : vector<4x8xf32> to vector<1x8xf32>
    %1042 = vector.extract_strided_slice %608 {offsets = [3, 0], sizes = [1, 8], strides = [1, 1]} : vector<4x8xf32> to vector<1x8xf32>
    %1043 = vector.extract_strided_slice %491 {offsets = [0, 0], sizes = [1, 8], strides = [1, 1]} : vector<4x8xf32> to vector<1x8xf32>
    %1044 = vector.extract_strided_slice %569 {offsets = [2, 0], sizes = [1, 8], strides = [1, 1]} : vector<4x8xf32> to vector<1x8xf32>
    %1045 = vector.extract_strided_slice %491 {offsets = [1, 0], sizes = [1, 8], strides = [1, 1]} : vector<4x8xf32> to vector<1x8xf32>
    %1046 = vector.extract_strided_slice %569 {offsets = [3, 0], sizes = [1, 8], strides = [1, 1]} : vector<4x8xf32> to vector<1x8xf32>
    %1047 = vector.extract_strided_slice %530 {offsets = [0, 0], sizes = [1, 8], strides = [1, 1]} : vector<4x8xf32> to vector<1x8xf32>
    %1048 = vector.extract_strided_slice %530 {offsets = [2, 0], sizes = [1, 8], strides = [1, 1]} : vector<4x8xf32> to vector<1x8xf32>
    %1049 = vector.extract_strided_slice %530 {offsets = [1, 0], sizes = [1, 8], strides = [1, 1]} : vector<4x8xf32> to vector<1x8xf32>
    %1050 = vector.extract_strided_slice %530 {offsets = [3, 0], sizes = [1, 8], strides = [1, 1]} : vector<4x8xf32> to vector<1x8xf32>
    %1051 = vector.extract_strided_slice %569 {offsets = [0, 0], sizes = [1, 8], strides = [1, 1]} : vector<4x8xf32> to vector<1x8xf32>
    %1052 = vector.extract_strided_slice %491 {offsets = [2, 0], sizes = [1, 8], strides = [1, 1]} : vector<4x8xf32> to vector<1x8xf32>
    %1053 = vector.extract_strided_slice %569 {offsets = [1, 0], sizes = [1, 8], strides = [1, 1]} : vector<4x8xf32> to vector<1x8xf32>
    %1054 = vector.extract_strided_slice %491 {offsets = [3, 0], sizes = [1, 8], strides = [1, 1]} : vector<4x8xf32> to vector<1x8xf32>
    %1055 = vector.extract_strided_slice %608 {offsets = [0, 0], sizes = [1, 8], strides = [1, 1]} : vector<4x8xf32> to vector<1x8xf32>
    %1056 = vector.extract_strided_slice %452 {offsets = [2, 0], sizes = [1, 8], strides = [1, 1]} : vector<4x8xf32> to vector<1x8xf32>
    %1057 = vector.extract_strided_slice %608 {offsets = [1, 0], sizes = [1, 8], strides = [1, 1]} : vector<4x8xf32> to vector<1x8xf32>
    %1058 = vector.extract_strided_slice %452 {offsets = [3, 0], sizes = [1, 8], strides = [1, 1]} : vector<4x8xf32> to vector<1x8xf32>
    %1059 = vector.extract_strided_slice %647 {offsets = [0, 0], sizes = [1, 8], strides = [1, 1]} : vector<4x8xf32> to vector<1x8xf32>
    %1060 = vector.extract_strided_slice %413 {offsets = [2, 0], sizes = [1, 8], strides = [1, 1]} : vector<4x8xf32> to vector<1x8xf32>
    %1061 = vector.extract_strided_slice %647 {offsets = [1, 0], sizes = [1, 8], strides = [1, 1]} : vector<4x8xf32> to vector<1x8xf32>
    %1062 = vector.extract_strided_slice %413 {offsets = [3, 0], sizes = [1, 8], strides = [1, 1]} : vector<4x8xf32> to vector<1x8xf32>
    %1063 = vector.extract_strided_slice %686 {offsets = [0, 0], sizes = [1, 8], strides = [1, 1]} : vector<4x8xf32> to vector<1x8xf32>
    %1064 = vector.extract_strided_slice %374 {offsets = [2, 0], sizes = [1, 8], strides = [1, 1]} : vector<4x8xf32> to vector<1x8xf32>
    %1065 = vector.extract_strided_slice %686 {offsets = [1, 0], sizes = [1, 8], strides = [1, 1]} : vector<4x8xf32> to vector<1x8xf32>
    %1066 = vector.extract_strided_slice %374 {offsets = [3, 0], sizes = [1, 8], strides = [1, 1]} : vector<4x8xf32> to vector<1x8xf32>
    %1067 = vector.extract_strided_slice %725 {offsets = [0, 0], sizes = [1, 8], strides = [1, 1]} : vector<4x8xf32> to vector<1x8xf32>
    %1068 = vector.extract_strided_slice %335 {offsets = [2, 0], sizes = [1, 8], strides = [1, 1]} : vector<4x8xf32> to vector<1x8xf32>
    %1069 = vector.extract_strided_slice %725 {offsets = [1, 0], sizes = [1, 8], strides = [1, 1]} : vector<4x8xf32> to vector<1x8xf32>
    %1070 = vector.extract_strided_slice %335 {offsets = [3, 0], sizes = [1, 8], strides = [1, 1]} : vector<4x8xf32> to vector<1x8xf32>
    %1071 = vector.extract_strided_slice %764 {offsets = [0, 0], sizes = [1, 8], strides = [1, 1]} : vector<4x8xf32> to vector<1x8xf32>
    %1072 = vector.extract_strided_slice %296 {offsets = [2, 0], sizes = [1, 8], strides = [1, 1]} : vector<4x8xf32> to vector<1x8xf32>
    %1073 = vector.extract_strided_slice %764 {offsets = [1, 0], sizes = [1, 8], strides = [1, 1]} : vector<4x8xf32> to vector<1x8xf32>
    %1074 = vector.extract_strided_slice %296 {offsets = [3, 0], sizes = [1, 8], strides = [1, 1]} : vector<4x8xf32> to vector<1x8xf32>
    %1075 = vector.extract_strided_slice %803 {offsets = [0, 0], sizes = [1, 8], strides = [1, 1]} : vector<4x8xf32> to vector<1x8xf32>
    %1076 = vector.extract_strided_slice %257 {offsets = [2, 0], sizes = [1, 8], strides = [1, 1]} : vector<4x8xf32> to vector<1x8xf32>
    %1077 = vector.extract_strided_slice %803 {offsets = [1, 0], sizes = [1, 8], strides = [1, 1]} : vector<4x8xf32> to vector<1x8xf32>
    %1078 = vector.extract_strided_slice %257 {offsets = [3, 0], sizes = [1, 8], strides = [1, 1]} : vector<4x8xf32> to vector<1x8xf32>
    %1079 = vector.extract_strided_slice %842 {offsets = [0, 0], sizes = [1, 8], strides = [1, 1]} : vector<4x8xf32> to vector<1x8xf32>
    %1080 = vector.extract_strided_slice %218 {offsets = [2, 0], sizes = [1, 8], strides = [1, 1]} : vector<4x8xf32> to vector<1x8xf32>
    %1081 = vector.extract_strided_slice %842 {offsets = [1, 0], sizes = [1, 8], strides = [1, 1]} : vector<4x8xf32> to vector<1x8xf32>
    %1082 = vector.extract_strided_slice %218 {offsets = [3, 0], sizes = [1, 8], strides = [1, 1]} : vector<4x8xf32> to vector<1x8xf32>
    %1083 = vector.extract_strided_slice %881 {offsets = [0, 0], sizes = [1, 8], strides = [1, 1]} : vector<4x8xf32> to vector<1x8xf32>
    %1084 = vector.extract_strided_slice %179 {offsets = [2, 0], sizes = [1, 8], strides = [1, 1]} : vector<4x8xf32> to vector<1x8xf32>
    %1085 = vector.extract_strided_slice %881 {offsets = [1, 0], sizes = [1, 8], strides = [1, 1]} : vector<4x8xf32> to vector<1x8xf32>
    %1086 = vector.extract_strided_slice %179 {offsets = [3, 0], sizes = [1, 8], strides = [1, 1]} : vector<4x8xf32> to vector<1x8xf32>
    %1087 = vector.extract_strided_slice %920 {offsets = [0, 0], sizes = [1, 8], strides = [1, 1]} : vector<4x8xf32> to vector<1x8xf32>
    %1088 = vector.extract_strided_slice %140 {offsets = [2, 0], sizes = [1, 8], strides = [1, 1]} : vector<4x8xf32> to vector<1x8xf32>
    %1089 = vector.extract_strided_slice %920 {offsets = [1, 0], sizes = [1, 8], strides = [1, 1]} : vector<4x8xf32> to vector<1x8xf32>
    %1090 = vector.extract_strided_slice %140 {offsets = [3, 0], sizes = [1, 8], strides = [1, 1]} : vector<4x8xf32> to vector<1x8xf32>
    %1091 = vector.extract_strided_slice %959 {offsets = [0, 0], sizes = [1, 8], strides = [1, 1]} : vector<4x8xf32> to vector<1x8xf32>
    %1092 = vector.extract_strided_slice %101 {offsets = [2, 0], sizes = [1, 8], strides = [1, 1]} : vector<4x8xf32> to vector<1x8xf32>
    %1093 = vector.extract_strided_slice %959 {offsets = [1, 0], sizes = [1, 8], strides = [1, 1]} : vector<4x8xf32> to vector<1x8xf32>
    %1094 = vector.extract_strided_slice %101 {offsets = [3, 0], sizes = [1, 8], strides = [1, 1]} : vector<4x8xf32> to vector<1x8xf32>
    %1095 = vector.extract_strided_slice %998 {offsets = [0, 0], sizes = [1, 8], strides = [1, 1]} : vector<4x8xf32> to vector<1x8xf32>
    %1096 = vector.extract_strided_slice %62 {offsets = [2, 0], sizes = [1, 8], strides = [1, 1]} : vector<4x8xf32> to vector<1x8xf32>
    %1097 = vector.extract_strided_slice %998 {offsets = [1, 0], sizes = [1, 8], strides = [1, 1]} : vector<4x8xf32> to vector<1x8xf32>
    %1098 = vector.extract_strided_slice %62 {offsets = [3, 0], sizes = [1, 8], strides = [1, 1]} : vector<4x8xf32> to vector<1x8xf32>
    %1099 = tpu.concatenate %999, %1000, %1001, %1002, %1003, %1004, %1005, %1006, %1007, %1008, %1009, %1010, %1011, %1012, %1013, %1014 in 1 : vector<1x8xf32>, vector<1x8xf32>, vector<1x8xf32>, vector<1x8xf32>, vector<1x8xf32>, vector<1x8xf32>, vector<1x8xf32>, vector<1x8xf32>, vector<1x8xf32>, vector<1x8xf32>, vector<1x8xf32>, vector<1x8xf32>, vector<1x8xf32>, vector<1x8xf32>, vector<1x8xf32>, vector<1x8xf32> -> vector<1x128xf32>
    %1100 = tpu.concatenate %1015, %1016, %1017, %1018, %1019, %1020, %1021, %1022, %1023, %1024, %1025, %1026, %1027, %1028, %1029, %1030 in 1 : vector<1x8xf32>, vector<1x8xf32>, vector<1x8xf32>, vector<1x8xf32>, vector<1x8xf32>, vector<1x8xf32>, vector<1x8xf32>, vector<1x8xf32>, vector<1x8xf32>, vector<1x8xf32>, vector<1x8xf32>, vector<1x8xf32>, vector<1x8xf32>, vector<1x8xf32>, vector<1x8xf32>, vector<1x8xf32> -> vector<1x128xf32>
    %1101 = tpu.concatenate %1031, %1032, %1033, %1034, %1035, %1036, %1037, %1038, %1039, %1040, %1041, %1042, %1043, %1044, %1045, %1046 in 1 : vector<1x8xf32>, vector<1x8xf32>, vector<1x8xf32>, vector<1x8xf32>, vector<1x8xf32>, vector<1x8xf32>, vector<1x8xf32>, vector<1x8xf32>, vector<1x8xf32>, vector<1x8xf32>, vector<1x8xf32>, vector<1x8xf32>, vector<1x8xf32>, vector<1x8xf32>, vector<1x8xf32>, vector<1x8xf32> -> vector<1x128xf32>
    %1102 = tpu.concatenate %1047, %1048 in 1 : vector<1x8xf32>, vector<1x8xf32> -> vector<1x16xf32>
    %1103 = tpu.concatenate %1099, %1100, %1101, %1102 in 1 : vector<1x128xf32>, vector<1x128xf32>, vector<1x128xf32>, vector<1x16xf32> -> vector<1x400xf32>
    %1104 = tpu.concatenate %1049, %1050, %1051, %1052, %1053, %1054, %1055, %1056, %1057, %1058, %1059, %1060, %1061, %1062, %1063, %1064 in 1 : vector<1x8xf32>, vector<1x8xf32>, vector<1x8xf32>, vector<1x8xf32>, vector<1x8xf32>, vector<1x8xf32>, vector<1x8xf32>, vector<1x8xf32>, vector<1x8xf32>, vector<1x8xf32>, vector<1x8xf32>, vector<1x8xf32>, vector<1x8xf32>, vector<1x8xf32>, vector<1x8xf32>, vector<1x8xf32> -> vector<1x128xf32>
    %1105 = tpu.concatenate %1065, %1066, %1067, %1068, %1069, %1070, %1071, %1072, %1073, %1074, %1075, %1076, %1077, %1078, %1079, %1080 in 1 : vector<1x8xf32>, vector<1x8xf32>, vector<1x8xf32>, vector<1x8xf32>, vector<1x8xf32>, vector<1x8xf32>, vector<1x8xf32>, vector<1x8xf32>, vector<1x8xf32>, vector<1x8xf32>, vector<1x8xf32>, vector<1x8xf32>, vector<1x8xf32>, vector<1x8xf32>, vector<1x8xf32>, vector<1x8xf32> -> vector<1x128xf32>
    %1106 = tpu.concatenate %1081, %1082, %1083, %1084, %1085, %1086, %1087, %1088, %1089, %1090, %1091, %1092, %1093, %1094, %1095, %1096 in 1 : vector<1x8xf32>, vector<1x8xf32>, vector<1x8xf32>, vector<1x8xf32>, vector<1x8xf32>, vector<1x8xf32>, vector<1x8xf32>, vector<1x8xf32>, vector<1x8xf32>, vector<1x8xf32>, vector<1x8xf32>, vector<1x8xf32>, vector<1x8xf32>, vector<1x8xf32>, vector<1x8xf32>, vector<1x8xf32> -> vector<1x128xf32>
    %1107 = tpu.concatenate %1097, %1098 in 1 : vector<1x8xf32>, vector<1x8xf32> -> vector<1x16xf32>
    %1108 = tpu.concatenate %1104, %1105, %1106, %1107 in 1 : vector<1x128xf32>, vector<1x128xf32>, vector<1x128xf32>, vector<1x16xf32> -> vector<1x400xf32>
    %1109 = tpu.concatenate %1103, %1108 in 0 : vector<1x400xf32>, vector<1x400xf32> -> vector<2x400xf32>
    %1110 = arith.truncf %1109 : vector<2x400xf32> to vector<2x400xbf16>
    %c0_263 = arith.constant 0 : index
    %c0_264 = arith.constant 0 : index
    %1111 = vector.load %arg4[%c0_263, %c0_264] : memref<400x16xbf16, #tpu.memory_space<vmem>>, vector<400x16xbf16>
    %cst_265 = arith.constant dense<0.000000e+00> : vector<2x16xf32>
    %1112 = tpu.matmul %1110, %1111, %cst_265 {dimension_numbers = #tpu.dot_dimension_numbers<[1], [0], [0], [1], [0, 0, 1, 1], [], []>} : vector<2x400xbf16>, vector<400x16xbf16>, vector<2x16xf32> -> vector<2x16xf32>
    %c0_266 = arith.constant 0 : index
    %c0_267 = arith.constant 0 : index
    %1113 = vector.load %arg5[%c0_266, %c0_267] : memref<1x16xf32, #tpu.memory_space<vmem>>, vector<1x16xf32>
    %1114 = vector.broadcast %1113 : vector<1x16xf32> to vector<2x16xf32>
    %1115 = arith.addf %1112, %1114 : vector<2x16xf32>
    %c0_268 = arith.constant 0 : index
    %c0_269 = arith.constant 0 : index
    %1116 = vector.load %arg6[%c0_268, %c0_269] : memref<2x16xf32, #tpu.memory_space<vmem>>, vector<2x16xf32>
    tpu.vector_store %arg6[%c0_268, %c0_269], %1115 {strides = array<i32>} : memref<2x16xf32, #tpu.memory_space<vmem>>, vector<2x16xf32>,
    return
  }
}

</mosaic_0001>

<llo_original>
// kernel: tile.18
$region0: #{tile.18}
  #allocation0 [shape = 's32[1]{0}', space=sflag, size = 0x4, scoped, tag = 'scoped memory for tile.18']
  %s0 = inlined_call_operand.vmem [shape: f32[8], index: 0, kind: input, shape index: {}]
  %s1 = inlined_call_operand.vmem [shape: f32[2,8], index: 1, kind: output, shape index: {}]
  // Predicated region
  $region2: #{tile.18} parent=0 // pred_check
    _
  $region3: #{tile.18} parent=0 // pred_check_branch
    %3 = sbr.rel (0) target = $region5
  $region4: #{tile.18} parent=0 // pred_region
    _
  $region5: #{tile.18} parent=0 // pred_fallthru
    _
  %v4 = vld [vmem:[%s0] ss:$0 sm:$0xff]
  %5 = vst [vmem:[%s1] sm:$0x3] %v4

// kernel: tile.0
$region0: #{tile.0}
  %s0 = inlined_call_operand.vmem [shape: f32[2,8], index: 0, kind: input, shape index: {}]
  %s1 = inlined_call_operand.vmem [shape: f32[16,1], index: 1, kind: output, shape index: {}]
  $region1: #{tile.0} parent=0
    #allocation0 [shape = 'u8[4096]{0}', space=vmem, size = 0x1000, scoped, tag = 'scoped mem for input reshape']
    %s3 = sshllo.u32 0, 2
    %v4 = vld [vmem:[%s0] sm:%s3]
    %5 = vst [vmem:[#allocation0] sm:%s3] %v4
    %v6 = vld [vmem:[#allocation0] sm:$0x3]
    %vm7 = vcmask 7168
    %8 = vst.msk [vmem:[%s1] ss:$8 sm:$0x3] %vm7, %v6
    %v9 = vld [vmem:[#allocation0] sm:$0x3]
    %10 = vrot.lane.b32.xlu0 %v9, 127
    %v11 = vpop.permute.xlu0 %10
    %vm12 = vcmask 7168
    %s13 = scalar_lea.vmem %s1, 1
    %14 = vst.msk [vmem:[%s13] ss:$8 sm:$0x3] %vm12, %v11
    %v15 = vld [vmem:[#allocation0] sm:$0x3]
    %16 = vrot.lane.b32.xlu0 %v15, 126
    %v17 = vpop.permute.xlu0 %16
    %vm18 = vcmask 7168
    %s19 = scalar_lea.vmem %s1, 2
    %20 = vst.msk [vmem:[%s19] ss:$8 sm:$0x3] %vm18, %v17
    %v21 = vld [vmem:[#allocation0] sm:$0x3]
    %22 = vrot.lane.b32.xlu0 %v21, 125
    %v23 = vpop.permute.xlu0 %22
    %vm24 = vcmask 7168
    %s25 = scalar_lea.vmem %s1, 3
    %26 = vst.msk [vmem:[%s25] ss:$8 sm:$0x3] %vm24, %v23
    %v27 = vld [vmem:[#allocation0] sm:$0x3]
    %28 = vrot.lane.b32.xlu0 %v27, 124
    %v29 = vpop.permute.xlu0 %28
    %vm30 = vcmask 7168
    %s31 = scalar_lea.vmem %s1, 4
    %32 = vst.msk [vmem:[%s31] ss:$8 sm:$0x3] %vm30, %v29
    %v33 = vld [vmem:[#allocation0] sm:$0x3]
    %34 = vrot.lane.b32.xlu0 %v33, 123
    %v35 = vpop.permute.xlu0 %34
    %vm36 = vcmask 7168
    %s37 = scalar_lea.vmem %s1, 5
    %38 = vst.msk [vmem:[%s37] ss:$8 sm:$0x3] %vm36, %v35
    %v39 = vld [vmem:[#allocation0] sm:$0x3]
    %40 = vrot.lane.b32.xlu0 %v39, 122
    %v41 = vpop.permute.xlu0 %40
    %vm42 = vcmask 7168
    %s43 = scalar_lea.vmem %s1, 6
    %44 = vst.msk [vmem:[%s43] ss:$8 sm:$0x3] %vm42, %v41
    %v45 = vld [vmem:[#allocation0] sm:$0x3]
    %46 = vrot.lane.b32.xlu0 %v45, 121
    %v47 = vpop.permute.xlu0 %46
    %vm48 = vcmask 7168
    %s49 = scalar_lea.vmem %s1, 7
    %50 = vst.msk [vmem:[%s49] ss:$8 sm:$0x3] %vm48, %v47

// kernel: model_forward.2
$region0: #{model_forward.2}
  #allocation0 [shape = 'u32[]', space=smem, size = 0x4, offset = 0x4, fixed_abs, tag = 'smem constant byte address 0x4 - core index']
  #allocation1 [shape = 'u32[144,128]{1,0:T(1,128)}', space=vmem, size = 0x12000, scoped, tag = 'internal scratch']
  %s0 = inlined_call_operand.vmem [shape: f32[8,256], index: 0, kind: input, shape index: {}]
  %s1 = inlined_call_operand.vmem [shape: bf16[16,24], index: 1, kind: input, shape index: {}]
  %s2 = inlined_call_operand.vmem [shape: f32[16,1], index: 2, kind: input, shape index: {}]
  %s3 = inlined_call_operand.vmem [shape: bf16[16,48], index: 3, kind: input, shape index: {}]
  %s4 = inlined_call_operand.vmem [shape: f32[16,1], index: 4, kind: input, shape index: {}]
  %s5 = inlined_call_operand.vmem [shape: bf16[16,48], index: 5, kind: input, shape index: {}]
  %s6 = inlined_call_operand.vmem [shape: f32[16,1], index: 6, kind: input, shape index: {}]
  %s7 = inlined_call_operand.vmem [shape: bf16[256,25], index: 7, kind: input, shape index: {}]
  %s8 = inlined_call_operand.vmem [shape: f32[16,25], index: 8, kind: output, shape index: {}]
  %s9 = sld [smem:[#allocation0]]
  $region42: #{model_forward.2} parent=0
    _
  %s11 = ssub.s32 1, %s9
  %s12 = scalar_select 0, %s11, %s9
  // Predicated region
  $region2: #{model_forward.2} parent=0 // pred_check
    _
  $region3: #{model_forward.2} parent=0 // pred_check_branch
    %14 = sbr.rel (0) target = $region5
  $region4: #{model_forward.2} parent=0 // pred_region
    _
  $region5: #{model_forward.2} parent=0 // pred_fallthru
    _
  // Predicated region
  $region6: #{model_forward.2} parent=0 // pred_check
    _
  $region7: #{model_forward.2} parent=0 // pred_check_branch
    %16 = sbr.rel (0) target = $region9
  $region8: #{model_forward.2} parent=0 // pred_region
    _
  $region9: #{model_forward.2} parent=0 // pred_fallthru
    _
  // Predicated region
  $region10: #{model_forward.2} parent=0 // pred_check
    _
  $region11: #{model_forward.2} parent=0 // pred_check_branch
    %18 = sbr.rel (0) target = $region13
  $region12: #{model_forward.2} parent=0 // pred_region
    _
  $region13: #{model_forward.2} parent=0 // pred_fallthru
    _
  // Predicated region
  $region14: #{model_forward.2} parent=0 // pred_check
    _
  $region15: #{model_forward.2} parent=0 // pred_check_branch
    %20 = sbr.rel (0) target = $region17
  $region16: #{model_forward.2} parent=0 // pred_region
    _
  $region17: #{model_forward.2} parent=0 // pred_fallthru
    _
  // Predicated region
  $region18: #{model_forward.2} parent=0 // pred_check
    _
  $region19: #{model_forward.2} parent=0 // pred_check_branch
    %22 = sbr.rel (0) target = $region21
  $region20: #{model_forward.2} parent=0 // pred_region
    _
  $region21: #{model_forward.2} parent=0 // pred_fallthru
    _
  // Predicated region
  $region22: #{model_forward.2} parent=0 // pred_check
    _
  $region23: #{model_forward.2} parent=0 // pred_check_branch
    %24 = sbr.rel (0) target = $region25
  $region24: #{model_forward.2} parent=0 // pred_region
    _
  $region25: #{model_forward.2} parent=0 // pred_fallthru
    _
  // Predicated region
  $region26: #{model_forward.2} parent=0 // pred_check
    _
  $region27: #{model_forward.2} parent=0 // pred_check_branch
    %26 = sbr.rel (0) target = $region29
  $region28: #{model_forward.2} parent=0 // pred_region
    _
  $region29: #{model_forward.2} parent=0 // pred_fallthru
    _
  // Predicated region
  $region30: #{model_forward.2} parent=0 // pred_check
    _
  $region31: #{model_forward.2} parent=0 // pred_check_branch
    %28 = sbr.rel (0) target = $region33
  $region32: #{model_forward.2} parent=0 // pred_region
    _
  $region33: #{model_forward.2} parent=0 // pred_fallthru
    _
  %v30 = vlaneseq
  %v31 = vand.u32 %v30, 127
  %v32 = vadd.s32 %v31, 128
  %v33 = vld [vmem:[%s0] sm:$0xff]
  %v34 = vld [vmem:[%s0 + $0x8] sm:$0xff]
  %vm35 = vcmp.ge.s32.totalorder %v31, 1
  %vm36 = vcmp.ge.s32.totalorder %v32, 1
  %v37 = vsel %vm35, 1, 0
  %v38 = vsel %vm36, 1, 0
  %v39 = vcvt.s32.f32 %v37
  %v40 = vcvt.s32.f32 %v38
  %vm41 = vcmp.lt.s32.totalorder %v31, 199
  %vm42 = vcmp.lt.s32.totalorder %v32, 199
  %v43 = vsel %vm41, 1, 0
  %v44 = vsel %vm42, 1, 0
  %v45 = vcvt.s32.f32 %v43
  %v46 = vcvt.s32.f32 %v44
  %47 = vrot.lane.b32.xlu0 %v33, 1
  %v48 = vpop.permute.xlu0 %47
  %49 = vrot.lane.b32.xlu0 %v34, 1
  %v50 = vpop.permute.xlu0 %49
  %vm51 = vcmp.lt.s32.totalorder %v31, 1
  %v52 = vsel %vm51, %v48, %v50
  %v53 = vsel %vm51, %v50, %v48
  %v54 = vmul.f32 %v53, %v39
  %v55 = vmul.f32 %v52, %v40
  %56 = vrot.lane.b32.xlu0 %v33, 127
  %v57 = vpop.permute.xlu0 %56
  %58 = vrot.lane.b32.xlu0 %v34, 127
  %v59 = vpop.permute.xlu0 %58
  %vm60 = vcmp.lt.s32.totalorder %v31, 127
  %v61 = vsel %vm60, %v57, %v59
  %v62 = vsel %vm60, %v59, %v57
  %v63 = vmul.f32 %v61, %v45
  %v64 = vmul.f32 %v62, %v46
  %v65 = vld [vmem:[%s1] sm:$0xf]
  %v66 = vld [vmem:[%s1 + $0x4] sm:$0xf]
  %v67 = vpack.c.bf16 %v33, %v54
  %v68 = vpack.c.bf16 %v34, %v55
  %v69 = vpack.c.bf16 %v63, %v63
  %v70 = vpack.c.bf16 %v64, %v64
  %v71 = vld [vmem:[%s2] sm:$0xff]
  %v72 = vld [vmem:[%s2 + $0x8] sm:$0xff]
  %74 = vset.pattern.permute.xlu0 0
  %75 = vperm.xlu0 %74, %v71
  %v76 = vpop.permute.xlu0 %75
  %79 = vset.pattern.permute.xlu0 0
  %80 = vperm.xlu0 %79, %v72
  %v81 = vpop.permute.xlu0 %80
  %v85 = vunpack.c.l.b16 %v65
  %v86 = vunpack.c.l.b16 %v66
  %v87 = vpack.c.b16 %v86, %v85
  %vm88 = vcmask 195584
  %v90 = vsel %vm88, %v87, 0
  %vm92 = vcmask 1043456
  %v94 = vsel %vm92, %v69, 0
  %v97 = vsel %vm92, %v70, 0
  %99 = vmatprep.subr.bf16.mxu0 %v68
  %100 = vmatpush1.bf16.msra.mxu0 %v67
  %101 = vmatprep.subr.bf16.mxu0 %v97
  %102 = vmatpush1.bf16.msra.mxu0 %v94
  %103 = vmatprep.subr.bf16.mxu0 0
  %104 = vmatpush1.bf16.msra.mxu0 0
  %105 = vmatprep.subr.bf16.mxu0 0
  %106 = vmatpush1.bf16.msra.mxu0 0
  %107 = vmatprep.subr.bf16.mxu0 0
  %108 = vmatpush1.bf16.msra.mxu0 0
  %109 = vmatprep.subr.bf16.mxu0 0
  %110 = vmatpush1.bf16.msra.mxu0 0
  %111 = vmatprep.subr.bf16.mxu0 0
  %112 = vmatpush1.bf16.msra.mxu0 0
  %113 = vmatprep.subr.bf16.mxu0 0
  %114 = vmatpush1.bf16.msra.mxu0 0
  %115 = vmatprep.subr.bf16.mxu0 0
  %116 = vmatpush1.bf16.msra.mxu0 0
  %117 = vmatprep.subr.bf16.mxu0 0
  %118 = vmatpush1.bf16.msra.mxu0 0
  %119 = vmatprep.subr.bf16.mxu0 0
  %120 = vmatpush1.bf16.msra.mxu0 0
  %121 = vmatprep.subr.bf16.mxu0 0
  %122 = vmatpush1.bf16.msra.mxu0 0
  %123 = vmatprep.subr.bf16.mxu0 0
  %124 = vmatpush1.bf16.msra.mxu0 0
  %125 = vmatprep.subr.bf16.mxu0 0
  %126 = vmatpush1.bf16.msra.mxu0 0
  %127 = vmatprep.subr.bf16.mxu0 0
  %128 = vmatpush1.bf16.msra.mxu0 0
  %129 = vmatprep.subr.bf16.mxu0 0
  %130 = vmatpush1.bf16.msra.mxu0 0
  %131 = vmatprep.mubr.bf16.mxu0 0
  %132 = vmatmul.mubr.bf16.gmra.mrb[0].mxu0 %v90
  %v133 = vpop.f32.mrb[0].mxu0
  %v134 = vadd.f32 %v76, %v133
  %v135 = vpop.f32.mrb[0].mxu0
  %v136 = vadd.f32 %v76, %v135
  %v137 = vpop.f32.mrb[0].mxu0
  %v138 = vadd.f32 %v81, %v137
  %v139 = vpop.f32.mrb[0].mxu0
  %v140 = vadd.f32 %v81, %v139
  %141 = vdwg.mxu0
  %vm142 = vcmp.gt.f32.partialorder %v134, 0.0
  %vm143 = vcmp.gt.f32.partialorder %v136, 0.0
  %vm144 = vcmp.gt.f32.partialorder %v138, 0.0
  %vm145 = vcmp.gt.f32.partialorder %v140, 0.0
  %v146 = vmin.f32 %v134, 0.0
  %v147 = vmin.f32 %v136, 0.0
  %v148 = vmin.f32 %v138, 0.0
  %v149 = vmin.f32 %v140, 0.0
  %v150 = vmul.f32 %v146, 1.442695
  %v151 = vpow.pop %v150
  %v152 = vmul.f32 %v147, 1.442695
  %v153 = vpow.pop %v152
  %v154 = vmul.f32 %v148, 1.442695
  %v155 = vpow.pop %v154
  %v156 = vmul.f32 %v149, 1.442695
  %v157 = vpow.pop %v156
  %v158 = vsub.f32 %v151, 1.0
  %v159 = vsub.f32 %v153, 1.0
  %v160 = vsub.f32 %v155, 1.0
  %v161 = vsub.f32 %v157, 1.0
  %v162 = vsel %vm142, %v134, %v158
  %v163 = vsel %vm143, %v136, %v159
  %v164 = vsel %vm144, %v138, %v160
  %v165 = vsel %vm145, %v140, %v161
  %166 = vrot.lane.b32.xlu0 %v162, 127
  %v167 = vpop.permute.xlu0 %166
  %168 = vrot.lane.b32.xlu0 %v164, 127
  %v169 = vpop.permute.xlu0 %168
  %170 = vrot.lane.b32.xlu0 %v163, 127
  %v171 = vpop.permute.xlu0 %170
  %172 = vrot.lane.b32.xlu0 %v165, 127
  %v173 = vpop.permute.xlu0 %172
  %v174 = vsel %vm60, %v167, %v171
  %v175 = vsel %vm60, %v169, %v173
  %v176 = vsel %vm60, %v171, %v167
  %v177 = vsel %vm60, %v173, %v169
  %v178 = vadd.f32 %v162, %v174
  %v179 = vadd.f32 %v163, %v176
  %v180 = vadd.f32 %v164, %v175
  %v181 = vadd.f32 %v165, %v177
  %v182 = vmul.f32 %v178, 0.5
  %v183 = vmul.f32 %v179, 0.5
  %v184 = vmul.f32 %v180, 0.5
  %v185 = vmul.f32 %v181, 0.5
  %vm186 = vcmp.ge.s32.totalorder %v31, 2
  %vm187 = vcmp.ge.s32.totalorder %v32, 2
  %v188 = vsel %vm186, 1, 0
  %v189 = vsel %vm187, 1, 0
  %v190 = vcvt.s32.f32 %v188
  %v191 = vcvt.s32.f32 %v189
  %vm192 = vcmp.lt.s32.totalorder %v31, 198
  %vm193 = vcmp.lt.s32.totalorder %v32, 198
  %v194 = vsel %vm192, 1, 0
  %v195 = vsel %vm193, 1, 0
  %v196 = vcvt.s32.f32 %v194
  %v197 = vcvt.s32.f32 %v195
  %198 = vrot.lane.b32.xlu0 %v182, 2
  %v199 = vpop.permute.xlu0 %198
  %200 = vrot.lane.b32.xlu0 %v184, 2
  %v201 = vpop.permute.xlu0 %200
  %202 = vrot.lane.b32.xlu0 %v183, 2
  %v203 = vpop.permute.xlu0 %202
  %204 = vrot.lane.b32.xlu0 %v185, 2
  %v205 = vpop.permute.xlu0 %204
  %vm206 = vcmp.lt.s32.totalorder %v31, 2
  %v207 = vsel %vm206, %v199, %v203
  %v208 = vsel %vm206, %v201, %v205
  %v209 = vsel %vm206, %v203, %v199
  %v210 = vsel %vm206, %v205, %v201
  %v211 = vmul.f32 %v209, %v190
  %v212 = vmul.f32 %v207, %v191
  %v213 = vmul.f32 %v210, %v190
  %v214 = vmul.f32 %v208, %v191
  %215 = vrot.lane.b32.xlu0 %v182, 126
  %v216 = vpop.permute.xlu0 %215
  %217 = vrot.lane.b32.xlu0 %v184, 126
  %v218 = vpop.permute.xlu0 %217
  %219 = vrot.lane.b32.xlu0 %v183, 126
  %v220 = vpop.permute.xlu0 %219
  %221 = vrot.lane.b32.xlu0 %v185, 126
  %v222 = vpop.permute.xlu0 %221
  %vm223 = vcmp.lt.s32.totalorder %v31, 126
  %v224 = vsel %vm223, %v216, %v220
  %v225 = vsel %vm223, %v218, %v222
  %v226 = vsel %vm223, %v220, %v216
  %v227 = vsel %vm223, %v222, %v218
  %v228 = vmul.f32 %v224, %v196
  %v229 = vmul.f32 %v226, %v197
  %v230 = vmul.f32 %v225, %v196
  %v231 = vmul.f32 %v227, %v197
  %v232 = vld [vmem:[%s3] sm:$0xf]
  %v233 = vld [vmem:[%s3 + $0x4] sm:$0xf]
  %v234 = vpack.c.bf16 %v213, %v211
  %v235 = vpack.c.bf16 %v214, %v212
  %v236 = vpack.c.bf16 %v184, %v182
  %v237 = vpack.c.bf16 %v185, %v183
  %v238 = vpack.c.bf16 %v230, %v228
  %v239 = vpack.c.bf16 %v231, %v229
  %v240 = vld [vmem:[%s4] sm:$0xff]
  %v241 = vld [vmem:[%s4 + $0x8] sm:$0xff]
  %243 = vset.pattern.permute.xlu0 0
  %244 = vperm.xlu0 %243, %v240
  %v245 = vpop.permute.xlu0 %244
  %248 = vset.pattern.permute.xlu0 0
  %249 = vperm.xlu0 %248, %v241
  %v250 = vpop.permute.xlu0 %249
  %v254 = vunpack.c.l.b16 %v232
  %v255 = vunpack.c.l.b16 %v233
  %v256 = vpack.c.b16 %v255, %v254
  %vm257 = vcmask 392192
  %v259 = vsel %vm257, %v256, 0
  %261 = vmatprep.subr.bf16.mxu0 %v235
  %262 = vmatpush1.bf16.msra.mxu0 %v234
  %263 = vmatprep.subr.bf16.mxu0 %v237
  %264 = vmatpush1.bf16.msra.mxu0 %v236
  %265 = vmatprep.subr.bf16.mxu0 %v239
  %266 = vmatpush1.bf16.msra.mxu0 %v238
  %267 = vmatprep.subr.bf16.mxu0 0
  %268 = vmatpush1.bf16.msra.mxu0 0
  %269 = vmatprep.subr.bf16.mxu0 0
  %270 = vmatpush1.bf16.msra.mxu0 0
  %271 = vmatprep.subr.bf16.mxu0 0
  %272 = vmatpush1.bf16.msra.mxu0 0
  %273 = vmatprep.subr.bf16.mxu0 0
  %274 = vmatpush1.bf16.msra.mxu0 0
  %275 = vmatprep.subr.bf16.mxu0 0
  %276 = vmatpush1.bf16.msra.mxu0 0
  %277 = vmatprep.subr.bf16.mxu0 0
  %278 = vmatpush1.bf16.msra.mxu0 0
  %279 = vmatprep.subr.bf16.mxu0 0
  %280 = vmatpush1.bf16.msra.mxu0 0
  %281 = vmatprep.subr.bf16.mxu0 0
  %282 = vmatpush1.bf16.msra.mxu0 0
  %283 = vmatprep.subr.bf16.mxu0 0
  %284 = vmatpush1.bf16.msra.mxu0 0
  %285 = vmatprep.subr.bf16.mxu0 0
  %286 = vmatpush1.bf16.msra.mxu0 0
  %287 = vmatprep.subr.bf16.mxu0 0
  %288 = vmatpush1.bf16.msra.mxu0 0
  %289 = vmatprep.subr.bf16.mxu0 0
  %290 = vmatpush1.bf16.msra.mxu0 0
  %291 = vmatprep.subr.bf16.mxu0 0
  %292 = vmatpush1.bf16.msra.mxu0 0
  %293 = vmatprep.mubr.bf16.mxu0 0
  %294 = vmatmul.mubr.bf16.gmra.mrb[0].mxu0 %v259
  %v295 = vpop.f32.mrb[0].mxu0
  %v296 = vadd.f32 %v245, %v295
  %v297 = vpop.f32.mrb[0].mxu0
  %v298 = vadd.f32 %v245, %v297
  %v299 = vpop.f32.mrb[0].mxu0
  %v300 = vadd.f32 %v250, %v299
  %v301 = vpop.f32.mrb[0].mxu0
  %v302 = vadd.f32 %v250, %v301
  %303 = vdwg.mxu0
  %vm304 = vcmp.gt.f32.partialorder %v296, 0.0
  %vm305 = vcmp.gt.f32.partialorder %v298, 0.0
  %vm306 = vcmp.gt.f32.partialorder %v300, 0.0
  %vm307 = vcmp.gt.f32.partialorder %v302, 0.0
  %v308 = vmin.f32 %v296, 0.0
  %v309 = vmin.f32 %v298, 0.0
  %v310 = vmin.f32 %v300, 0.0
  %v311 = vmin.f32 %v302, 0.0
  %v312 = vmul.f32 %v308, 1.442695
  %v313 = vpow.pop %v312
  %v314 = vmul.f32 %v309, 1.442695
  %v315 = vpow.pop %v314
  %v316 = vmul.f32 %v310, 1.442695
  %v317 = vpow.pop %v316
  %v318 = vmul.f32 %v311, 1.442695
  %v319 = vpow.pop %v318
  %v320 = vsub.f32 %v313, 1.0
  %v321 = vsub.f32 %v315, 1.0
  %v322 = vsub.f32 %v317, 1.0
  %v323 = vsub.f32 %v319, 1.0
  %v324 = vsel %vm304, %v296, %v320
  %v325 = vsel %vm305, %v298, %v321
  %v326 = vsel %vm306, %v300, %v322
  %v327 = vsel %vm307, %v302, %v323
  %328 = vrot.lane.b32.xlu0 %v324, 126
  %v329 = vpop.permute.xlu0 %328
  %330 = vrot.lane.b32.xlu0 %v326, 126
  %v331 = vpop.permute.xlu0 %330
  %332 = vrot.lane.b32.xlu0 %v325, 126
  %v333 = vpop.permute.xlu0 %332
  %334 = vrot.lane.b32.xlu0 %v327, 126
  %v335 = vpop.permute.xlu0 %334
  %v336 = vsel %vm223, %v329, %v333
  %v337 = vsel %vm223, %v331, %v335
  %v338 = vsel %vm223, %v333, %v329
  %v339 = vsel %vm223, %v335, %v331
  %v340 = vadd.f32 %v324, %v336
  %v341 = vadd.f32 %v325, %v338
  %v342 = vadd.f32 %v326, %v337
  %v343 = vadd.f32 %v327, %v339
  %v344 = vmul.f32 %v340, 0.5
  %v345 = vmul.f32 %v341, 0.5
  %v346 = vmul.f32 %v342, 0.5
  %v347 = vmul.f32 %v343, 0.5
  %vm348 = vcmp.ge.s32.totalorder %v31, 4
  %vm349 = vcmp.ge.s32.totalorder %v32, 4
  %v350 = vsel %vm348, 1, 0
  %v351 = vsel %vm349, 1, 0
  %v352 = vcvt.s32.f32 %v350
  %v353 = vcvt.s32.f32 %v351
  %vm354 = vcmp.lt.s32.totalorder %v31, 196
  %vm355 = vcmp.lt.s32.totalorder %v32, 196
  %v356 = vsel %vm354, 1, 0
  %v357 = vsel %vm355, 1, 0
  %v358 = vcvt.s32.f32 %v356
  %v359 = vcvt.s32.f32 %v357
  %360 = vrot.lane.b32.xlu0 %v344, 4
  %v361 = vpop.permute.xlu0 %360
  %362 = vrot.lane.b32.xlu0 %v346, 4
  %v363 = vpop.permute.xlu0 %362
  %364 = vrot.lane.b32.xlu0 %v345, 4
  %v365 = vpop.permute.xlu0 %364
  %366 = vrot.lane.b32.xlu0 %v347, 4
  %v367 = vpop.permute.xlu0 %366
  %vm368 = vcmp.lt.s32.totalorder %v31, 4
  %v369 = vsel %vm368, %v361, %v365
  %v370 = vsel %vm368, %v363, %v367
  %v371 = vsel %vm368, %v365, %v361
  %v372 = vsel %vm368, %v367, %v363
  %v373 = vmul.f32 %v371, %v352
  %v374 = vmul.f32 %v369, %v353
  %v375 = vmul.f32 %v372, %v352
  %v376 = vmul.f32 %v370, %v353
  %377 = vrot.lane.b32.xlu0 %v344, 124
  %v378 = vpop.permute.xlu0 %377
  %379 = vrot.lane.b32.xlu0 %v346, 124
  %v380 = vpop.permute.xlu0 %379
  %381 = vrot.lane.b32.xlu0 %v345, 124
  %v382 = vpop.permute.xlu0 %381
  %383 = vrot.lane.b32.xlu0 %v347, 124
  %v384 = vpop.permute.xlu0 %383
  %vm385 = vcmp.lt.s32.totalorder %v31, 124
  %v386 = vsel %vm385, %v378, %v382
  %v387 = vsel %vm385, %v380, %v384
  %v388 = vsel %vm385, %v382, %v378
  %v389 = vsel %vm385, %v384, %v380
  %v390 = vmul.f32 %v386, %v358
  %v391 = vmul.f32 %v388, %v359
  %v392 = vmul.f32 %v387, %v358
  %v393 = vmul.f32 %v389, %v359
  %v394 = vld [vmem:[%s5] sm:$0xf]
  %v395 = vld [vmem:[%s5 + $0x4] sm:$0xf]
  %v396 = vpack.c.bf16 %v375, %v373
  %v397 = vpack.c.bf16 %v376, %v374
  %v398 = vpack.c.bf16 %v346, %v344
  %v399 = vpack.c.bf16 %v347, %v345
  %v400 = vpack.c.bf16 %v392, %v390
  %v401 = vpack.c.bf16 %v393, %v391
  %v402 = vld [vmem:[%s6] sm:$0xff]
  %v403 = vld [vmem:[%s6 + $0x8] sm:$0xff]
  %405 = vset.pattern.permute.xlu0 0
  %406 = vperm.xlu0 %405, %v402
  %v407 = vpop.permute.xlu0 %406
  %410 = vset.pattern.permute.xlu0 0
  %411 = vperm.xlu0 %410, %v403
  %v412 = vpop.permute.xlu0 %411
  %v416 = vunpack.c.l.b16 %v394
  %v417 = vunpack.c.l.b16 %v395
  %v418 = vpack.c.b16 %v417, %v416
  %v420 = vsel %vm257, %v418, 0
  %422 = vmatprep.subr.bf16.mxu0 %v397
  %423 = vmatpush1.bf16.msra.mxu0 %v396
  %424 = vmatprep.subr.bf16.mxu0 %v399
  %425 = vmatpush1.bf16.msra.mxu0 %v398
  %426 = vmatprep.subr.bf16.mxu0 %v401
  %427 = vmatpush1.bf16.msra.mxu0 %v400
  %428 = vmatprep.subr.bf16.mxu0 0
  %429 = vmatpush1.bf16.msra.mxu0 0
  %430 = vmatprep.subr.bf16.mxu0 0
  %431 = vmatpush1.bf16.msra.mxu0 0
  %432 = vmatprep.subr.bf16.mxu0 0
  %433 = vmatpush1.bf16.msra.mxu0 0
  %434 = vmatprep.subr.bf16.mxu0 0
  %435 = vmatpush1.bf16.msra.mxu0 0
  %436 = vmatprep.subr.bf16.mxu0 0
  %437 = vmatpush1.bf16.msra.mxu0 0
  %438 = vmatprep.subr.bf16.mxu0 0
  %439 = vmatpush1.bf16.msra.mxu0 0
  %440 = vmatprep.subr.bf16.mxu0 0
  %441 = vmatpush1.bf16.msra.mxu0 0
  %442 = vmatprep.subr.bf16.mxu0 0
  %443 = vmatpush1.bf16.msra.mxu0 0
  %444 = vmatprep.subr.bf16.mxu0 0
  %445 = vmatpush1.bf16.msra.mxu0 0
  %446 = vmatprep.subr.bf16.mxu0 0
  %447 = vmatpush1.bf16.msra.mxu0 0
  %448 = vmatprep.subr.bf16.mxu0 0
  %449 = vmatpush1.bf16.msra.mxu0 0
  %450 = vmatprep.subr.bf16.mxu0 0
  %451 = vmatpush1.bf16.msra.mxu0 0
  %452 = vmatprep.subr.bf16.mxu0 0
  %453 = vmatpush1.bf16.msra.mxu0 0
  %454 = vmatprep.mubr.bf16.mxu0 0
  %455 = vmatmul.mubr.bf16.gmra.mrb[0].mxu0 %v420
  %v456 = vpop.f32.mrb[0].mxu0
  %v457 = vadd.f32 %v407, %v456
  %v458 = vpop.f32.mrb[0].mxu0
  %v459 = vadd.f32 %v407, %v458
  %v460 = vpop.f32.mrb[0].mxu0
  %v461 = vadd.f32 %v412, %v460
  %v462 = vpop.f32.mrb[0].mxu0
  %v463 = vadd.f32 %v412, %v462
  %464 = vdwg.mxu0
  %vm465 = vcmp.gt.f32.partialorder %v457, 0.0
  %vm466 = vcmp.gt.f32.partialorder %v459, 0.0
  %vm467 = vcmp.gt.f32.partialorder %v461, 0.0
  %vm468 = vcmp.gt.f32.partialorder %v463, 0.0
  %v469 = vmin.f32 %v457, 0.0
  %v470 = vmin.f32 %v459, 0.0
  %v471 = vmin.f32 %v461, 0.0
  %v472 = vmin.f32 %v463, 0.0
  %v473 = vmul.f32 %v469, 1.442695
  %v474 = vpow.pop %v473
  %v475 = vmul.f32 %v470, 1.442695
  %v476 = vpow.pop %v475
  %v477 = vmul.f32 %v471, 1.442695
  %v478 = vpow.pop %v477
  %v479 = vmul.f32 %v472, 1.442695
  %v480 = vpow.pop %v479
  %v481 = vsub.f32 %v474, 1.0
  %v482 = vsub.f32 %v476, 1.0
  %v483 = vsub.f32 %v478, 1.0
  %v484 = vsub.f32 %v480, 1.0
  %v485 = vsel %vm465, %v457, %v481
  %v486 = vsel %vm466, %v459, %v482
  %v487 = vsel %vm467, %v461, %v483
  %v488 = vsel %vm468, %v463, %v484
  %v489 = vpack.c.bf16 %v487, %v485
  %v490 = vpack.c.bf16 %v488, %v486
  %v491 = vld [vmem:[%s7] sm:$0xf]
  %v492 = vld [vmem:[%s7 + $0x4] sm:$0xf]
  %v493 = vld [vmem:[%s7 + $0x8] sm:$0xf]
  %v494 = vld [vmem:[%s7 + $0xc] sm:$0xf]
  %v495 = vld [vmem:[%s7 + $0x10] sm:$0xf]
  %v496 = vld [vmem:[%s7 + $0x14] sm:$0xf]
  %v497 = vld [vmem:[%s7 + $0x18] sm:$0xf]
  %v498 = vld [vmem:[%s7 + $0x1c] sm:$0xf]
  %v499 = vld [vmem:[%s7 + $0x20] sm:$0xf]
  %v500 = vld [vmem:[%s7 + $0x24] sm:$0xf]
  %v501 = vld [vmem:[%s7 + $0x28] sm:$0xf]
  %v502 = vld [vmem:[%s7 + $0x2c] sm:$0xf]
  %v503 = vld [vmem:[%s7 + $0x30] sm:$0xf]
  %v504 = vld [vmem:[%s7 + $0x34] sm:$0xf]
  %v505 = vld [vmem:[%s7 + $0x38] sm:$0xf]
  %v506 = vld [vmem:[%s7 + $0x3c] sm:$0xf]
  %v507 = vld [vmem:[%s7 + $0x40] sm:$0xf]
  %v508 = vld [vmem:[%s7 + $0x44] sm:$0xf]
  %v509 = vld [vmem:[%s7 + $0x48] sm:$0xf]
  %v510 = vld [vmem:[%s7 + $0x4c] sm:$0xf]
  %v511 = vld [vmem:[%s7 + $0x50] sm:$0xf]
  %v512 = vld [vmem:[%s7 + $0x54] sm:$0xf]
  %v513 = vld [vmem:[%s7 + $0x58] sm:$0xf]
  %v514 = vld [vmem:[%s7 + $0x5c] sm:$0xf]
  %v515 = vld [vmem:[%s7 + $0x60] sm:$0xf]
  %v516 = vld [vmem:[%s7 + $0x64] sm:$0xf]
  %v517 = vld [vmem:[%s7 + $0x68] sm:$0xf]
  %v518 = vld [vmem:[%s7 + $0x6c] sm:$0xf]
  %v519 = vld [vmem:[%s7 + $0x70] sm:$0xf]
  %v520 = vld [vmem:[%s7 + $0x74] sm:$0xf]
  %v521 = vld [vmem:[%s7 + $0x78] sm:$0xf]
  %v522 = vld [vmem:[%s7 + $0x7c] sm:$0xf]
  %v555 = vunpack.c.l.b16 %v491
  %v556 = vunpack.c.l.b16 %v492
  %v557 = vunpack.c.l.b16 %v493
  %v558 = vunpack.c.l.b16 %v494
  %v559 = vunpack.c.l.b16 %v495
  %v560 = vunpack.c.l.b16 %v496
  %v561 = vunpack.c.l.b16 %v497
  %v562 = vunpack.c.l.b16 %v498
  %v563 = vunpack.c.l.b16 %v499
  %v564 = vunpack.c.l.b16 %v500
  %v565 = vunpack.c.l.b16 %v501
  %v566 = vunpack.c.l.b16 %v502
  %v567 = vunpack.c.l.b16 %v503
  %v568 = vunpack.c.l.b16 %v504
  %v569 = vunpack.c.l.b16 %v505
  %v570 = vunpack.c.l.b16 %v506
  %v571 = vunpack.c.l.b16 %v507
  %v572 = vunpack.c.l.b16 %v508
  %v573 = vunpack.c.l.b16 %v509
  %v574 = vunpack.c.l.b16 %v510
  %v575 = vunpack.c.l.b16 %v511
  %v576 = vunpack.c.l.b16 %v512
  %v577 = vunpack.c.l.b16 %v513
  %v578 = vunpack.c.l.b16 %v514
  %v579 = vunpack.c.l.b16 %v515
  %v580 = vunpack.c.l.b16 %v516
  %v581 = vunpack.c.l.b16 %v517
  %v582 = vunpack.c.l.b16 %v518
  %v583 = vunpack.c.l.b16 %v519
  %v584 = vunpack.c.l.b16 %v520
  %v585 = vunpack.c.l.b16 %v521
  %v586 = vunpack.c.l.b16 %v522
  %v587 = vpack.c.b16 %v556, %v555
  %v588 = vpack.c.b16 %v558, %v557
  %v589 = vpack.c.b16 %v560, %v559
  %v590 = vpack.c.b16 %v562, %v561
  %v591 = vpack.c.b16 %v564, %v563
  %v592 = vpack.c.b16 %v566, %v565
  %v593 = vpack.c.b16 %v568, %v567
  %v594 = vpack.c.b16 %v570, %v569
  %v595 = vpack.c.b16 %v572, %v571
  %v596 = vpack.c.b16 %v574, %v573
  %v597 = vpack.c.b16 %v576, %v575
  %v598 = vpack.c.b16 %v578, %v577
  %v599 = vpack.c.b16 %v580, %v579
  %v600 = vpack.c.b16 %v582, %v581
  %v601 = vpack.c.b16 %v584, %v583
  %v602 = vpack.c.b16 %v586, %v585
  %619 = vmatprep.subr.bf16.mxu0 0
  %620 = vmatpush1.bf16.msra.mxu0 %v587
  %621 = vmatprep.subr.bf16.mxu0 0
  %622 = vmatpush1.bf16.msra.mxu0 %v588
  %623 = vmatprep.subr.bf16.mxu0 0
  %624 = vmatpush1.bf16.msra.mxu0 %v589
  %625 = vmatprep.subr.bf16.mxu0 0
  %626 = vmatpush1.bf16.msra.mxu0 %v590
  %627 = vmatprep.subr.bf16.mxu0 0
  %628 = vmatpush1.bf16.msra.mxu0 %v591
  %629 = vmatprep.subr.bf16.mxu0 0
  %630 = vmatpush1.bf16.msra.mxu0 %v592
  %631 = vmatprep.subr.bf16.mxu0 0
  %632 = vmatpush1.bf16.msra.mxu0 %v593
  %633 = vmatprep.subr.bf16.mxu0 0
  %634 = vmatpush1.bf16.msra.mxu0 %v594
  %635 = vmatprep.subr.bf16.mxu0 0
  %636 = vmatpush1.bf16.msra.mxu0 %v595
  %637 = vmatprep.subr.bf16.mxu0 0
  %638 = vmatpush1.bf16.msra.mxu0 %v596
  %639 = vmatprep.subr.bf16.mxu0 0
  %640 = vmatpush1.bf16.msra.mxu0 %v597
  %641 = vmatprep.subr.bf16.mxu0 0
  %642 = vmatpush1.bf16.msra.mxu0 %v598
  %643 = vmatprep.subr.bf16.mxu0 0
  %644 = vmatpush1.bf16.msra.mxu0 %v599
  %645 = vmatprep.subr.bf16.mxu0 0
  %646 = vmatpush1.bf16.msra.mxu0 %v600
  %647 = vmatprep.subr.bf16.mxu0 0
  %648 = vmatpush1.bf16.msra.mxu0 %v601
  %649 = vmatprep.subr.bf16.mxu0 0
  %650 = vmatpush1.bf16.msra.mxu0 %v602
  %651 = vmatprep.mubr.bf16.mxu0 %v490
  %652 = vmatmul.mubr.bf16.gmra.mrb[0].mxu0 %v489
  %v653 = vpop.f32.mrb[0].mxu0
  %v654 = vadd.f32 0.0, %v653
  %v655 = vpop.f32.mrb[0].mxu0
  %v656 = vpop.f32.mrb[0].mxu0
  %v657 = vadd.f32 0.0, %v656
  %v658 = vpop.f32.mrb[0].mxu0
  %659 = vdwg.mxu0
  %vm660 = vcmask 203776
  %661 = vst.msk [vmem:[%s8] sm:$0xff] %vm660, %v654
  %662 = vst.msk [vmem:[%s8 + $0x8] sm:$0xff] %vm660, %v657
  // Predicated region
  $region34: #{model_forward.2} parent=0 // pred_check
    _
  $region35: #{model_forward.2} parent=0 // pred_check_branch
    %664 = sbr.rel (0) target = $region37
  $region36: #{model_forward.2} parent=0 // pred_region
    _
  $region37: #{model_forward.2} parent=0 // pred_fallthru
    _
  // Predicated region
  $region38: #{model_forward.2} parent=0 // pred_check
    _
  $region39: #{model_forward.2} parent=0 // pred_check_branch
    %666 = sbr.rel (0) target = $region41
  $region40: #{model_forward.2} parent=0 // pred_region
    _
  $region41: #{model_forward.2} parent=0 // pred_fallthru
    _

// kernel: model_forward.3
$region0: #{model_forward.3}
  #allocation0 [shape = 'u32[]', space=smem, size = 0x4, offset = 0x4, fixed_abs, tag = 'smem constant byte address 0x4 - core index']
  #allocation1 [shape = 'u32[144,128]{1,0:T(1,128)}', space=vmem, size = 0x12000, scoped, tag = 'internal scratch']
  %s0 = inlined_call_operand.vmem [shape: f32[50,8], index: 0, kind: input, shape index: {}]
  %s1 = inlined_call_operand.vmem [shape: bf16[8,64], index: 1, kind: input, shape index: {}]
  %s2 = inlined_call_operand.vmem [shape: f32[1,64], index: 2, kind: input, shape index: {}]
  %s3 = inlined_call_operand.vmem [shape: bf16[16,32], index: 3, kind: input, shape index: {}]
  %s4 = inlined_call_operand.vmem [shape: bf16[400,16], index: 4, kind: input, shape index: {}]
  %s5 = inlined_call_operand.vmem [shape: f32[1,16], index: 5, kind: input, shape index: {}]
  %s6 = inlined_call_operand.hbm [shape: f32[2,16], index: 6, kind: output, shape index: {}]
  %s7 = sld [smem:[#allocation0]]
  $region34: #{model_forward.3} parent=0
    _
  %s9 = ssub.s32 1, %s7
  %s10 = scalar_select 0, %s9, %s7
  $region1: #{model_forward.3} parent=0
    #allocation2 [shape = 'u8[1024]{0}', space=vmem, size = 0x400, scoped, tag = 'output window, operand 0, single buffered']
    #allocation3 [shape = 's32[1]{0}', space=sflag, size = 0x4, scoped, tag = 'scoped memory for model_forward.3']
    %11 = vsyncpa [#allocation3], 0
    // Predicated region
    $region2: #{model_forward.3} parent=1 // pred_check
      _
    $region3: #{model_forward.3} parent=1 // pred_check_branch
      %13 = sbr.rel (0) target = $region5
    $region4: #{model_forward.3} parent=1 // pred_region
      _
    $region5: #{model_forward.3} parent=1 // pred_fallthru
      _
    // Predicated region
    $region6: #{model_forward.3} parent=1 // pred_check
      _
    $region7: #{model_forward.3} parent=1 // pred_check_branch
      %15 = sbr.rel (0) target = $region9
    $region8: #{model_forward.3} parent=1 // pred_region
      _
    $region9: #{model_forward.3} parent=1 // pred_fallthru
      _
    // Predicated region
    $region10: #{model_forward.3} parent=1 // pred_check
      _
    $region11: #{model_forward.3} parent=1 // pred_check_branch
      %17 = sbr.rel (0) target = $region13
    $region12: #{model_forward.3} parent=1 // pred_region
      _
    $region13: #{model_forward.3} parent=1 // pred_fallthru
      _
    // Predicated region
    $region14: #{model_forward.3} parent=1 // pred_check
      _
    $region15: #{model_forward.3} parent=1 // pred_check_branch
      %19 = sbr.rel (0) target = $region17
    $region16: #{model_forward.3} parent=1 // pred_region
      _
    $region17: #{model_forward.3} parent=1 // pred_fallthru
      _
    // Predicated region
    $region18: #{model_forward.3} parent=1 // pred_check
      _
    $region19: #{model_forward.3} parent=1 // pred_check_branch
      %21 = sbr.rel (0) target = $region21
    $region20: #{model_forward.3} parent=1 // pred_region
      _
    $region21: #{model_forward.3} parent=1 // pred_fallthru
      _
    // Predicated region
    $region22: #{model_forward.3} parent=1 // pred_check
      _
    $region23: #{model_forward.3} parent=1 // pred_check_branch
      %23 = sbr.rel (0) target = $region25
    $region24: #{model_forward.3} parent=1 // pred_region
      _
    $region25: #{model_forward.3} parent=1 // pred_fallthru
      _
    %v25 = vld [vmem:[%s0] sm:$0xff]
    %v26 = vld [vmem:[%s0 + $0x8] sm:$0xff]
    %v27 = vld [vmem:[%s0 + $0x10] sm:$0xff]
    %v28 = vld [vmem:[%s0 + $0x18] sm:$0xff]
    %v29 = vld [vmem:[%s0 + $0x20] sm:$0xff]
    %v30 = vld [vmem:[%s0 + $0x28] sm:$0xff]
    %v31 = vld [vmem:[%s0 + $0x30] sm:$0x3]
    %v32 = vpack.c.bf16 %v26, %v25
    %v33 = vpack.c.bf16 %v28, %v27
    %v34 = vpack.c.bf16 %v30, %v29
    %v35 = vpack.c.bf16 %v31, %v31
    %v36 = vld [vmem:[%s1] sm:$0xf]
    %v37 = vld [vmem:[%s2] sm:$0x1]
    %v39 = vlaneseq
    %v40 = vshrl.u32 %v39, 7
    %v41 = vsub.s32 0, %v40
    %v42 = vrot.slane %v37, %v41
    %vm44 = vcmask 64512
    %v46 = vsel %vm44, %v32, 0
    %v49 = vsel %vm44, %v33, 0
    %v52 = vsel %vm44, %v34, 0
    %v55 = vsel %vm44, %v35, 0
    %vm57 = vcmask 1043456
    %v59 = vsel %vm57, %v36, 0
    %61 = vmatprep.subr.bf16.mxu0 0
    %62 = vmatpush1.bf16.msra.mxu0 %v59
    %63 = vmatprep.subr.bf16.mxu0 0
    %64 = vmatpush1.bf16.msra.mxu0 0
    %65 = vmatprep.subr.bf16.mxu0 0
    %66 = vmatpush1.bf16.msra.mxu0 0
    %67 = vmatprep.subr.bf16.mxu0 0
    %68 = vmatpush1.bf16.msra.mxu0 0
    %69 = vmatprep.subr.bf16.mxu0 0
    %70 = vmatpush1.bf16.msra.mxu0 0
    %71 = vmatprep.subr.bf16.mxu0 0
    %72 = vmatpush1.bf16.msra.mxu0 0
    %73 = vmatprep.subr.bf16.mxu0 0
    %74 = vmatpush1.bf16.msra.mxu0 0
    %75 = vmatprep.subr.bf16.mxu0 0
    %76 = vmatpush1.bf16.msra.mxu0 0
    %77 = vmatprep.subr.bf16.mxu0 0
    %78 = vmatpush1.bf16.msra.mxu0 0
    %79 = vmatprep.subr.bf16.mxu0 0
    %80 = vmatpush1.bf16.msra.mxu0 0
    %81 = vmatprep.subr.bf16.mxu0 0
    %82 = vmatpush1.bf16.msra.mxu0 0
    %83 = vmatprep.subr.bf16.mxu0 0
    %84 = vmatpush1.bf16.msra.mxu0 0
    %85 = vmatprep.subr.bf16.mxu0 0
    %86 = vmatpush1.bf16.msra.mxu0 0
    %87 = vmatprep.subr.bf16.mxu0 0
    %88 = vmatpush1.bf16.msra.mxu0 0
    %89 = vmatprep.subr.bf16.mxu0 0
    %90 = vmatpush1.bf16.msra.mxu0 0
    %91 = vmatprep.subr.bf16.mxu0 0
    %92 = vmatpush1.bf16.msra.mxu0 0
    %93 = vmatprep.mubr.bf16.mxu0 0
    %94 = vmatmul.mubr.bf16.gmra.mrb[0].mxu0 %v46
    %v95 = vpop.f32.mrb[0].mxu0
    %v96 = vadd.f32 %v42, %v95
    %v97 = vpop.f32.mrb[0].mxu0
    %v98 = vpop.f32.mrb[0].mxu0
    %v99 = vadd.f32 %v42, %v98
    %v100 = vpop.f32.mrb[0].mxu0
    %101 = vmatprep.mubr.bf16.mxu0 0
    %102 = vmatmul.mubr.bf16.gmra.mrb[0].mxu0 %v49
    %v103 = vpop.f32.mrb[0].mxu0
    %v104 = vadd.f32 %v42, %v103
    %v105 = vpop.f32.mrb[0].mxu0
    %v106 = vpop.f32.mrb[0].mxu0
    %v107 = vadd.f32 %v42, %v106
    %v108 = vpop.f32.mrb[0].mxu0
    %109 = vmatprep.mubr.bf16.mxu0 0
    %110 = vmatmul.mubr.bf16.gmra.mrb[0].mxu0 %v52
    %v111 = vpop.f32.mrb[0].mxu0
    %v112 = vadd.f32 %v42, %v111
    %v113 = vpop.f32.mrb[0].mxu0
    %v114 = vpop.f32.mrb[0].mxu0
    %v115 = vadd.f32 %v42, %v114
    %v116 = vpop.f32.mrb[0].mxu0
    %117 = vmatprep.mubr.bf16.mxu0 0
    %118 = vmatmul.mubr.bf16.gmra.mrb[0].mxu0 %v55
    %v119 = vpop.f32.mrb[0].mxu0
    %v120 = vadd.f32 %v42, %v119
    %v121 = vpop.f32.mrb[0].mxu0
    %v122 = vpop.f32.mrb[0].mxu0
    %v123 = vpop.f32.mrb[0].mxu0
    %124 = vdwg.mxu0
    %v125 = vld [vmem:[%s3] sm:$0xf]
    %v126 = vld [vmem:[%s3 + $0x4] sm:$0xf]
    %v127 = vlaneseq
    %v128 = vshrl.u32 %v127, 7
    %v129 = vlaneseq
    %v130 = vand.u32 %v129, 127
    %vm131 = vcmp.lt.s32.totalorder %v128, 2
    %vm132 = vcmp.lt.s32.totalorder %v130, 8
    %vm133 = vmand %vm131, %vm132
    %vm134 = vcmp.ge.s32.totalorder %v128, 2
    %vm135 = vcmp.ge.s32.totalorder %v130, 8
    %vm136 = vmand %vm134, %vm135
    %vm137 = vmor %vm133, %vm136
    %v138 = vsel %vm137, 1.0, 0.0
    %v140 = vrot.slane %v120, 6
    %141 = vrot.lane.b32.xlu0 %v140, 96
    %v142 = vpop.permute.xlu0 %141
    %vm144 = vcmask 1041408
    %v145 = vsel %vm144, %v96, %v142
    %v148 = vunpack.c.l.b16 %v125
    %v149 = vunpack.c.l.b16 %v126
    %v150 = vpack.c.b16 %v149, %v148
    %vm152 = vcmask 130048
    %v154 = vsel %vm152, 0, 0
    %156 = vmatprep.subr.bf16.mxu0 0
    %157 = vmatpush1.bf16.msra.mxu0 %v150
    %158 = vmatprep.subr.bf16.mxu0 0
    %159 = vmatpush1.bf16.msra.mxu0 0
    %160 = vmatprep.subr.bf16.mxu0 0
    %161 = vmatpush1.bf16.msra.mxu0 0
    %162 = vmatprep.subr.bf16.mxu0 0
    %163 = vmatpush1.bf16.msra.mxu0 0
    %164 = vmatprep.subr.bf16.mxu0 0
    %165 = vmatpush1.bf16.msra.mxu0 0
    %166 = vmatprep.subr.bf16.mxu0 0
    %167 = vmatpush1.bf16.msra.mxu0 0
    %168 = vmatprep.subr.bf16.mxu0 0
    %169 = vmatpush1.bf16.msra.mxu0 0
    %170 = vmatprep.subr.bf16.mxu0 0
    %171 = vmatpush1.bf16.msra.mxu0 0
    %172 = vmatprep.subr.bf16.mxu0 0
    %173 = vmatpush1.bf16.msra.mxu0 0
    %174 = vmatprep.subr.bf16.mxu0 0
    %175 = vmatpush1.bf16.msra.mxu0 0
    %176 = vmatprep.subr.bf16.mxu0 0
    %177 = vmatpush1.bf16.msra.mxu0 0
    %178 = vmatprep.subr.bf16.mxu0 0
    %179 = vmatpush1.bf16.msra.mxu0 0
    %180 = vmatprep.subr.bf16.mxu0 0
    %181 = vmatpush1.bf16.msra.mxu0 0
    %182 = vmatprep.subr.bf16.mxu0 0
    %183 = vmatpush1.bf16.msra.mxu0 0
    %184 = vmatprep.subr.bf16.mxu0 0
    %185 = vmatpush1.bf16.msra.mxu0 0
    %186 = vmatprep.subr.bf16.mxu0 0
    %187 = vmatpush1.bf16.msra.mxu0 0
    %188 = vmatprep.mubr.bf16.mxu0 0
    %189 = vmatmul.mubr.bf16.gmra.mrb[0].mxu0 %v154
    %v190 = vpop.f32.mrb[0].mxu0
    %v191 = vadd.f32 0.0, %v190
    %v192 = vpop.f32.mrb[0].mxu0
    %v193 = vpop.f32.mrb[0].mxu0
    %v194 = vpop.f32.mrb[0].mxu0
    %195 = vdwg.mxu0
    %v196 = vadd.f32 %v145, %v191
    %v197 = vmul.f32 %v196, 0.5
    %v198 = vtanh.pop %v197
    %v199 = vmul.f32 %v198, 0.5
    %v200 = vadd.f32 %v199, 0.5
    %v201 = vtanh.pop %v196
    %v202 = vmul.f32 %v200, 0.0
    %204 = vrot.lane.b32.xlu0 %v201, 112
    %v205 = vpop.permute.xlu0 %204
    %v207 = vmul.f32 %v200, %v205
    %209 = vrot.lane.b32.xlu0 %v207, 8
    %v210 = vpop.permute.xlu0 %209
    %v212 = vadd.f32 %v202, %v210
    %v213 = vtanh.pop %v212
    %215 = vrot.lane.b32.xlu0 %v213, 16
    %v216 = vpop.permute.xlu0 %215
    %v218 = vmul.f32 %v200, %v216
    %220 = vrot.lane.b32.xlu0 %v218, 104
    %v221 = vpop.permute.xlu0 %220
    %223 = vrot.lane.b32.xlu0 %v218, 112
    %v224 = vpop.permute.xlu0 %223
    %v226 = vsel %vm44, %v221, %v224
    %v227 = vmul.f32 %v226, %v138
    %v229 = vrot.slane %v96, 2
    %v232 = vrot.slane %v115, 4
    %233 = vrot.lane.b32.xlu0 %v232, 96
    %v234 = vpop.permute.xlu0 %233
    %v236 = vsel %vm144, %v229, %v234
    %v237 = vpack.c.bf16 %v227, %v227
    %v239 = vsel %vm152, %v237, 0
    %241 = vmatprep.subr.bf16.mxu0 0
    %242 = vmatpush1.bf16.msra.mxu0 %v150
    %243 = vmatprep.subr.bf16.mxu0 0
    %244 = vmatpush1.bf16.msra.mxu0 0
    %245 = vmatprep.subr.bf16.mxu0 0
    %246 = vmatpush1.bf16.msra.mxu0 0
    %247 = vmatprep.subr.bf16.mxu0 0
    %248 = vmatpush1.bf16.msra.mxu0 0
    %249 = vmatprep.subr.bf16.mxu0 0
    %250 = vmatpush1.bf16.msra.mxu0 0
    %251 = vmatprep.subr.bf16.mxu0 0
    %252 = vmatpush1.bf16.msra.mxu0 0
    %253 = vmatprep.subr.bf16.mxu0 0
    %254 = vmatpush1.bf16.msra.mxu0 0
    %255 = vmatprep.subr.bf16.mxu0 0
    %256 = vmatpush1.bf16.msra.mxu0 0
    %257 = vmatprep.subr.bf16.mxu0 0
    %258 = vmatpush1.bf16.msra.mxu0 0
    %259 = vmatprep.subr.bf16.mxu0 0
    %260 = vmatpush1.bf16.msra.mxu0 0
    %261 = vmatprep.subr.bf16.mxu0 0
    %262 = vmatpush1.bf16.msra.mxu0 0
    %263 = vmatprep.subr.bf16.mxu0 0
    %264 = vmatpush1.bf16.msra.mxu0 0
    %265 = vmatprep.subr.bf16.mxu0 0
    %266 = vmatpush1.bf16.msra.mxu0 0
    %267 = vmatprep.subr.bf16.mxu0 0
    %268 = vmatpush1.bf16.msra.mxu0 0
    %269 = vmatprep.subr.bf16.mxu0 0
    %270 = vmatpush1.bf16.msra.mxu0 0
    %271 = vmatprep.subr.bf16.mxu0 0
    %272 = vmatpush1.bf16.msra.mxu0 0
    %273 = vmatprep.mubr.bf16.mxu0 0
    %274 = vmatmul.mubr.bf16.gmra.mrb[0].mxu0 %v239
    %v275 = vpop.f32.mrb[0].mxu0
    %v276 = vadd.f32 0.0, %v275
    %v277 = vpop.f32.mrb[0].mxu0
    %v278 = vpop.f32.mrb[0].mxu0
    %v279 = vpop.f32.mrb[0].mxu0
    %280 = vdwg.mxu0
    %v281 = vadd.f32 %v236, %v276
    %v282 = vmul.f32 %v281, 0.5
    %v283 = vtanh.pop %v282
    %v284 = vmul.f32 %v283, 0.5
    %v285 = vadd.f32 %v284, 0.5
    %v286 = vtanh.pop %v281
    %v287 = vmul.f32 %v285, %v212
    %289 = vrot.lane.b32.xlu0 %v286, 112
    %v290 = vpop.permute.xlu0 %289
    %v292 = vmul.f32 %v285, %v290
    %294 = vrot.lane.b32.xlu0 %v292, 8
    %v295 = vpop.permute.xlu0 %294
    %v297 = vadd.f32 %v287, %v295
    %v298 = vtanh.pop %v297
    %300 = vrot.lane.b32.xlu0 %v298, 16
    %v301 = vpop.permute.xlu0 %300
    %v303 = vmul.f32 %v285, %v301
    %305 = vrot.lane.b32.xlu0 %v303, 104
    %v306 = vpop.permute.xlu0 %305
    %308 = vrot.lane.b32.xlu0 %v303, 112
    %v309 = vpop.permute.xlu0 %308
    %v311 = vsel %vm44, %v306, %v309
    %v312 = vmul.f32 %v311, %v138
    %v313 = vrot.slane %v96, 4
    %v315 = vrot.slane %v115, 2
    %316 = vrot.lane.b32.xlu0 %v315, 96
    %v317 = vpop.permute.xlu0 %316
    %v319 = vsel %vm144, %v313, %v317
    %v320 = vpack.c.bf16 %v312, %v312
    %v322 = vsel %vm152, %v320, 0
    %324 = vmatprep.subr.bf16.mxu0 0
    %325 = vmatpush1.bf16.msra.mxu0 %v150
    %326 = vmatprep.subr.bf16.mxu0 0
    %327 = vmatpush1.bf16.msra.mxu0 0
    %328 = vmatprep.subr.bf16.mxu0 0
    %329 = vmatpush1.bf16.msra.mxu0 0
    %330 = vmatprep.subr.bf16.mxu0 0
    %331 = vmatpush1.bf16.msra.mxu0 0
    %332 = vmatprep.subr.bf16.mxu0 0
    %333 = vmatpush1.bf16.msra.mxu0 0
    %334 = vmatprep.subr.bf16.mxu0 0
    %335 = vmatpush1.bf16.msra.mxu0 0
    %336 = vmatprep.subr.bf16.mxu0 0
    %337 = vmatpush1.bf16.msra.mxu0 0
    %338 = vmatprep.subr.bf16.mxu0 0
    %339 = vmatpush1.bf16.msra.mxu0 0
    %340 = vmatprep.subr.bf16.mxu0 0
    %341 = vmatpush1.bf16.msra.mxu0 0
    %342 = vmatprep.subr.bf16.mxu0 0
    %343 = vmatpush1.bf16.msra.mxu0 0
    %344 = vmatprep.subr.bf16.mxu0 0
    %345 = vmatpush1.bf16.msra.mxu0 0
    %346 = vmatprep.subr.bf16.mxu0 0
    %347 = vmatpush1.bf16.msra.mxu0 0
    %348 = vmatprep.subr.bf16.mxu0 0
    %349 = vmatpush1.bf16.msra.mxu0 0
    %350 = vmatprep.subr.bf16.mxu0 0
    %351 = vmatpush1.bf16.msra.mxu0 0
    %352 = vmatprep.subr.bf16.mxu0 0
    %353 = vmatpush1.bf16.msra.mxu0 0
    %354 = vmatprep.subr.bf16.mxu0 0
    %355 = vmatpush1.bf16.msra.mxu0 0
    %356 = vmatprep.mubr.bf16.mxu0 0
    %357 = vmatmul.mubr.bf16.gmra.mrb[0].mxu0 %v322
    %v358 = vpop.f32.mrb[0].mxu0
    %v359 = vadd.f32 0.0, %v358
    %v360 = vpop.f32.mrb[0].mxu0
    %v361 = vpop.f32.mrb[0].mxu0
    %v362 = vpop.f32.mrb[0].mxu0
    %363 = vdwg.mxu0
    %v364 = vadd.f32 %v319, %v359
    %v365 = vmul.f32 %v364, 0.5
    %v366 = vtanh.pop %v365
    %v367 = vmul.f32 %v366, 0.5
    %v368 = vadd.f32 %v367, 0.5
    %v369 = vtanh.pop %v364
    %v370 = vmul.f32 %v368, %v297
    %372 = vrot.lane.b32.xlu0 %v369, 112
    %v373 = vpop.permute.xlu0 %372
    %v375 = vmul.f32 %v368, %v373
    %377 = vrot.lane.b32.xlu0 %v375, 8
    %v378 = vpop.permute.xlu0 %377
    %v380 = vadd.f32 %v370, %v378
    %v381 = vtanh.pop %v380
    %383 = vrot.lane.b32.xlu0 %v381, 16
    %v384 = vpop.permute.xlu0 %383
    %v386 = vmul.f32 %v368, %v384
    %388 = vrot.lane.b32.xlu0 %v386, 104
    %v389 = vpop.permute.xlu0 %388
    %391 = vrot.lane.b32.xlu0 %v386, 112
    %v392 = vpop.permute.xlu0 %391
    %v394 = vsel %vm44, %v389, %v392
    %v395 = vmul.f32 %v394, %v138
    %v396 = vrot.slane %v96, 6
    %398 = vrot.lane.b32.xlu0 %v115, 96
    %v399 = vpop.permute.xlu0 %398
    %v401 = vsel %vm144, %v396, %v399
    %v402 = vpack.c.bf16 %v395, %v395
    %v404 = vsel %vm152, %v402, 0
    %406 = vmatprep.subr.bf16.mxu0 0
    %407 = vmatpush1.bf16.msra.mxu0 %v150
    %408 = vmatprep.subr.bf16.mxu0 0
    %409 = vmatpush1.bf16.msra.mxu0 0
    %410 = vmatprep.subr.bf16.mxu0 0
    %411 = vmatpush1.bf16.msra.mxu0 0
    %412 = vmatprep.subr.bf16.mxu0 0
    %413 = vmatpush1.bf16.msra.mxu0 0
    %414 = vmatprep.subr.bf16.mxu0 0
    %415 = vmatpush1.bf16.msra.mxu0 0
    %416 = vmatprep.subr.bf16.mxu0 0
    %417 = vmatpush1.bf16.msra.mxu0 0
    %418 = vmatprep.subr.bf16.mxu0 0
    %419 = vmatpush1.bf16.msra.mxu0 0
    %420 = vmatprep.subr.bf16.mxu0 0
    %421 = vmatpush1.bf16.msra.mxu0 0
    %422 = vmatprep.subr.bf16.mxu0 0
    %423 = vmatpush1.bf16.msra.mxu0 0
    %424 = vmatprep.subr.bf16.mxu0 0
    %425 = vmatpush1.bf16.msra.mxu0 0
    %426 = vmatprep.subr.bf16.mxu0 0
    %427 = vmatpush1.bf16.msra.mxu0 0
    %428 = vmatprep.subr.bf16.mxu0 0
    %429 = vmatpush1.bf16.msra.mxu0 0
    %430 = vmatprep.subr.bf16.mxu0 0
    %431 = vmatpush1.bf16.msra.mxu0 0
    %432 = vmatprep.subr.bf16.mxu0 0
    %433 = vmatpush1.bf16.msra.mxu0 0
    %434 = vmatprep.subr.bf16.mxu0 0
    %435 = vmatpush1.bf16.msra.mxu0 0
    %436 = vmatprep.subr.bf16.mxu0 0
    %437 = vmatpush1.bf16.msra.mxu0 0
    %438 = vmatprep.mubr.bf16.mxu0 0
    %439 = vmatmul.mubr.bf16.gmra.mrb[0].mxu0 %v404
    %v440 = vpop.f32.mrb[0].mxu0
    %v441 = vadd.f32 0.0, %v440
    %v442 = vpop.f32.mrb[0].mxu0
    %v443 = vpop.f32.mrb[0].mxu0
    %v444 = vpop.f32.mrb[0].mxu0
    %445 = vdwg.mxu0
    %v446 = vadd.f32 %v401, %v441
    %v447 = vmul.f32 %v446, 0.5
    %v448 = vtanh.pop %v447
    %v449 = vmul.f32 %v448, 0.5
    %v450 = vadd.f32 %v449, 0.5
    %v451 = vtanh.pop %v446
    %v452 = vmul.f32 %v450, %v380
    %454 = vrot.lane.b32.xlu0 %v451, 112
    %v455 = vpop.permute.xlu0 %454
    %v457 = vmul.f32 %v450, %v455
    %459 = vrot.lane.b32.xlu0 %v457, 8
    %v460 = vpop.permute.xlu0 %459
    %v462 = vadd.f32 %v452, %v460
    %v463 = vtanh.pop %v462
    %465 = vrot.lane.b32.xlu0 %v463, 16
    %v466 = vpop.permute.xlu0 %465
    %v468 = vmul.f32 %v450, %v466
    %470 = vrot.lane.b32.xlu0 %v468, 104
    %v471 = vpop.permute.xlu0 %470
    %473 = vrot.lane.b32.xlu0 %v468, 112
    %v474 = vpop.permute.xlu0 %473
    %v476 = vsel %vm44, %v471, %v474
    %v477 = vmul.f32 %v476, %v138
    %v478 = vrot.slane %v115, 6
    %479 = vrot.lane.b32.xlu0 %v478, 96
    %v480 = vpop.permute.xlu0 %479
    %v482 = vsel %vm144, %v99, %v480
    %v483 = vpack.c.bf16 %v477, %v477
    %v485 = vsel %vm152, %v483, 0
    %487 = vmatprep.subr.bf16.mxu0 0
    %488 = vmatpush1.bf16.msra.mxu0 %v150
    %489 = vmatprep.subr.bf16.mxu0 0
    %490 = vmatpush1.bf16.msra.mxu0 0
    %491 = vmatprep.subr.bf16.mxu0 0
    %492 = vmatpush1.bf16.msra.mxu0 0
    %493 = vmatprep.subr.bf16.mxu0 0
    %494 = vmatpush1.bf16.msra.mxu0 0
    %495 = vmatprep.subr.bf16.mxu0 0
    %496 = vmatpush1.bf16.msra.mxu0 0
    %497 = vmatprep.subr.bf16.mxu0 0
    %498 = vmatpush1.bf16.msra.mxu0 0
    %499 = vmatprep.subr.bf16.mxu0 0
    %500 = vmatpush1.bf16.msra.mxu0 0
    %501 = vmatprep.subr.bf16.mxu0 0
    %502 = vmatpush1.bf16.msra.mxu0 0
    %503 = vmatprep.subr.bf16.mxu0 0
    %504 = vmatpush1.bf16.msra.mxu0 0
    %505 = vmatprep.subr.bf16.mxu0 0
    %506 = vmatpush1.bf16.msra.mxu0 0
    %507 = vmatprep.subr.bf16.mxu0 0
    %508 = vmatpush1.bf16.msra.mxu0 0
    %509 = vmatprep.subr.bf16.mxu0 0
    %510 = vmatpush1.bf16.msra.mxu0 0
    %511 = vmatprep.subr.bf16.mxu0 0
    %512 = vmatpush1.bf16.msra.mxu0 0
    %513 = vmatprep.subr.bf16.mxu0 0
    %514 = vmatpush1.bf16.msra.mxu0 0
    %515 = vmatprep.subr.bf16.mxu0 0
    %516 = vmatpush1.bf16.msra.mxu0 0
    %517 = vmatprep.subr.bf16.mxu0 0
    %518 = vmatpush1.bf16.msra.mxu0 0
    %519 = vmatprep.mubr.bf16.mxu0 0
    %520 = vmatmul.mubr.bf16.gmra.mrb[0].mxu0 %v485
    %v521 = vpop.f32.mrb[0].mxu0
    %v522 = vadd.f32 0.0, %v521
    %v523 = vpop.f32.mrb[0].mxu0
    %v524 = vpop.f32.mrb[0].mxu0
    %v525 = vpop.f32.mrb[0].mxu0
    %526 = vdwg.mxu0
    %v527 = vadd.f32 %v482, %v522
    %v528 = vmul.f32 %v527, 0.5
    %v529 = vtanh.pop %v528
    %v530 = vmul.f32 %v529, 0.5
    %v531 = vadd.f32 %v530, 0.5
    %v532 = vtanh.pop %v527
    %v533 = vmul.f32 %v531, %v462
    %535 = vrot.lane.b32.xlu0 %v532, 112
    %v536 = vpop.permute.xlu0 %535
    %v538 = vmul.f32 %v531, %v536
    %540 = vrot.lane.b32.xlu0 %v538, 8
    %v541 = vpop.permute.xlu0 %540
    %v543 = vadd.f32 %v533, %v541
    %v544 = vtanh.pop %v543
    %546 = vrot.lane.b32.xlu0 %v544, 16
    %v547 = vpop.permute.xlu0 %546
    %v549 = vmul.f32 %v531, %v547
    %551 = vrot.lane.b32.xlu0 %v549, 104
    %v552 = vpop.permute.xlu0 %551
    %554 = vrot.lane.b32.xlu0 %v549, 112
    %v555 = vpop.permute.xlu0 %554
    %v557 = vsel %vm44, %v552, %v555
    %v558 = vmul.f32 %v557, %v138
    %v560 = vrot.slane %v99, 2
    %v563 = vrot.slane %v112, 4
    %564 = vrot.lane.b32.xlu0 %v563, 96
    %v565 = vpop.permute.xlu0 %564
    %v567 = vsel %vm144, %v560, %v565
    %v568 = vpack.c.bf16 %v558, %v558
    %v570 = vsel %vm152, %v568, 0
    %572 = vmatprep.subr.bf16.mxu0 0
    %573 = vmatpush1.bf16.msra.mxu0 %v150
    %574 = vmatprep.subr.bf16.mxu0 0
    %575 = vmatpush1.bf16.msra.mxu0 0
    %576 = vmatprep.subr.bf16.mxu0 0
    %577 = vmatpush1.bf16.msra.mxu0 0
    %578 = vmatprep.subr.bf16.mxu0 0
    %579 = vmatpush1.bf16.msra.mxu0 0
    %580 = vmatprep.subr.bf16.mxu0 0
    %581 = vmatpush1.bf16.msra.mxu0 0
    %582 = vmatprep.subr.bf16.mxu0 0
    %583 = vmatpush1.bf16.msra.mxu0 0
    %584 = vmatprep.subr.bf16.mxu0 0
    %585 = vmatpush1.bf16.msra.mxu0 0
    %586 = vmatprep.subr.bf16.mxu0 0
    %587 = vmatpush1.bf16.msra.mxu0 0
    %588 = vmatprep.subr.bf16.mxu0 0
    %589 = vmatpush1.bf16.msra.mxu0 0
    %590 = vmatprep.subr.bf16.mxu0 0
    %591 = vmatpush1.bf16.msra.mxu0 0
    %592 = vmatprep.subr.bf16.mxu0 0
    %593 = vmatpush1.bf16.msra.mxu0 0
    %594 = vmatprep.subr.bf16.mxu0 0
    %595 = vmatpush1.bf16.msra.mxu0 0
    %596 = vmatprep.subr.bf16.mxu0 0
    %597 = vmatpush1.bf16.msra.mxu0 0
    %598 = vmatprep.subr.bf16.mxu0 0
    %599 = vmatpush1.bf16.msra.mxu0 0
    %600 = vmatprep.subr.bf16.mxu0 0
    %601 = vmatpush1.bf16.msra.mxu0 0
    %602 = vmatprep.subr.bf16.mxu0 0
    %603 = vmatpush1.bf16.msra.mxu0 0
    %604 = vmatprep.mubr.bf16.mxu0 0
    %605 = vmatmul.mubr.bf16.gmra.mrb[0].mxu0 %v570
    %v606 = vpop.f32.mrb[0].mxu0
    %v607 = vadd.f32 0.0, %v606
    %v608 = vpop.f32.mrb[0].mxu0
    %v609 = vpop.f32.mrb[0].mxu0
    %v610 = vpop.f32.mrb[0].mxu0
    %611 = vdwg.mxu0
    %v612 = vadd.f32 %v567, %v607
    %v613 = vmul.f32 %v612, 0.5
    %v614 = vtanh.pop %v613
    %v615 = vmul.f32 %v614, 0.5
    %v616 = vadd.f32 %v615, 0.5
    %v617 = vtanh.pop %v612
    %v618 = vmul.f32 %v616, %v543
    %620 = vrot.lane.b32.xlu0 %v617, 112
    %v621 = vpop.permute.xlu0 %620
    %v623 = vmul.f32 %v616, %v621
    %625 = vrot.lane.b32.xlu0 %v623, 8
    %v626 = vpop.permute.xlu0 %625
    %v628 = vadd.f32 %v618, %v626
    %v629 = vtanh.pop %v628
    %631 = vrot.lane.b32.xlu0 %v629, 16
    %v632 = vpop.permute.xlu0 %631
    %v634 = vmul.f32 %v616, %v632
    %636 = vrot.lane.b32.xlu0 %v634, 104
    %v637 = vpop.permute.xlu0 %636
    %639 = vrot.lane.b32.xlu0 %v634, 112
    %v640 = vpop.permute.xlu0 %639
    %v642 = vsel %vm44, %v637, %v640
    %v643 = vmul.f32 %v642, %v138
    %v644 = vrot.slane %v99, 4
    %v646 = vrot.slane %v112, 2
    %647 = vrot.lane.b32.xlu0 %v646, 96
    %v648 = vpop.permute.xlu0 %647
    %v650 = vsel %vm144, %v644, %v648
    %v651 = vpack.c.bf16 %v643, %v643
    %v653 = vsel %vm152, %v651, 0
    %655 = vmatprep.subr.bf16.mxu0 0
    %656 = vmatpush1.bf16.msra.mxu0 %v150
    %657 = vmatprep.subr.bf16.mxu0 0
    %658 = vmatpush1.bf16.msra.mxu0 0
    %659 = vmatprep.subr.bf16.mxu0 0
    %660 = vmatpush1.bf16.msra.mxu0 0
    %661 = vmatprep.subr.bf16.mxu0 0
    %662 = vmatpush1.bf16.msra.mxu0 0
    %663 = vmatprep.subr.bf16.mxu0 0
    %664 = vmatpush1.bf16.msra.mxu0 0
    %665 = vmatprep.subr.bf16.mxu0 0
    %666 = vmatpush1.bf16.msra.mxu0 0
    %667 = vmatprep.subr.bf16.mxu0 0
    %668 = vmatpush1.bf16.msra.mxu0 0
    %669 = vmatprep.subr.bf16.mxu0 0
    %670 = vmatpush1.bf16.msra.mxu0 0
    %671 = vmatprep.subr.bf16.mxu0 0
    %672 = vmatpush1.bf16.msra.mxu0 0
    %673 = vmatprep.subr.bf16.mxu0 0
    %674 = vmatpush1.bf16.msra.mxu0 0
    %675 = vmatprep.subr.bf16.mxu0 0
    %676 = vmatpush1.bf16.msra.mxu0 0
    %677 = vmatprep.subr.bf16.mxu0 0
    %678 = vmatpush1.bf16.msra.mxu0 0
    %679 = vmatprep.subr.bf16.mxu0 0
    %680 = vmatpush1.bf16.msra.mxu0 0
    %681 = vmatprep.subr.bf16.mxu0 0
    %682 = vmatpush1.bf16.msra.mxu0 0
    %683 = vmatprep.subr.bf16.mxu0 0
    %684 = vmatpush1.bf16.msra.mxu0 0
    %685 = vmatprep.subr.bf16.mxu0 0
    %686 = vmatpush1.bf16.msra.mxu0 0
    %687 = vmatprep.mubr.bf16.mxu0 0
    %688 = vmatmul.mubr.bf16.gmra.mrb[0].mxu0 %v653
    %v689 = vpop.f32.mrb[0].mxu0
    %v690 = vadd.f32 0.0, %v689
    %v691 = vpop.f32.mrb[0].mxu0
    %v692 = vpop.f32.mrb[0].mxu0
    %v693 = vpop.f32.mrb[0].mxu0
    %694 = vdwg.mxu0
    %v695 = vadd.f32 %v650, %v690
    %v696 = vmul.f32 %v695, 0.5
    %v697 = vtanh.pop %v696
    %v698 = vmul.f32 %v697, 0.5
    %v699 = vadd.f32 %v698, 0.5
    %v700 = vtanh.pop %v695
    %v701 = vmul.f32 %v699, %v628
    %703 = vrot.lane.b32.xlu0 %v700, 112
    %v704 = vpop.permute.xlu0 %703
    %v706 = vmul.f32 %v699, %v704
    %708 = vrot.lane.b32.xlu0 %v706, 8
    %v709 = vpop.permute.xlu0 %708
    %v711 = vadd.f32 %v701, %v709
    %v712 = vtanh.pop %v711
    %714 = vrot.lane.b32.xlu0 %v712, 16
    %v715 = vpop.permute.xlu0 %714
    %v717 = vmul.f32 %v699, %v715
    %719 = vrot.lane.b32.xlu0 %v717, 104
    %v720 = vpop.permute.xlu0 %719
    %722 = vrot.lane.b32.xlu0 %v717, 112
    %v723 = vpop.permute.xlu0 %722
    %v725 = vsel %vm44, %v720, %v723
    %v726 = vmul.f32 %v725, %v138
    %v727 = vrot.slane %v99, 6
    %729 = vrot.lane.b32.xlu0 %v112, 96
    %v730 = vpop.permute.xlu0 %729
    %v732 = vsel %vm144, %v727, %v730
    %v733 = vpack.c.bf16 %v726, %v726
    %v735 = vsel %vm152, %v733, 0
    %737 = vmatprep.subr.bf16.mxu0 0
    %738 = vmatpush1.bf16.msra.mxu0 %v150
    %739 = vmatprep.subr.bf16.mxu0 0
    %740 = vmatpush1.bf16.msra.mxu0 0
    %741 = vmatprep.subr.bf16.mxu0 0
    %742 = vmatpush1.bf16.msra.mxu0 0
    %743 = vmatprep.subr.bf16.mxu0 0
    %744 = vmatpush1.bf16.msra.mxu0 0
    %745 = vmatprep.subr.bf16.mxu0 0
    %746 = vmatpush1.bf16.msra.mxu0 0
    %747 = vmatprep.subr.bf16.mxu0 0
    %748 = vmatpush1.bf16.msra.mxu0 0
    %749 = vmatprep.subr.bf16.mxu0 0
    %750 = vmatpush1.bf16.msra.mxu0 0
    %751 = vmatprep.subr.bf16.mxu0 0
    %752 = vmatpush1.bf16.msra.mxu0 0
    %753 = vmatprep.subr.bf16.mxu0 0
    %754 = vmatpush1.bf16.msra.mxu0 0
    %755 = vmatprep.subr.bf16.mxu0 0
    %756 = vmatpush1.bf16.msra.mxu0 0
    %757 = vmatprep.subr.bf16.mxu0 0
    %758 = vmatpush1.bf16.msra.mxu0 0
    %759 = vmatprep.subr.bf16.mxu0 0
    %760 = vmatpush1.bf16.msra.mxu0 0
    %761 = vmatprep.subr.bf16.mxu0 0
    %762 = vmatpush1.bf16.msra.mxu0 0
    %763 = vmatprep.subr.bf16.mxu0 0
    %764 = vmatpush1.bf16.msra.mxu0 0
    %765 = vmatprep.subr.bf16.mxu0 0
    %766 = vmatpush1.bf16.msra.mxu0 0
    %767 = vmatprep.subr.bf16.mxu0 0
    %768 = vmatpush1.bf16.msra.mxu0 0
    %769 = vmatprep.mubr.bf16.mxu0 0
    %770 = vmatmul.mubr.bf16.gmra.mrb[0].mxu0 %v735
    %v771 = vpop.f32.mrb[0].mxu0
    %v772 = vadd.f32 0.0, %v771
    %v773 = vpop.f32.mrb[0].mxu0
    %v774 = vpop.f32.mrb[0].mxu0
    %v775 = vpop.f32.mrb[0].mxu0
    %776 = vdwg.mxu0
    %v777 = vadd.f32 %v732, %v772
    %v778 = vmul.f32 %v777, 0.5
    %v779 = vtanh.pop %v778
    %v780 = vmul.f32 %v779, 0.5
    %v781 = vadd.f32 %v780, 0.5
    %v782 = vtanh.pop %v777
    %v783 = vmul.f32 %v781, %v711
    %785 = vrot.lane.b32.xlu0 %v782, 112
    %v786 = vpop.permute.xlu0 %785
    %v788 = vmul.f32 %v781, %v786
    %790 = vrot.lane.b32.xlu0 %v788, 8
    %v791 = vpop.permute.xlu0 %790
    %v793 = vadd.f32 %v783, %v791
    %v794 = vtanh.pop %v793
    %796 = vrot.lane.b32.xlu0 %v794, 16
    %v797 = vpop.permute.xlu0 %796
    %v799 = vmul.f32 %v781, %v797
    %801 = vrot.lane.b32.xlu0 %v799, 104
    %v802 = vpop.permute.xlu0 %801
    %804 = vrot.lane.b32.xlu0 %v799, 112
    %v805 = vpop.permute.xlu0 %804
    %v807 = vsel %vm44, %v802, %v805
    %v808 = vmul.f32 %v807, %v138
    %v809 = vrot.slane %v112, 6
    %810 = vrot.lane.b32.xlu0 %v809, 96
    %v811 = vpop.permute.xlu0 %810
    %v813 = vsel %vm144, %v104, %v811
    %v814 = vpack.c.bf16 %v808, %v808
    %v816 = vsel %vm152, %v814, 0
    %818 = vmatprep.subr.bf16.mxu0 0
    %819 = vmatpush1.bf16.msra.mxu0 %v150
    %820 = vmatprep.subr.bf16.mxu0 0
    %821 = vmatpush1.bf16.msra.mxu0 0
    %822 = vmatprep.subr.bf16.mxu0 0
    %823 = vmatpush1.bf16.msra.mxu0 0
    %824 = vmatprep.subr.bf16.mxu0 0
    %825 = vmatpush1.bf16.msra.mxu0 0
    %826 = vmatprep.subr.bf16.mxu0 0
    %827 = vmatpush1.bf16.msra.mxu0 0
    %828 = vmatprep.subr.bf16.mxu0 0
    %829 = vmatpush1.bf16.msra.mxu0 0
    %830 = vmatprep.subr.bf16.mxu0 0
    %831 = vmatpush1.bf16.msra.mxu0 0
    %832 = vmatprep.subr.bf16.mxu0 0
    %833 = vmatpush1.bf16.msra.mxu0 0
    %834 = vmatprep.subr.bf16.mxu0 0
    %835 = vmatpush1.bf16.msra.mxu0 0
    %836 = vmatprep.subr.bf16.mxu0 0
    %837 = vmatpush1.bf16.msra.mxu0 0
    %838 = vmatprep.subr.bf16.mxu0 0
    %839 = vmatpush1.bf16.msra.mxu0 0
    %840 = vmatprep.subr.bf16.mxu0 0
    %841 = vmatpush1.bf16.msra.mxu0 0
    %842 = vmatprep.subr.bf16.mxu0 0
    %843 = vmatpush1.bf16.msra.mxu0 0
    %844 = vmatprep.subr.bf16.mxu0 0
    %845 = vmatpush1.bf16.msra.mxu0 0
    %846 = vmatprep.subr.bf16.mxu0 0
    %847 = vmatpush1.bf16.msra.mxu0 0
    %848 = vmatprep.subr.bf16.mxu0 0
    %849 = vmatpush1.bf16.msra.mxu0 0
    %850 = vmatprep.mubr.bf16.mxu0 0
    %851 = vmatmul.mubr.bf16.gmra.mrb[0].mxu0 %v816
    %v852 = vpop.f32.mrb[0].mxu0
    %v853 = vadd.f32 0.0, %v852
    %v854 = vpop.f32.mrb[0].mxu0
    %v855 = vpop.f32.mrb[0].mxu0
    %v856 = vpop.f32.mrb[0].mxu0
    %857 = vdwg.mxu0
    %v858 = vadd.f32 %v813, %v853
    %v859 = vmul.f32 %v858, 0.5
    %v860 = vtanh.pop %v859
    %v861 = vmul.f32 %v860, 0.5
    %v862 = vadd.f32 %v861, 0.5
    %v863 = vtanh.pop %v858
    %v864 = vmul.f32 %v862, %v793
    %866 = vrot.lane.b32.xlu0 %v863, 112
    %v867 = vpop.permute.xlu0 %866
    %v869 = vmul.f32 %v862, %v867
    %871 = vrot.lane.b32.xlu0 %v869, 8
    %v872 = vpop.permute.xlu0 %871
    %v874 = vadd.f32 %v864, %v872
    %v875 = vtanh.pop %v874
    %877 = vrot.lane.b32.xlu0 %v875, 16
    %v878 = vpop.permute.xlu0 %877
    %v880 = vmul.f32 %v862, %v878
    %882 = vrot.lane.b32.xlu0 %v880, 104
    %v883 = vpop.permute.xlu0 %882
    %885 = vrot.lane.b32.xlu0 %v880, 112
    %v886 = vpop.permute.xlu0 %885
    %v888 = vsel %vm44, %v883, %v886
    %v889 = vmul.f32 %v888, %v138
    %v891 = vrot.slane %v104, 2
    %v894 = vrot.slane %v107, 4
    %895 = vrot.lane.b32.xlu0 %v894, 96
    %v896 = vpop.permute.xlu0 %895
    %v898 = vsel %vm144, %v891, %v896
    %v899 = vpack.c.bf16 %v889, %v889
    %v901 = vsel %vm152, %v899, 0
    %903 = vmatprep.subr.bf16.mxu0 0
    %904 = vmatpush1.bf16.msra.mxu0 %v150
    %905 = vmatprep.subr.bf16.mxu0 0
    %906 = vmatpush1.bf16.msra.mxu0 0
    %907 = vmatprep.subr.bf16.mxu0 0
    %908 = vmatpush1.bf16.msra.mxu0 0
    %909 = vmatprep.subr.bf16.mxu0 0
    %910 = vmatpush1.bf16.msra.mxu0 0
    %911 = vmatprep.subr.bf16.mxu0 0
    %912 = vmatpush1.bf16.msra.mxu0 0
    %913 = vmatprep.subr.bf16.mxu0 0
    %914 = vmatpush1.bf16.msra.mxu0 0
    %915 = vmatprep.subr.bf16.mxu0 0
    %916 = vmatpush1.bf16.msra.mxu0 0
    %917 = vmatprep.subr.bf16.mxu0 0
    %918 = vmatpush1.bf16.msra.mxu0 0
    %919 = vmatprep.subr.bf16.mxu0 0
    %920 = vmatpush1.bf16.msra.mxu0 0
    %921 = vmatprep.subr.bf16.mxu0 0
    %922 = vmatpush1.bf16.msra.mxu0 0
    %923 = vmatprep.subr.bf16.mxu0 0
    %924 = vmatpush1.bf16.msra.mxu0 0
    %925 = vmatprep.subr.bf16.mxu0 0
    %926 = vmatpush1.bf16.msra.mxu0 0
    %927 = vmatprep.subr.bf16.mxu0 0
    %928 = vmatpush1.bf16.msra.mxu0 0
    %929 = vmatprep.subr.bf16.mxu0 0
    %930 = vmatpush1.bf16.msra.mxu0 0
    %931 = vmatprep.subr.bf16.mxu0 0
    %932 = vmatpush1.bf16.msra.mxu0 0
    %933 = vmatprep.subr.bf16.mxu0 0
    %934 = vmatpush1.bf16.msra.mxu0 0
    %935 = vmatprep.mubr.bf16.mxu0 0
    %936 = vmatmul.mubr.bf16.gmra.mrb[0].mxu0 %v901
    %v937 = vpop.f32.mrb[0].mxu0
    %v938 = vadd.f32 0.0, %v937
    %v939 = vpop.f32.mrb[0].mxu0
    %v940 = vpop.f32.mrb[0].mxu0
    %v941 = vpop.f32.mrb[0].mxu0
    %942 = vdwg.mxu0
    %v943 = vadd.f32 %v898, %v938
    %v944 = vmul.f32 %v943, 0.5
    %v945 = vtanh.pop %v944
    %v946 = vmul.f32 %v945, 0.5
    %v947 = vadd.f32 %v946, 0.5
    %v948 = vtanh.pop %v943
    %v949 = vmul.f32 %v947, %v874
    %951 = vrot.lane.b32.xlu0 %v948, 112
    %v952 = vpop.permute.xlu0 %951
    %v954 = vmul.f32 %v947, %v952
    %956 = vrot.lane.b32.xlu0 %v954, 8
    %v957 = vpop.permute.xlu0 %956
    %v959 = vadd.f32 %v949, %v957
    %v960 = vtanh.pop %v959
    %962 = vrot.lane.b32.xlu0 %v960, 16
    %v963 = vpop.permute.xlu0 %962
    %v965 = vmul.f32 %v947, %v963
    %967 = vrot.lane.b32.xlu0 %v965, 104
    %v968 = vpop.permute.xlu0 %967
    %970 = vrot.lane.b32.xlu0 %v965, 112
    %v971 = vpop.permute.xlu0 %970
    %v973 = vsel %vm44, %v968, %v971
    %v974 = vmul.f32 %v973, %v138
    %v975 = vrot.slane %v104, 4
    %v977 = vrot.slane %v107, 2
    %978 = vrot.lane.b32.xlu0 %v977, 96
    %v979 = vpop.permute.xlu0 %978
    %v981 = vsel %vm144, %v975, %v979
    %v982 = vpack.c.bf16 %v974, %v974
    %v984 = vsel %vm152, %v982, 0
    %986 = vmatprep.subr.bf16.mxu0 0
    %987 = vmatpush1.bf16.msra.mxu0 %v150
    %988 = vmatprep.subr.bf16.mxu0 0
    %989 = vmatpush1.bf16.msra.mxu0 0
    %990 = vmatprep.subr.bf16.mxu0 0
    %991 = vmatpush1.bf16.msra.mxu0 0
    %992 = vmatprep.subr.bf16.mxu0 0
    %993 = vmatpush1.bf16.msra.mxu0 0
    %994 = vmatprep.subr.bf16.mxu0 0
    %995 = vmatpush1.bf16.msra.mxu0 0
    %996 = vmatprep.subr.bf16.mxu0 0
    %997 = vmatpush1.bf16.msra.mxu0 0
    %998 = vmatprep.subr.bf16.mxu0 0
    %999 = vmatpush1.bf16.msra.mxu0 0
    %1000 = vmatprep.subr.bf16.mxu0 0
    %1001 = vmatpush1.bf16.msra.mxu0 0
    %1002 = vmatprep.subr.bf16.mxu0 0
    %1003 = vmatpush1.bf16.msra.mxu0 0
    %1004 = vmatprep.subr.bf16.mxu0 0
    %1005 = vmatpush1.bf16.msra.mxu0 0
    %1006 = vmatprep.subr.bf16.mxu0 0
    %1007 = vmatpush1.bf16.msra.mxu0 0
    %1008 = vmatprep.subr.bf16.mxu0 0
    %1009 = vmatpush1.bf16.msra.mxu0 0
    %1010 = vmatprep.subr.bf16.mxu0 0
    %1011 = vmatpush1.bf16.msra.mxu0 0
    %1012 = vmatprep.subr.bf16.mxu0 0
    %1013 = vmatpush1.bf16.msra.mxu0 0
    %1014 = vmatprep.subr.bf16.mxu0 0
    %1015 = vmatpush1.bf16.msra.mxu0 0
    %1016 = vmatprep.subr.bf16.mxu0 0
    %1017 = vmatpush1.bf16.msra.mxu0 0
    %1018 = vmatprep.mubr.bf16.mxu0 0
    %1019 = vmatmul.mubr.bf16.gmra.mrb[0].mxu0 %v984
    %v1020 = vpop.f32.mrb[0].mxu0
    %v1021 = vadd.f32 0.0, %v1020
    %v1022 = vpop.f32.mrb[0].mxu0
    %v1023 = vpop.f32.mrb[0].mxu0
    %v1024 = vpop.f32.mrb[0].mxu0
    %1025 = vdwg.mxu0
    %v1026 = vadd.f32 %v981, %v1021
    %v1027 = vmul.f32 %v1026, 0.5
    %v1028 = vtanh.pop %v1027
    %v1029 = vmul.f32 %v1028, 0.5
    %v1030 = vadd.f32 %v1029, 0.5
    %v1031 = vtanh.pop %v1026
    %v1032 = vmul.f32 %v1030, %v959
    %1034 = vrot.lane.b32.xlu0 %v1031, 112
    %v1035 = vpop.permute.xlu0 %1034
    %v1037 = vmul.f32 %v1030, %v1035
    %1039 = vrot.lane.b32.xlu0 %v1037, 8
    %v1040 = vpop.permute.xlu0 %1039
    %v1042 = vadd.f32 %v1032, %v1040
    %v1043 = vtanh.pop %v1042
    %1045 = vrot.lane.b32.xlu0 %v1043, 16
    %v1046 = vpop.permute.xlu0 %1045
    %v1048 = vmul.f32 %v1030, %v1046
    %1050 = vrot.lane.b32.xlu0 %v1048, 104
    %v1051 = vpop.permute.xlu0 %1050
    %1053 = vrot.lane.b32.xlu0 %v1048, 112
    %v1054 = vpop.permute.xlu0 %1053
    %v1056 = vsel %vm44, %v1051, %v1054
    %v1057 = vmul.f32 %v1056, %v138
    %v1058 = vrot.slane %v104, 6
    %1060 = vrot.lane.b32.xlu0 %v107, 96
    %v1061 = vpop.permute.xlu0 %1060
    %v1063 = vsel %vm144, %v1058, %v1061
    %v1064 = vpack.c.bf16 %v1057, %v1057
    %v1066 = vsel %vm152, %v1064, 0
    %1068 = vmatprep.subr.bf16.mxu0 0
    %1069 = vmatpush1.bf16.msra.mxu0 %v150
    %1070 = vmatprep.subr.bf16.mxu0 0
    %1071 = vmatpush1.bf16.msra.mxu0 0
    %1072 = vmatprep.subr.bf16.mxu0 0
    %1073 = vmatpush1.bf16.msra.mxu0 0
    %1074 = vmatprep.subr.bf16.mxu0 0
    %1075 = vmatpush1.bf16.msra.mxu0 0
    %1076 = vmatprep.subr.bf16.mxu0 0
    %1077 = vmatpush1.bf16.msra.mxu0 0
    %1078 = vmatprep.subr.bf16.mxu0 0
    %1079 = vmatpush1.bf16.msra.mxu0 0
    %1080 = vmatprep.subr.bf16.mxu0 0
    %1081 = vmatpush1.bf16.msra.mxu0 0
    %1082 = vmatprep.subr.bf16.mxu0 0
    %1083 = vmatpush1.bf16.msra.mxu0 0
    %1084 = vmatprep.subr.bf16.mxu0 0
    %1085 = vmatpush1.bf16.msra.mxu0 0
    %1086 = vmatprep.subr.bf16.mxu0 0
    %1087 = vmatpush1.bf16.msra.mxu0 0
    %1088 = vmatprep.subr.bf16.mxu0 0
    %1089 = vmatpush1.bf16.msra.mxu0 0
    %1090 = vmatprep.subr.bf16.mxu0 0
    %1091 = vmatpush1.bf16.msra.mxu0 0
    %1092 = vmatprep.subr.bf16.mxu0 0
    %1093 = vmatpush1.bf16.msra.mxu0 0
    %1094 = vmatprep.subr.bf16.mxu0 0
    %1095 = vmatpush1.bf16.msra.mxu0 0
    %1096 = vmatprep.subr.bf16.mxu0 0
    %1097 = vmatpush1.bf16.msra.mxu0 0
    %1098 = vmatprep.subr.bf16.mxu0 0
    %1099 = vmatpush1.bf16.msra.mxu0 0
    %1100 = vmatprep.mubr.bf16.mxu0 0
    %1101 = vmatmul.mubr.bf16.gmra.mrb[0].mxu0 %v1066
    %v1102 = vpop.f32.mrb[0].mxu0
    %v1103 = vadd.f32 0.0, %v1102
    %v1104 = vpop.f32.mrb[0].mxu0
    %v1105 = vpop.f32.mrb[0].mxu0
    %v1106 = vpop.f32.mrb[0].mxu0
    %1107 = vdwg.mxu0
    %v1108 = vadd.f32 %v1063, %v1103
    %v1109 = vmul.f32 %v1108, 0.5
    %v1110 = vtanh.pop %v1109
    %v1111 = vmul.f32 %v1110, 0.5
    %v1112 = vadd.f32 %v1111, 0.5
    %v1113 = vtanh.pop %v1108
    %v1114 = vmul.f32 %v1112, %v1042
    %1116 = vrot.lane.b32.xlu0 %v1113, 112
    %v1117 = vpop.permute.xlu0 %1116
    %v1119 = vmul.f32 %v1112, %v1117
    %1121 = vrot.lane.b32.xlu0 %v1119, 8
    %v1122 = vpop.permute.xlu0 %1121
    %v1124 = vadd.f32 %v1114, %v1122
    %v1125 = vtanh.pop %v1124
    %1127 = vrot.lane.b32.xlu0 %v1125, 16
    %v1128 = vpop.permute.xlu0 %1127
    %v1130 = vmul.f32 %v1112, %v1128
    %1132 = vrot.lane.b32.xlu0 %v1130, 104
    %v1133 = vpop.permute.xlu0 %1132
    %1135 = vrot.lane.b32.xlu0 %v1130, 112
    %v1136 = vpop.permute.xlu0 %1135
    %v1138 = vsel %vm44, %v1133, %v1136
    %v1139 = vmul.f32 %v1138, %v138
    %v1140 = vrot.slane %v107, 6
    %1141 = vrot.lane.b32.xlu0 %v1140, 96
    %v1142 = vpop.permute.xlu0 %1141
    %v1144 = vsel %vm144, %v107, %v1142
    %v1145 = vpack.c.bf16 %v1139, %v1139
    %v1147 = vsel %vm152, %v1145, 0
    %1149 = vmatprep.subr.bf16.mxu0 0
    %1150 = vmatpush1.bf16.msra.mxu0 %v150
    %1151 = vmatprep.subr.bf16.mxu0 0
    %1152 = vmatpush1.bf16.msra.mxu0 0
    %1153 = vmatprep.subr.bf16.mxu0 0
    %1154 = vmatpush1.bf16.msra.mxu0 0
    %1155 = vmatprep.subr.bf16.mxu0 0
    %1156 = vmatpush1.bf16.msra.mxu0 0
    %1157 = vmatprep.subr.bf16.mxu0 0
    %1158 = vmatpush1.bf16.msra.mxu0 0
    %1159 = vmatprep.subr.bf16.mxu0 0
    %1160 = vmatpush1.bf16.msra.mxu0 0
    %1161 = vmatprep.subr.bf16.mxu0 0
    %1162 = vmatpush1.bf16.msra.mxu0 0
    %1163 = vmatprep.subr.bf16.mxu0 0
    %1164 = vmatpush1.bf16.msra.mxu0 0
    %1165 = vmatprep.subr.bf16.mxu0 0
    %1166 = vmatpush1.bf16.msra.mxu0 0
    %1167 = vmatprep.subr.bf16.mxu0 0
    %1168 = vmatpush1.bf16.msra.mxu0 0
    %1169 = vmatprep.subr.bf16.mxu0 0
    %1170 = vmatpush1.bf16.msra.mxu0 0
    %1171 = vmatprep.subr.bf16.mxu0 0
    %1172 = vmatpush1.bf16.msra.mxu0 0
    %1173 = vmatprep.subr.bf16.mxu0 0
    %1174 = vmatpush1.bf16.msra.mxu0 0
    %1175 = vmatprep.subr.bf16.mxu0 0
    %1176 = vmatpush1.bf16.msra.mxu0 0
    %1177 = vmatprep.subr.bf16.mxu0 0
    %1178 = vmatpush1.bf16.msra.mxu0 0
    %1179 = vmatprep.subr.bf16.mxu0 0
    %1180 = vmatpush1.bf16.msra.mxu0 0
    %1181 = vmatprep.mubr.bf16.mxu0 0
    %1182 = vmatmul.mubr.bf16.gmra.mrb[0].mxu0 %v1147
    %v1183 = vpop.f32.mrb[0].mxu0
    %v1184 = vadd.f32 0.0, %v1183
    %v1185 = vpop.f32.mrb[0].mxu0
    %v1186 = vpop.f32.mrb[0].mxu0
    %v1187 = vpop.f32.mrb[0].mxu0
    %1188 = vdwg.mxu0
    %v1189 = vadd.f32 %v1144, %v1184
    %v1190 = vmul.f32 %v1189, 0.5
    %v1191 = vtanh.pop %v1190
    %v1192 = vmul.f32 %v1191, 0.5
    %v1193 = vadd.f32 %v1192, 0.5
    %v1194 = vtanh.pop %v1189
    %v1195 = vmul.f32 %v1193, %v1124
    %1197 = vrot.lane.b32.xlu0 %v1194, 112
    %v1198 = vpop.permute.xlu0 %1197
    %v1200 = vmul.f32 %v1193, %v1198
    %1202 = vrot.lane.b32.xlu0 %v1200, 8
    %v1203 = vpop.permute.xlu0 %1202
    %v1205 = vadd.f32 %v1195, %v1203
    %v1206 = vtanh.pop %v1205
    %1208 = vrot.lane.b32.xlu0 %v1206, 16
    %v1209 = vpop.permute.xlu0 %1208
    %v1211 = vmul.f32 %v1193, %v1209
    %1213 = vrot.lane.b32.xlu0 %v1211, 104
    %v1214 = vpop.permute.xlu0 %1213
    %1216 = vrot.lane.b32.xlu0 %v1211, 112
    %v1217 = vpop.permute.xlu0 %1216
    %v1219 = vsel %vm44, %v1214, %v1217
    %v1220 = vmul.f32 %v1219, %v138
    %1222 = vrot.lane.b32.xlu0 %v975, 96
    %v1223 = vpop.permute.xlu0 %1222
    %v1225 = vsel %vm144, %v977, %v1223
    %v1226 = vpack.c.bf16 %v1220, %v1220
    %v1228 = vsel %vm152, %v1226, 0
    %1230 = vmatprep.subr.bf16.mxu0 0
    %1231 = vmatpush1.bf16.msra.mxu0 %v150
    %1232 = vmatprep.subr.bf16.mxu0 0
    %1233 = vmatpush1.bf16.msra.mxu0 0
    %1234 = vmatprep.subr.bf16.mxu0 0
    %1235 = vmatpush1.bf16.msra.mxu0 0
    %1236 = vmatprep.subr.bf16.mxu0 0
    %1237 = vmatpush1.bf16.msra.mxu0 0
    %1238 = vmatprep.subr.bf16.mxu0 0
    %1239 = vmatpush1.bf16.msra.mxu0 0
    %1240 = vmatprep.subr.bf16.mxu0 0
    %1241 = vmatpush1.bf16.msra.mxu0 0
    %1242 = vmatprep.subr.bf16.mxu0 0
    %1243 = vmatpush1.bf16.msra.mxu0 0
    %1244 = vmatprep.subr.bf16.mxu0 0
    %1245 = vmatpush1.bf16.msra.mxu0 0
    %1246 = vmatprep.subr.bf16.mxu0 0
    %1247 = vmatpush1.bf16.msra.mxu0 0
    %1248 = vmatprep.subr.bf16.mxu0 0
    %1249 = vmatpush1.bf16.msra.mxu0 0
    %1250 = vmatprep.subr.bf16.mxu0 0
    %1251 = vmatpush1.bf16.msra.mxu0 0
    %1252 = vmatprep.subr.bf16.mxu0 0
    %1253 = vmatpush1.bf16.msra.mxu0 0
    %1254 = vmatprep.subr.bf16.mxu0 0
    %1255 = vmatpush1.bf16.msra.mxu0 0
    %1256 = vmatprep.subr.bf16.mxu0 0
    %1257 = vmatpush1.bf16.msra.mxu0 0
    %1258 = vmatprep.subr.bf16.mxu0 0
    %1259 = vmatpush1.bf16.msra.mxu0 0
    %1260 = vmatprep.subr.bf16.mxu0 0
    %1261 = vmatpush1.bf16.msra.mxu0 0
    %1262 = vmatprep.mubr.bf16.mxu0 0
    %1263 = vmatmul.mubr.bf16.gmra.mrb[0].mxu0 %v1228
    %v1264 = vpop.f32.mrb[0].mxu0
    %v1265 = vadd.f32 0.0, %v1264
    %v1266 = vpop.f32.mrb[0].mxu0
    %v1267 = vpop.f32.mrb[0].mxu0
    %v1268 = vpop.f32.mrb[0].mxu0
    %1269 = vdwg.mxu0
    %v1270 = vadd.f32 %v1225, %v1265
    %v1271 = vmul.f32 %v1270, 0.5
    %v1272 = vtanh.pop %v1271
    %v1273 = vmul.f32 %v1272, 0.5
    %v1274 = vadd.f32 %v1273, 0.5
    %v1275 = vtanh.pop %v1270
    %v1276 = vmul.f32 %v1274, %v1205
    %1278 = vrot.lane.b32.xlu0 %v1275, 112
    %v1279 = vpop.permute.xlu0 %1278
    %v1281 = vmul.f32 %v1274, %v1279
    %1283 = vrot.lane.b32.xlu0 %v1281, 8
    %v1284 = vpop.permute.xlu0 %1283
    %v1286 = vadd.f32 %v1276, %v1284
    %v1287 = vtanh.pop %v1286
    %1289 = vrot.lane.b32.xlu0 %v1287, 16
    %v1290 = vpop.permute.xlu0 %1289
    %v1292 = vmul.f32 %v1274, %v1290
    %1294 = vrot.lane.b32.xlu0 %v1292, 104
    %v1295 = vpop.permute.xlu0 %1294
    %1297 = vrot.lane.b32.xlu0 %v1292, 112
    %v1298 = vpop.permute.xlu0 %1297
    %v1300 = vsel %vm44, %v1295, %v1298
    %v1301 = vmul.f32 %v1300, %v138
    %1303 = vrot.lane.b32.xlu0 %v891, 96
    %v1304 = vpop.permute.xlu0 %1303
    %v1306 = vsel %vm144, %v894, %v1304
    %v1307 = vpack.c.bf16 %v1301, %v1301
    %v1309 = vsel %vm152, %v1307, 0
    %1311 = vmatprep.subr.bf16.mxu0 0
    %1312 = vmatpush1.bf16.msra.mxu0 %v150
    %1313 = vmatprep.subr.bf16.mxu0 0
    %1314 = vmatpush1.bf16.msra.mxu0 0
    %1315 = vmatprep.subr.bf16.mxu0 0
    %1316 = vmatpush1.bf16.msra.mxu0 0
    %1317 = vmatprep.subr.bf16.mxu0 0
    %1318 = vmatpush1.bf16.msra.mxu0 0
    %1319 = vmatprep.subr.bf16.mxu0 0
    %1320 = vmatpush1.bf16.msra.mxu0 0
    %1321 = vmatprep.subr.bf16.mxu0 0
    %1322 = vmatpush1.bf16.msra.mxu0 0
    %1323 = vmatprep.subr.bf16.mxu0 0
    %1324 = vmatpush1.bf16.msra.mxu0 0
    %1325 = vmatprep.subr.bf16.mxu0 0
    %1326 = vmatpush1.bf16.msra.mxu0 0
    %1327 = vmatprep.subr.bf16.mxu0 0
    %1328 = vmatpush1.bf16.msra.mxu0 0
    %1329 = vmatprep.subr.bf16.mxu0 0
    %1330 = vmatpush1.bf16.msra.mxu0 0
    %1331 = vmatprep.subr.bf16.mxu0 0
    %1332 = vmatpush1.bf16.msra.mxu0 0
    %1333 = vmatprep.subr.bf16.mxu0 0
    %1334 = vmatpush1.bf16.msra.mxu0 0
    %1335 = vmatprep.subr.bf16.mxu0 0
    %1336 = vmatpush1.bf16.msra.mxu0 0
    %1337 = vmatprep.subr.bf16.mxu0 0
    %1338 = vmatpush1.bf16.msra.mxu0 0
    %1339 = vmatprep.subr.bf16.mxu0 0
    %1340 = vmatpush1.bf16.msra.mxu0 0
    %1341 = vmatprep.subr.bf16.mxu0 0
    %1342 = vmatpush1.bf16.msra.mxu0 0
    %1343 = vmatprep.mubr.bf16.mxu0 0
    %1344 = vmatmul.mubr.bf16.gmra.mrb[0].mxu0 %v1309
    %v1345 = vpop.f32.mrb[0].mxu0
    %v1346 = vadd.f32 0.0, %v1345
    %v1347 = vpop.f32.mrb[0].mxu0
    %v1348 = vpop.f32.mrb[0].mxu0
    %v1349 = vpop.f32.mrb[0].mxu0
    %1350 = vdwg.mxu0
    %v1351 = vadd.f32 %v1306, %v1346
    %v1352 = vmul.f32 %v1351, 0.5
    %v1353 = vtanh.pop %v1352
    %v1354 = vmul.f32 %v1353, 0.5
    %v1355 = vadd.f32 %v1354, 0.5
    %v1356 = vtanh.pop %v1351
    %v1357 = vmul.f32 %v1355, %v1286
    %1359 = vrot.lane.b32.xlu0 %v1356, 112
    %v1360 = vpop.permute.xlu0 %1359
    %v1362 = vmul.f32 %v1355, %v1360
    %1364 = vrot.lane.b32.xlu0 %v1362, 8
    %v1365 = vpop.permute.xlu0 %1364
    %v1367 = vadd.f32 %v1357, %v1365
    %v1368 = vtanh.pop %v1367
    %1370 = vrot.lane.b32.xlu0 %v1368, 16
    %v1371 = vpop.permute.xlu0 %1370
    %v1373 = vmul.f32 %v1355, %v1371
    %1375 = vrot.lane.b32.xlu0 %v1373, 104
    %v1376 = vpop.permute.xlu0 %1375
    %1378 = vrot.lane.b32.xlu0 %v1373, 112
    %v1379 = vpop.permute.xlu0 %1378
    %v1381 = vsel %vm44, %v1376, %v1379
    %v1382 = vmul.f32 %v1381, %v138
    %1384 = vrot.lane.b32.xlu0 %v104, 96
    %v1385 = vpop.permute.xlu0 %1384
    %v1387 = vsel %vm144, %v1140, %v1385
    %v1388 = vpack.c.bf16 %v1382, %v1382
    %v1390 = vsel %vm152, %v1388, 0
    %1392 = vmatprep.subr.bf16.mxu0 0
    %1393 = vmatpush1.bf16.msra.mxu0 %v150
    %1394 = vmatprep.subr.bf16.mxu0 0
    %1395 = vmatpush1.bf16.msra.mxu0 0
    %1396 = vmatprep.subr.bf16.mxu0 0
    %1397 = vmatpush1.bf16.msra.mxu0 0
    %1398 = vmatprep.subr.bf16.mxu0 0
    %1399 = vmatpush1.bf16.msra.mxu0 0
    %1400 = vmatprep.subr.bf16.mxu0 0
    %1401 = vmatpush1.bf16.msra.mxu0 0
    %1402 = vmatprep.subr.bf16.mxu0 0
    %1403 = vmatpush1.bf16.msra.mxu0 0
    %1404 = vmatprep.subr.bf16.mxu0 0
    %1405 = vmatpush1.bf16.msra.mxu0 0
    %1406 = vmatprep.subr.bf16.mxu0 0
    %1407 = vmatpush1.bf16.msra.mxu0 0
    %1408 = vmatprep.subr.bf16.mxu0 0
    %1409 = vmatpush1.bf16.msra.mxu0 0
    %1410 = vmatprep.subr.bf16.mxu0 0
    %1411 = vmatpush1.bf16.msra.mxu0 0
    %1412 = vmatprep.subr.bf16.mxu0 0
    %1413 = vmatpush1.bf16.msra.mxu0 0
    %1414 = vmatprep.subr.bf16.mxu0 0
    %1415 = vmatpush1.bf16.msra.mxu0 0
    %1416 = vmatprep.subr.bf16.mxu0 0
    %1417 = vmatpush1.bf16.msra.mxu0 0
    %1418 = vmatprep.subr.bf16.mxu0 0
    %1419 = vmatpush1.bf16.msra.mxu0 0
    %1420 = vmatprep.subr.bf16.mxu0 0
    %1421 = vmatpush1.bf16.msra.mxu0 0
    %1422 = vmatprep.subr.bf16.mxu0 0
    %1423 = vmatpush1.bf16.msra.mxu0 0
    %1424 = vmatprep.mubr.bf16.mxu0 0
    %1425 = vmatmul.mubr.bf16.gmra.mrb[0].mxu0 %v1390
    %v1426 = vpop.f32.mrb[0].mxu0
    %v1427 = vadd.f32 0.0, %v1426
    %v1428 = vpop.f32.mrb[0].mxu0
    %v1429 = vpop.f32.mrb[0].mxu0
    %v1430 = vpop.f32.mrb[0].mxu0
    %1431 = vdwg.mxu0
    %v1432 = vadd.f32 %v1387, %v1427
    %v1433 = vmul.f32 %v1432, 0.5
    %v1434 = vtanh.pop %v1433
    %v1435 = vmul.f32 %v1434, 0.5
    %v1436 = vadd.f32 %v1435, 0.5
    %v1437 = vtanh.pop %v1432
    %v1438 = vmul.f32 %v1436, %v1367
    %1440 = vrot.lane.b32.xlu0 %v1437, 112
    %v1441 = vpop.permute.xlu0 %1440
    %v1443 = vmul.f32 %v1436, %v1441
    %1445 = vrot.lane.b32.xlu0 %v1443, 8
    %v1446 = vpop.permute.xlu0 %1445
    %v1448 = vadd.f32 %v1438, %v1446
    %v1449 = vtanh.pop %v1448
    %1451 = vrot.lane.b32.xlu0 %v1449, 16
    %v1452 = vpop.permute.xlu0 %1451
    %v1454 = vmul.f32 %v1436, %v1452
    %1456 = vrot.lane.b32.xlu0 %v1454, 104
    %v1457 = vpop.permute.xlu0 %1456
    %1459 = vrot.lane.b32.xlu0 %v1454, 112
    %v1460 = vpop.permute.xlu0 %1459
    %v1462 = vsel %vm44, %v1457, %v1460
    %v1463 = vmul.f32 %v1462, %v138
    %1464 = vrot.lane.b32.xlu0 %v1058, 96
    %v1465 = vpop.permute.xlu0 %1464
    %v1467 = vsel %vm144, %v112, %v1465
    %v1468 = vpack.c.bf16 %v1463, %v1463
    %v1470 = vsel %vm152, %v1468, 0
    %1472 = vmatprep.subr.bf16.mxu0 0
    %1473 = vmatpush1.bf16.msra.mxu0 %v150
    %1474 = vmatprep.subr.bf16.mxu0 0
    %1475 = vmatpush1.bf16.msra.mxu0 0
    %1476 = vmatprep.subr.bf16.mxu0 0
    %1477 = vmatpush1.bf16.msra.mxu0 0
    %1478 = vmatprep.subr.bf16.mxu0 0
    %1479 = vmatpush1.bf16.msra.mxu0 0
    %1480 = vmatprep.subr.bf16.mxu0 0
    %1481 = vmatpush1.bf16.msra.mxu0 0
    %1482 = vmatprep.subr.bf16.mxu0 0
    %1483 = vmatpush1.bf16.msra.mxu0 0
    %1484 = vmatprep.subr.bf16.mxu0 0
    %1485 = vmatpush1.bf16.msra.mxu0 0
    %1486 = vmatprep.subr.bf16.mxu0 0
    %1487 = vmatpush1.bf16.msra.mxu0 0
    %1488 = vmatprep.subr.bf16.mxu0 0
    %1489 = vmatpush1.bf16.msra.mxu0 0
    %1490 = vmatprep.subr.bf16.mxu0 0
    %1491 = vmatpush1.bf16.msra.mxu0 0
    %1492 = vmatprep.subr.bf16.mxu0 0
    %1493 = vmatpush1.bf16.msra.mxu0 0
    %1494 = vmatprep.subr.bf16.mxu0 0
    %1495 = vmatpush1.bf16.msra.mxu0 0
    %1496 = vmatprep.subr.bf16.mxu0 0
    %1497 = vmatpush1.bf16.msra.mxu0 0
    %1498 = vmatprep.subr.bf16.mxu0 0
    %1499 = vmatpush1.bf16.msra.mxu0 0
    %1500 = vmatprep.subr.bf16.mxu0 0
    %1501 = vmatpush1.bf16.msra.mxu0 0
    %1502 = vmatprep.subr.bf16.mxu0 0
    %1503 = vmatpush1.bf16.msra.mxu0 0
    %1504 = vmatprep.mubr.bf16.mxu0 0
    %1505 = vmatmul.mubr.bf16.gmra.mrb[0].mxu0 %v1470
    %v1506 = vpop.f32.mrb[0].mxu0
    %v1507 = vadd.f32 0.0, %v1506
    %v1508 = vpop.f32.mrb[0].mxu0
    %v1509 = vpop.f32.mrb[0].mxu0
    %v1510 = vpop.f32.mrb[0].mxu0
    %1511 = vdwg.mxu0
    %v1512 = vadd.f32 %v1467, %v1507
    %v1513 = vmul.f32 %v1512, 0.5
    %v1514 = vtanh.pop %v1513
    %v1515 = vmul.f32 %v1514, 0.5
    %v1516 = vadd.f32 %v1515, 0.5
    %v1517 = vtanh.pop %v1512
    %v1518 = vmul.f32 %v1516, %v1448
    %1520 = vrot.lane.b32.xlu0 %v1517, 112
    %v1521 = vpop.permute.xlu0 %1520
    %v1523 = vmul.f32 %v1516, %v1521
    %1525 = vrot.lane.b32.xlu0 %v1523, 8
    %v1526 = vpop.permute.xlu0 %1525
    %v1528 = vadd.f32 %v1518, %v1526
    %v1529 = vtanh.pop %v1528
    %1531 = vrot.lane.b32.xlu0 %v1529, 16
    %v1532 = vpop.permute.xlu0 %1531
    %v1534 = vmul.f32 %v1516, %v1532
    %1536 = vrot.lane.b32.xlu0 %v1534, 104
    %v1537 = vpop.permute.xlu0 %1536
    %1539 = vrot.lane.b32.xlu0 %v1534, 112
    %v1540 = vpop.permute.xlu0 %1539
    %v1542 = vsel %vm44, %v1537, %v1540
    %v1543 = vmul.f32 %v1542, %v138
    %1545 = vrot.lane.b32.xlu0 %v644, 96
    %v1546 = vpop.permute.xlu0 %1545
    %v1548 = vsel %vm144, %v646, %v1546
    %v1549 = vpack.c.bf16 %v1543, %v1543
    %v1551 = vsel %vm152, %v1549, 0
    %1553 = vmatprep.subr.bf16.mxu0 0
    %1554 = vmatpush1.bf16.msra.mxu0 %v150
    %1555 = vmatprep.subr.bf16.mxu0 0
    %1556 = vmatpush1.bf16.msra.mxu0 0
    %1557 = vmatprep.subr.bf16.mxu0 0
    %1558 = vmatpush1.bf16.msra.mxu0 0
    %1559 = vmatprep.subr.bf16.mxu0 0
    %1560 = vmatpush1.bf16.msra.mxu0 0
    %1561 = vmatprep.subr.bf16.mxu0 0
    %1562 = vmatpush1.bf16.msra.mxu0 0
    %1563 = vmatprep.subr.bf16.mxu0 0
    %1564 = vmatpush1.bf16.msra.mxu0 0
    %1565 = vmatprep.subr.bf16.mxu0 0
    %1566 = vmatpush1.bf16.msra.mxu0 0
    %1567 = vmatprep.subr.bf16.mxu0 0
    %1568 = vmatpush1.bf16.msra.mxu0 0
    %1569 = vmatprep.subr.bf16.mxu0 0
    %1570 = vmatpush1.bf16.msra.mxu0 0
    %1571 = vmatprep.subr.bf16.mxu0 0
    %1572 = vmatpush1.bf16.msra.mxu0 0
    %1573 = vmatprep.subr.bf16.mxu0 0
    %1574 = vmatpush1.bf16.msra.mxu0 0
    %1575 = vmatprep.subr.bf16.mxu0 0
    %1576 = vmatpush1.bf16.msra.mxu0 0
    %1577 = vmatprep.subr.bf16.mxu0 0
    %1578 = vmatpush1.bf16.msra.mxu0 0
    %1579 = vmatprep.subr.bf16.mxu0 0
    %1580 = vmatpush1.bf16.msra.mxu0 0
    %1581 = vmatprep.subr.bf16.mxu0 0
    %1582 = vmatpush1.bf16.msra.mxu0 0
    %1583 = vmatprep.subr.bf16.mxu0 0
    %1584 = vmatpush1.bf16.msra.mxu0 0
    %1585 = vmatprep.mubr.bf16.mxu0 0
    %1586 = vmatmul.mubr.bf16.gmra.mrb[0].mxu0 %v1551
    %v1587 = vpop.f32.mrb[0].mxu0
    %v1588 = vadd.f32 0.0, %v1587
    %v1589 = vpop.f32.mrb[0].mxu0
    %v1590 = vpop.f32.mrb[0].mxu0
    %v1591 = vpop.f32.mrb[0].mxu0
    %1592 = vdwg.mxu0
    %v1593 = vadd.f32 %v1548, %v1588
    %v1594 = vmul.f32 %v1593, 0.5
    %v1595 = vtanh.pop %v1594
    %v1596 = vmul.f32 %v1595, 0.5
    %v1597 = vadd.f32 %v1596, 0.5
    %v1598 = vtanh.pop %v1593
    %v1599 = vmul.f32 %v1597, %v1528
    %1601 = vrot.lane.b32.xlu0 %v1598, 112
    %v1602 = vpop.permute.xlu0 %1601
    %v1604 = vmul.f32 %v1597, %v1602
    %1606 = vrot.lane.b32.xlu0 %v1604, 8
    %v1607 = vpop.permute.xlu0 %1606
    %v1609 = vadd.f32 %v1599, %v1607
    %v1610 = vtanh.pop %v1609
    %1612 = vrot.lane.b32.xlu0 %v1610, 16
    %v1613 = vpop.permute.xlu0 %1612
    %v1615 = vmul.f32 %v1597, %v1613
    %1617 = vrot.lane.b32.xlu0 %v1615, 104
    %v1618 = vpop.permute.xlu0 %1617
    %1620 = vrot.lane.b32.xlu0 %v1615, 112
    %v1621 = vpop.permute.xlu0 %1620
    %v1623 = vsel %vm44, %v1618, %v1621
    %v1624 = vmul.f32 %v1623, %v138
    %1626 = vrot.lane.b32.xlu0 %v560, 96
    %v1627 = vpop.permute.xlu0 %1626
    %v1629 = vsel %vm144, %v563, %v1627
    %v1630 = vpack.c.bf16 %v1624, %v1624
    %v1632 = vsel %vm152, %v1630, 0
    %1634 = vmatprep.subr.bf16.mxu0 0
    %1635 = vmatpush1.bf16.msra.mxu0 %v150
    %1636 = vmatprep.subr.bf16.mxu0 0
    %1637 = vmatpush1.bf16.msra.mxu0 0
    %1638 = vmatprep.subr.bf16.mxu0 0
    %1639 = vmatpush1.bf16.msra.mxu0 0
    %1640 = vmatprep.subr.bf16.mxu0 0
    %1641 = vmatpush1.bf16.msra.mxu0 0
    %1642 = vmatprep.subr.bf16.mxu0 0
    %1643 = vmatpush1.bf16.msra.mxu0 0
    %1644 = vmatprep.subr.bf16.mxu0 0
    %1645 = vmatpush1.bf16.msra.mxu0 0
    %1646 = vmatprep.subr.bf16.mxu0 0
    %1647 = vmatpush1.bf16.msra.mxu0 0
    %1648 = vmatprep.subr.bf16.mxu0 0
    %1649 = vmatpush1.bf16.msra.mxu0 0
    %1650 = vmatprep.subr.bf16.mxu0 0
    %1651 = vmatpush1.bf16.msra.mxu0 0
    %1652 = vmatprep.subr.bf16.mxu0 0
    %1653 = vmatpush1.bf16.msra.mxu0 0
    %1654 = vmatprep.subr.bf16.mxu0 0
    %1655 = vmatpush1.bf16.msra.mxu0 0
    %1656 = vmatprep.subr.bf16.mxu0 0
    %1657 = vmatpush1.bf16.msra.mxu0 0
    %1658 = vmatprep.subr.bf16.mxu0 0
    %1659 = vmatpush1.bf16.msra.mxu0 0
    %1660 = vmatprep.subr.bf16.mxu0 0
    %1661 = vmatpush1.bf16.msra.mxu0 0
    %1662 = vmatprep.subr.bf16.mxu0 0
    %1663 = vmatpush1.bf16.msra.mxu0 0
    %1664 = vmatprep.subr.bf16.mxu0 0
    %1665 = vmatpush1.bf16.msra.mxu0 0
    %1666 = vmatprep.mubr.bf16.mxu0 0
    %1667 = vmatmul.mubr.bf16.gmra.mrb[0].mxu0 %v1632
    %v1668 = vpop.f32.mrb[0].mxu0
    %v1669 = vadd.f32 0.0, %v1668
    %v1670 = vpop.f32.mrb[0].mxu0
    %v1671 = vpop.f32.mrb[0].mxu0
    %v1672 = vpop.f32.mrb[0].mxu0
    %1673 = vdwg.mxu0
    %v1674 = vadd.f32 %v1629, %v1669
    %v1675 = vmul.f32 %v1674, 0.5
    %v1676 = vtanh.pop %v1675
    %v1677 = vmul.f32 %v1676, 0.5
    %v1678 = vadd.f32 %v1677, 0.5
    %v1679 = vtanh.pop %v1674
    %v1680 = vmul.f32 %v1678, %v1609
    %1682 = vrot.lane.b32.xlu0 %v1679, 112
    %v1683 = vpop.permute.xlu0 %1682
    %v1685 = vmul.f32 %v1678, %v1683
    %1687 = vrot.lane.b32.xlu0 %v1685, 8
    %v1688 = vpop.permute.xlu0 %1687
    %v1690 = vadd.f32 %v1680, %v1688
    %v1691 = vtanh.pop %v1690
    %1693 = vrot.lane.b32.xlu0 %v1691, 16
    %v1694 = vpop.permute.xlu0 %1693
    %v1696 = vmul.f32 %v1678, %v1694
    %1698 = vrot.lane.b32.xlu0 %v1696, 104
    %v1699 = vpop.permute.xlu0 %1698
    %1701 = vrot.lane.b32.xlu0 %v1696, 112
    %v1702 = vpop.permute.xlu0 %1701
    %v1704 = vsel %vm44, %v1699, %v1702
    %v1705 = vmul.f32 %v1704, %v138
    %1707 = vrot.lane.b32.xlu0 %v99, 96
    %v1708 = vpop.permute.xlu0 %1707
    %v1710 = vsel %vm144, %v809, %v1708
    %v1711 = vpack.c.bf16 %v1705, %v1705
    %v1713 = vsel %vm152, %v1711, 0
    %1715 = vmatprep.subr.bf16.mxu0 0
    %1716 = vmatpush1.bf16.msra.mxu0 %v150
    %1717 = vmatprep.subr.bf16.mxu0 0
    %1718 = vmatpush1.bf16.msra.mxu0 0
    %1719 = vmatprep.subr.bf16.mxu0 0
    %1720 = vmatpush1.bf16.msra.mxu0 0
    %1721 = vmatprep.subr.bf16.mxu0 0
    %1722 = vmatpush1.bf16.msra.mxu0 0
    %1723 = vmatprep.subr.bf16.mxu0 0
    %1724 = vmatpush1.bf16.msra.mxu0 0
    %1725 = vmatprep.subr.bf16.mxu0 0
    %1726 = vmatpush1.bf16.msra.mxu0 0
    %1727 = vmatprep.subr.bf16.mxu0 0
    %1728 = vmatpush1.bf16.msra.mxu0 0
    %1729 = vmatprep.subr.bf16.mxu0 0
    %1730 = vmatpush1.bf16.msra.mxu0 0
    %1731 = vmatprep.subr.bf16.mxu0 0
    %1732 = vmatpush1.bf16.msra.mxu0 0
    %1733 = vmatprep.subr.bf16.mxu0 0
    %1734 = vmatpush1.bf16.msra.mxu0 0
    %1735 = vmatprep.subr.bf16.mxu0 0
    %1736 = vmatpush1.bf16.msra.mxu0 0
    %1737 = vmatprep.subr.bf16.mxu0 0
    %1738 = vmatpush1.bf16.msra.mxu0 0
    %1739 = vmatprep.subr.bf16.mxu0 0
    %1740 = vmatpush1.bf16.msra.mxu0 0
    %1741 = vmatprep.subr.bf16.mxu0 0
    %1742 = vmatpush1.bf16.msra.mxu0 0
    %1743 = vmatprep.subr.bf16.mxu0 0
    %1744 = vmatpush1.bf16.msra.mxu0 0
    %1745 = vmatprep.subr.bf16.mxu0 0
    %1746 = vmatpush1.bf16.msra.mxu0 0
    %1747 = vmatprep.mubr.bf16.mxu0 0
    %1748 = vmatmul.mubr.bf16.gmra.mrb[0].mxu0 %v1713
    %v1749 = vpop.f32.mrb[0].mxu0
    %v1750 = vadd.f32 0.0, %v1749
    %v1751 = vpop.f32.mrb[0].mxu0
    %v1752 = vpop.f32.mrb[0].mxu0
    %v1753 = vpop.f32.mrb[0].mxu0
    %1754 = vdwg.mxu0
    %v1755 = vadd.f32 %v1710, %v1750
    %v1756 = vmul.f32 %v1755, 0.5
    %v1757 = vtanh.pop %v1756
    %v1758 = vmul.f32 %v1757, 0.5
    %v1759 = vadd.f32 %v1758, 0.5
    %v1760 = vtanh.pop %v1755
    %v1761 = vmul.f32 %v1759, %v1690
    %1763 = vrot.lane.b32.xlu0 %v1760, 112
    %v1764 = vpop.permute.xlu0 %1763
    %v1766 = vmul.f32 %v1759, %v1764
    %1768 = vrot.lane.b32.xlu0 %v1766, 8
    %v1769 = vpop.permute.xlu0 %1768
    %v1771 = vadd.f32 %v1761, %v1769
    %v1772 = vtanh.pop %v1771
    %1774 = vrot.lane.b32.xlu0 %v1772, 16
    %v1775 = vpop.permute.xlu0 %1774
    %v1777 = vmul.f32 %v1759, %v1775
    %1779 = vrot.lane.b32.xlu0 %v1777, 104
    %v1780 = vpop.permute.xlu0 %1779
    %1782 = vrot.lane.b32.xlu0 %v1777, 112
    %v1783 = vpop.permute.xlu0 %1782
    %v1785 = vsel %vm44, %v1780, %v1783
    %v1786 = vmul.f32 %v1785, %v138
    %1787 = vrot.lane.b32.xlu0 %v727, 96
    %v1788 = vpop.permute.xlu0 %1787
    %v1790 = vsel %vm144, %v115, %v1788
    %v1791 = vpack.c.bf16 %v1786, %v1786
    %v1793 = vsel %vm152, %v1791, 0
    %1795 = vmatprep.subr.bf16.mxu0 0
    %1796 = vmatpush1.bf16.msra.mxu0 %v150
    %1797 = vmatprep.subr.bf16.mxu0 0
    %1798 = vmatpush1.bf16.msra.mxu0 0
    %1799 = vmatprep.subr.bf16.mxu0 0
    %1800 = vmatpush1.bf16.msra.mxu0 0
    %1801 = vmatprep.subr.bf16.mxu0 0
    %1802 = vmatpush1.bf16.msra.mxu0 0
    %1803 = vmatprep.subr.bf16.mxu0 0
    %1804 = vmatpush1.bf16.msra.mxu0 0
    %1805 = vmatprep.subr.bf16.mxu0 0
    %1806 = vmatpush1.bf16.msra.mxu0 0
    %1807 = vmatprep.subr.bf16.mxu0 0
    %1808 = vmatpush1.bf16.msra.mxu0 0
    %1809 = vmatprep.subr.bf16.mxu0 0
    %1810 = vmatpush1.bf16.msra.mxu0 0
    %1811 = vmatprep.subr.bf16.mxu0 0
    %1812 = vmatpush1.bf16.msra.mxu0 0
    %1813 = vmatprep.subr.bf16.mxu0 0
    %1814 = vmatpush1.bf16.msra.mxu0 0
    %1815 = vmatprep.subr.bf16.mxu0 0
    %1816 = vmatpush1.bf16.msra.mxu0 0
    %1817 = vmatprep.subr.bf16.mxu0 0
    %1818 = vmatpush1.bf16.msra.mxu0 0
    %1819 = vmatprep.subr.bf16.mxu0 0
    %1820 = vmatpush1.bf16.msra.mxu0 0
    %1821 = vmatprep.subr.bf16.mxu0 0
    %1822 = vmatpush1.bf16.msra.mxu0 0
    %1823 = vmatprep.subr.bf16.mxu0 0
    %1824 = vmatpush1.bf16.msra.mxu0 0
    %1825 = vmatprep.subr.bf16.mxu0 0
    %1826 = vmatpush1.bf16.msra.mxu0 0
    %1827 = vmatprep.mubr.bf16.mxu0 0
    %1828 = vmatmul.mubr.bf16.gmra.mrb[0].mxu0 %v1793
    %v1829 = vpop.f32.mrb[0].mxu0
    %v1830 = vadd.f32 0.0, %v1829
    %v1831 = vpop.f32.mrb[0].mxu0
    %v1832 = vpop.f32.mrb[0].mxu0
    %v1833 = vpop.f32.mrb[0].mxu0
    %1834 = vdwg.mxu0
    %v1835 = vadd.f32 %v1790, %v1830
    %v1836 = vmul.f32 %v1835, 0.5
    %v1837 = vtanh.pop %v1836
    %v1838 = vmul.f32 %v1837, 0.5
    %v1839 = vadd.f32 %v1838, 0.5
    %v1840 = vtanh.pop %v1835
    %v1841 = vmul.f32 %v1839, %v1771
    %1843 = vrot.lane.b32.xlu0 %v1840, 112
    %v1844 = vpop.permute.xlu0 %1843
    %v1846 = vmul.f32 %v1839, %v1844
    %1848 = vrot.lane.b32.xlu0 %v1846, 8
    %v1849 = vpop.permute.xlu0 %1848
    %v1851 = vadd.f32 %v1841, %v1849
    %v1852 = vtanh.pop %v1851
    %1854 = vrot.lane.b32.xlu0 %v1852, 16
    %v1855 = vpop.permute.xlu0 %1854
    %v1857 = vmul.f32 %v1839, %v1855
    %1859 = vrot.lane.b32.xlu0 %v1857, 104
    %v1860 = vpop.permute.xlu0 %1859
    %1862 = vrot.lane.b32.xlu0 %v1857, 112
    %v1863 = vpop.permute.xlu0 %1862
    %v1865 = vsel %vm44, %v1860, %v1863
    %v1866 = vmul.f32 %v1865, %v138
    %1868 = vrot.lane.b32.xlu0 %v313, 96
    %v1869 = vpop.permute.xlu0 %1868
    %v1871 = vsel %vm144, %v315, %v1869
    %v1872 = vpack.c.bf16 %v1866, %v1866
    %v1874 = vsel %vm152, %v1872, 0
    %1876 = vmatprep.subr.bf16.mxu0 0
    %1877 = vmatpush1.bf16.msra.mxu0 %v150
    %1878 = vmatprep.subr.bf16.mxu0 0
    %1879 = vmatpush1.bf16.msra.mxu0 0
    %1880 = vmatprep.subr.bf16.mxu0 0
    %1881 = vmatpush1.bf16.msra.mxu0 0
    %1882 = vmatprep.subr.bf16.mxu0 0
    %1883 = vmatpush1.bf16.msra.mxu0 0
    %1884 = vmatprep.subr.bf16.mxu0 0
    %1885 = vmatpush1.bf16.msra.mxu0 0
    %1886 = vmatprep.subr.bf16.mxu0 0
    %1887 = vmatpush1.bf16.msra.mxu0 0
    %1888 = vmatprep.subr.bf16.mxu0 0
    %1889 = vmatpush1.bf16.msra.mxu0 0
    %1890 = vmatprep.subr.bf16.mxu0 0
    %1891 = vmatpush1.bf16.msra.mxu0 0
    %1892 = vmatprep.subr.bf16.mxu0 0
    %1893 = vmatpush1.bf16.msra.mxu0 0
    %1894 = vmatprep.subr.bf16.mxu0 0
    %1895 = vmatpush1.bf16.msra.mxu0 0
    %1896 = vmatprep.subr.bf16.mxu0 0
    %1897 = vmatpush1.bf16.msra.mxu0 0
    %1898 = vmatprep.subr.bf16.mxu0 0
    %1899 = vmatpush1.bf16.msra.mxu0 0
    %1900 = vmatprep.subr.bf16.mxu0 0
    %1901 = vmatpush1.bf16.msra.mxu0 0
    %1902 = vmatprep.subr.bf16.mxu0 0
    %1903 = vmatpush1.bf16.msra.mxu0 0
    %1904 = vmatprep.subr.bf16.mxu0 0
    %1905 = vmatpush1.bf16.msra.mxu0 0
    %1906 = vmatprep.subr.bf16.mxu0 0
    %1907 = vmatpush1.bf16.msra.mxu0 0
    %1908 = vmatprep.mubr.bf16.mxu0 0
    %1909 = vmatmul.mubr.bf16.gmra.mrb[0].mxu0 %v1874
    %v1910 = vpop.f32.mrb[0].mxu0
    %v1911 = vadd.f32 0.0, %v1910
    %v1912 = vpop.f32.mrb[0].mxu0
    %v1913 = vpop.f32.mrb[0].mxu0
    %v1914 = vpop.f32.mrb[0].mxu0
    %1915 = vdwg.mxu0
    %v1916 = vadd.f32 %v1871, %v1911
    %v1917 = vmul.f32 %v1916, 0.5
    %v1918 = vtanh.pop %v1917
    %v1919 = vmul.f32 %v1918, 0.5
    %v1920 = vadd.f32 %v1919, 0.5
    %v1921 = vtanh.pop %v1916
    %v1922 = vmul.f32 %v1920, %v1851
    %1924 = vrot.lane.b32.xlu0 %v1921, 112
    %v1925 = vpop.permute.xlu0 %1924
    %v1927 = vmul.f32 %v1920, %v1925
    %1929 = vrot.lane.b32.xlu0 %v1927, 8
    %v1930 = vpop.permute.xlu0 %1929
    %v1932 = vadd.f32 %v1922, %v1930
    %v1933 = vtanh.pop %v1932
    %1935 = vrot.lane.b32.xlu0 %v1933, 16
    %v1936 = vpop.permute.xlu0 %1935
    %v1938 = vmul.f32 %v1920, %v1936
    %1940 = vrot.lane.b32.xlu0 %v1938, 104
    %v1941 = vpop.permute.xlu0 %1940
    %1943 = vrot.lane.b32.xlu0 %v1938, 112
    %v1944 = vpop.permute.xlu0 %1943
    %v1946 = vsel %vm44, %v1941, %v1944
    %v1947 = vmul.f32 %v1946, %v138
    %1949 = vrot.lane.b32.xlu0 %v229, 96
    %v1950 = vpop.permute.xlu0 %1949
    %v1952 = vsel %vm144, %v232, %v1950
    %v1953 = vpack.c.bf16 %v1947, %v1947
    %v1955 = vsel %vm152, %v1953, 0
    %1957 = vmatprep.subr.bf16.mxu0 0
    %1958 = vmatpush1.bf16.msra.mxu0 %v150
    %1959 = vmatprep.subr.bf16.mxu0 0
    %1960 = vmatpush1.bf16.msra.mxu0 0
    %1961 = vmatprep.subr.bf16.mxu0 0
    %1962 = vmatpush1.bf16.msra.mxu0 0
    %1963 = vmatprep.subr.bf16.mxu0 0
    %1964 = vmatpush1.bf16.msra.mxu0 0
    %1965 = vmatprep.subr.bf16.mxu0 0
    %1966 = vmatpush1.bf16.msra.mxu0 0
    %1967 = vmatprep.subr.bf16.mxu0 0
    %1968 = vmatpush1.bf16.msra.mxu0 0
    %1969 = vmatprep.subr.bf16.mxu0 0
    %1970 = vmatpush1.bf16.msra.mxu0 0
    %1971 = vmatprep.subr.bf16.mxu0 0
    %1972 = vmatpush1.bf16.msra.mxu0 0
    %1973 = vmatprep.subr.bf16.mxu0 0
    %1974 = vmatpush1.bf16.msra.mxu0 0
    %1975 = vmatprep.subr.bf16.mxu0 0
    %1976 = vmatpush1.bf16.msra.mxu0 0
    %1977 = vmatprep.subr.bf16.mxu0 0
    %1978 = vmatpush1.bf16.msra.mxu0 0
    %1979 = vmatprep.subr.bf16.mxu0 0
    %1980 = vmatpush1.bf16.msra.mxu0 0
    %1981 = vmatprep.subr.bf16.mxu0 0
    %1982 = vmatpush1.bf16.msra.mxu0 0
    %1983 = vmatprep.subr.bf16.mxu0 0
    %1984 = vmatpush1.bf16.msra.mxu0 0
    %1985 = vmatprep.subr.bf16.mxu0 0
    %1986 = vmatpush1.bf16.msra.mxu0 0
    %1987 = vmatprep.subr.bf16.mxu0 0
    %1988 = vmatpush1.bf16.msra.mxu0 0
    %1989 = vmatprep.mubr.bf16.mxu0 0
    %1990 = vmatmul.mubr.bf16.gmra.mrb[0].mxu0 %v1955
    %v1991 = vpop.f32.mrb[0].mxu0
    %v1992 = vadd.f32 0.0, %v1991
    %v1993 = vpop.f32.mrb[0].mxu0
    %v1994 = vpop.f32.mrb[0].mxu0
    %v1995 = vpop.f32.mrb[0].mxu0
    %1996 = vdwg.mxu0
    %v1997 = vadd.f32 %v1952, %v1992
    %v1998 = vmul.f32 %v1997, 0.5
    %v1999 = vtanh.pop %v1998
    %v2000 = vmul.f32 %v1999, 0.5
    %v2001 = vadd.f32 %v2000, 0.5
    %v2002 = vtanh.pop %v1997
    %v2003 = vmul.f32 %v2001, %v1932
    %2005 = vrot.lane.b32.xlu0 %v2002, 112
    %v2006 = vpop.permute.xlu0 %2005
    %v2008 = vmul.f32 %v2001, %v2006
    %2010 = vrot.lane.b32.xlu0 %v2008, 8
    %v2011 = vpop.permute.xlu0 %2010
    %v2013 = vadd.f32 %v2003, %v2011
    %v2014 = vtanh.pop %v2013
    %2016 = vrot.lane.b32.xlu0 %v2014, 16
    %v2017 = vpop.permute.xlu0 %2016
    %v2019 = vmul.f32 %v2001, %v2017
    %2021 = vrot.lane.b32.xlu0 %v2019, 104
    %v2022 = vpop.permute.xlu0 %2021
    %2024 = vrot.lane.b32.xlu0 %v2019, 112
    %v2025 = vpop.permute.xlu0 %2024
    %v2027 = vsel %vm44, %v2022, %v2025
    %v2028 = vmul.f32 %v2027, %v138
    %2030 = vrot.lane.b32.xlu0 %v96, 96
    %v2031 = vpop.permute.xlu0 %2030
    %v2033 = vsel %vm144, %v478, %v2031
    %v2034 = vpack.c.bf16 %v2028, %v2028
    %v2036 = vsel %vm152, %v2034, 0
    %2038 = vmatprep.subr.bf16.mxu0 0
    %2039 = vmatpush1.bf16.msra.mxu0 %v150
    %2040 = vmatprep.subr.bf16.mxu0 0
    %2041 = vmatpush1.bf16.msra.mxu0 0
    %2042 = vmatprep.subr.bf16.mxu0 0
    %2043 = vmatpush1.bf16.msra.mxu0 0
    %2044 = vmatprep.subr.bf16.mxu0 0
    %2045 = vmatpush1.bf16.msra.mxu0 0
    %2046 = vmatprep.subr.bf16.mxu0 0
    %2047 = vmatpush1.bf16.msra.mxu0 0
    %2048 = vmatprep.subr.bf16.mxu0 0
    %2049 = vmatpush1.bf16.msra.mxu0 0
    %2050 = vmatprep.subr.bf16.mxu0 0
    %2051 = vmatpush1.bf16.msra.mxu0 0
    %2052 = vmatprep.subr.bf16.mxu0 0
    %2053 = vmatpush1.bf16.msra.mxu0 0
    %2054 = vmatprep.subr.bf16.mxu0 0
    %2055 = vmatpush1.bf16.msra.mxu0 0
    %2056 = vmatprep.subr.bf16.mxu0 0
    %2057 = vmatpush1.bf16.msra.mxu0 0
    %2058 = vmatprep.subr.bf16.mxu0 0
    %2059 = vmatpush1.bf16.msra.mxu0 0
    %2060 = vmatprep.subr.bf16.mxu0 0
    %2061 = vmatpush1.bf16.msra.mxu0 0
    %2062 = vmatprep.subr.bf16.mxu0 0
    %2063 = vmatpush1.bf16.msra.mxu0 0
    %2064 = vmatprep.subr.bf16.mxu0 0
    %2065 = vmatpush1.bf16.msra.mxu0 0
    %2066 = vmatprep.subr.bf16.mxu0 0
    %2067 = vmatpush1.bf16.msra.mxu0 0
    %2068 = vmatprep.subr.bf16.mxu0 0
    %2069 = vmatpush1.bf16.msra.mxu0 0
    %2070 = vmatprep.mubr.bf16.mxu0 0
    %2071 = vmatmul.mubr.bf16.gmra.mrb[0].mxu0 %v2036
    %v2072 = vpop.f32.mrb[0].mxu0
    %v2073 = vadd.f32 0.0, %v2072
    %v2074 = vpop.f32.mrb[0].mxu0
    %v2075 = vpop.f32.mrb[0].mxu0
    %v2076 = vpop.f32.mrb[0].mxu0
    %2077 = vdwg.mxu0
    %v2078 = vadd.f32 %v2033, %v2073
    %v2079 = vmul.f32 %v2078, 0.5
    %v2080 = vtanh.pop %v2079
    %v2081 = vmul.f32 %v2080, 0.5
    %v2082 = vadd.f32 %v2081, 0.5
    %v2083 = vtanh.pop %v2078
    %v2084 = vmul.f32 %v2082, %v2013
    %2086 = vrot.lane.b32.xlu0 %v2083, 112
    %v2087 = vpop.permute.xlu0 %2086
    %v2089 = vmul.f32 %v2082, %v2087
    %2091 = vrot.lane.b32.xlu0 %v2089, 8
    %v2092 = vpop.permute.xlu0 %2091
    %v2094 = vadd.f32 %v2084, %v2092
    %v2095 = vtanh.pop %v2094
    %2097 = vrot.lane.b32.xlu0 %v2095, 16
    %v2098 = vpop.permute.xlu0 %2097
    %v2100 = vmul.f32 %v2082, %v2098
    %2102 = vrot.lane.b32.xlu0 %v2100, 104
    %v2103 = vpop.permute.xlu0 %2102
    %2105 = vrot.lane.b32.xlu0 %v2100, 112
    %v2106 = vpop.permute.xlu0 %2105
    %v2108 = vsel %vm44, %v2103, %v2106
    %v2109 = vmul.f32 %v2108, %v138
    %2110 = vrot.lane.b32.xlu0 %v396, 96
    %v2111 = vpop.permute.xlu0 %2110
    %v2113 = vsel %vm144, %v120, %v2111
    %v2114 = vpack.c.bf16 %v2109, %v2109
    %v2116 = vsel %vm152, %v2114, 0
    %2118 = vmatprep.subr.bf16.mxu0 0
    %2119 = vmatpush1.bf16.msra.mxu0 %v150
    %2120 = vmatprep.subr.bf16.mxu0 0
    %2121 = vmatpush1.bf16.msra.mxu0 0
    %2122 = vmatprep.subr.bf16.mxu0 0
    %2123 = vmatpush1.bf16.msra.mxu0 0
    %2124 = vmatprep.subr.bf16.mxu0 0
    %2125 = vmatpush1.bf16.msra.mxu0 0
    %2126 = vmatprep.subr.bf16.mxu0 0
    %2127 = vmatpush1.bf16.msra.mxu0 0
    %2128 = vmatprep.subr.bf16.mxu0 0
    %2129 = vmatpush1.bf16.msra.mxu0 0
    %2130 = vmatprep.subr.bf16.mxu0 0
    %2131 = vmatpush1.bf16.msra.mxu0 0
    %2132 = vmatprep.subr.bf16.mxu0 0
    %2133 = vmatpush1.bf16.msra.mxu0 0
    %2134 = vmatprep.subr.bf16.mxu0 0
    %2135 = vmatpush1.bf16.msra.mxu0 0
    %2136 = vmatprep.subr.bf16.mxu0 0
    %2137 = vmatpush1.bf16.msra.mxu0 0
    %2138 = vmatprep.subr.bf16.mxu0 0
    %2139 = vmatpush1.bf16.msra.mxu0 0
    %2140 = vmatprep.subr.bf16.mxu0 0
    %2141 = vmatpush1.bf16.msra.mxu0 0
    %2142 = vmatprep.subr.bf16.mxu0 0
    %2143 = vmatpush1.bf16.msra.mxu0 0
    %2144 = vmatprep.subr.bf16.mxu0 0
    %2145 = vmatpush1.bf16.msra.mxu0 0
    %2146 = vmatprep.subr.bf16.mxu0 0
    %2147 = vmatpush1.bf16.msra.mxu0 0
    %2148 = vmatprep.subr.bf16.mxu0 0
    %2149 = vmatpush1.bf16.msra.mxu0 0
    %2150 = vmatprep.mubr.bf16.mxu0 0
    %2151 = vmatmul.mubr.bf16.gmra.mrb[0].mxu0 %v2116
    %v2152 = vpop.f32.mrb[0].mxu0
    %v2153 = vadd.f32 0.0, %v2152
    %v2154 = vpop.f32.mrb[0].mxu0
    %v2155 = vpop.f32.mrb[0].mxu0
    %v2156 = vpop.f32.mrb[0].mxu0
    %2157 = vdwg.mxu0
    %v2158 = vadd.f32 %v2113, %v2153
    %v2159 = vmul.f32 %v2158, 0.5
    %v2160 = vtanh.pop %v2159
    %v2161 = vmul.f32 %v2160, 0.5
    %v2162 = vadd.f32 %v2161, 0.5
    %v2163 = vtanh.pop %v2158
    %v2164 = vmul.f32 %v2162, %v2094
    %2166 = vrot.lane.b32.xlu0 %v2163, 112
    %v2167 = vpop.permute.xlu0 %2166
    %v2169 = vmul.f32 %v2162, %v2167
    %2171 = vrot.lane.b32.xlu0 %v2169, 8
    %v2172 = vpop.permute.xlu0 %2171
    %v2174 = vadd.f32 %v2164, %v2172
    %v2175 = vtanh.pop %v2174
    %2177 = vrot.lane.b32.xlu0 %v2175, 16
    %v2178 = vpop.permute.xlu0 %2177
    %v2180 = vmul.f32 %v2162, %v2178
    %v2182 = vrot.slane %v2180, 2
    %2183 = vrot.lane.b32.xlu0 %v2182, 112
    %v2184 = vpop.permute.xlu0 %2183
    %v2186 = vrot.slane %v218, 1
    %2187 = vrot.lane.b32.xlu0 %v2186, 120
    %v2188 = vpop.permute.xlu0 %2187
    %v2190 = vrot.slane %v2180, 3
    %2192 = vrot.lane.b32.xlu0 %v303, 8
    %v2193 = vpop.permute.xlu0 %2192
    %v2195 = vrot.slane %v2100, 2
    %2196 = vrot.lane.b32.xlu0 %v2195, 16
    %v2197 = vpop.permute.xlu0 %2196
    %v2199 = vrot.slane %v303, 1
    %2200 = vrot.lane.b32.xlu0 %v2199, 24
    %v2201 = vpop.permute.xlu0 %2200
    %v2203 = vrot.slane %v2100, 3
    %2204 = vrot.lane.b32.xlu0 %v2203, 32
    %v2205 = vpop.permute.xlu0 %2204
    %2207 = vrot.lane.b32.xlu0 %v386, 40
    %v2208 = vpop.permute.xlu0 %2207
    %v2210 = vrot.slane %v2019, 2
    %2211 = vrot.lane.b32.xlu0 %v2210, 48
    %v2212 = vpop.permute.xlu0 %2211
    %v2214 = vrot.slane %v386, 1
    %2215 = vrot.lane.b32.xlu0 %v2214, 56
    %v2216 = vpop.permute.xlu0 %2215
    %v2218 = vrot.slane %v2019, 3
    %2219 = vrot.lane.b32.xlu0 %v2218, 64
    %v2220 = vpop.permute.xlu0 %2219
    %2222 = vrot.lane.b32.xlu0 %v468, 72
    %v2223 = vpop.permute.xlu0 %2222
    %v2225 = vrot.slane %v1938, 2
    %2226 = vrot.lane.b32.xlu0 %v2225, 80
    %v2227 = vpop.permute.xlu0 %2226
    %v2229 = vrot.slane %v468, 1
    %2230 = vrot.lane.b32.xlu0 %v2229, 88
    %v2231 = vpop.permute.xlu0 %2230
    %v2233 = vrot.slane %v1938, 3
    %2234 = vrot.lane.b32.xlu0 %v2233, 96
    %v2235 = vpop.permute.xlu0 %2234
    %v2237 = vsel %vm44, %v221, %v2184
    %v2238 = vsel %vm152, %v2237, %v2188
    %vm2239 = vcmask 195584
    %v2240 = vsel %vm2239, %v2238, %v2190
    %vm2241 = vcmask 261120
    %v2242 = vsel %vm2241, %v2240, %v2193
    %vm2243 = vcmask 326656
    %v2244 = vsel %vm2243, %v2242, %v2197
    %vm2245 = vcmask 392192
    %v2246 = vsel %vm2245, %v2244, %v2201
    %vm2247 = vcmask 457728
    %v2248 = vsel %vm2247, %v2246, %v2205
    %vm2249 = vcmask 523264
    %v2250 = vsel %vm2249, %v2248, %v2208
    %vm2251 = vcmask 588800
    %v2252 = vsel %vm2251, %v2250, %v2212
    %vm2253 = vcmask 654336
    %v2254 = vsel %vm2253, %v2252, %v2216
    %vm2255 = vcmask 719872
    %v2256 = vsel %vm2255, %v2254, %v2220
    %vm2257 = vcmask 785408
    %v2258 = vsel %vm2257, %v2256, %v2223
    %vm2259 = vcmask 850944
    %v2260 = vsel %vm2259, %v2258, %v2227
    %vm2261 = vcmask 916480
    %v2262 = vsel %vm2261, %v2260, %v2231
    %vm2263 = vcmask 982016
    %v2264 = vsel %vm2263, %v2262, %v2235
    %v2265 = vrot.slane %v1857, 2
    %2266 = vrot.lane.b32.xlu0 %v2265, 112
    %v2267 = vpop.permute.xlu0 %2266
    %v2269 = vrot.slane %v549, 1
    %2270 = vrot.lane.b32.xlu0 %v2269, 120
    %v2271 = vpop.permute.xlu0 %2270
    %v2273 = vrot.slane %v1857, 3
    %2275 = vrot.lane.b32.xlu0 %v634, 8
    %v2276 = vpop.permute.xlu0 %2275
    %v2278 = vrot.slane %v1777, 2
    %2279 = vrot.lane.b32.xlu0 %v2278, 16
    %v2280 = vpop.permute.xlu0 %2279
    %v2282 = vrot.slane %v634, 1
    %2283 = vrot.lane.b32.xlu0 %v2282, 24
    %v2284 = vpop.permute.xlu0 %2283
    %v2286 = vrot.slane %v1777, 3
    %2287 = vrot.lane.b32.xlu0 %v2286, 32
    %v2288 = vpop.permute.xlu0 %2287
    %2290 = vrot.lane.b32.xlu0 %v717, 40
    %v2291 = vpop.permute.xlu0 %2290
    %v2293 = vrot.slane %v1696, 2
    %2294 = vrot.lane.b32.xlu0 %v2293, 48
    %v2295 = vpop.permute.xlu0 %2294
    %v2297 = vrot.slane %v717, 1
    %2298 = vrot.lane.b32.xlu0 %v2297, 56
    %v2299 = vpop.permute.xlu0 %2298
    %v2301 = vrot.slane %v1696, 3
    %2302 = vrot.lane.b32.xlu0 %v2301, 64
    %v2303 = vpop.permute.xlu0 %2302
    %2305 = vrot.lane.b32.xlu0 %v799, 72
    %v2306 = vpop.permute.xlu0 %2305
    %v2308 = vrot.slane %v1615, 2
    %2309 = vrot.lane.b32.xlu0 %v2308, 80
    %v2310 = vpop.permute.xlu0 %2309
    %v2312 = vrot.slane %v799, 1
    %2313 = vrot.lane.b32.xlu0 %v2312, 88
    %v2314 = vpop.permute.xlu0 %2313
    %v2316 = vrot.slane %v1615, 3
    %2317 = vrot.lane.b32.xlu0 %v2316, 96
    %v2318 = vpop.permute.xlu0 %2317
    %v2320 = vsel %vm44, %v552, %v2267
    %v2321 = vsel %vm152, %v2320, %v2271
    %v2322 = vsel %vm2239, %v2321, %v2273
    %v2323 = vsel %vm2241, %v2322, %v2276
    %v2324 = vsel %vm2243, %v2323, %v2280
    %v2325 = vsel %vm2245, %v2324, %v2284
    %v2326 = vsel %vm2247, %v2325, %v2288
    %v2327 = vsel %vm2249, %v2326, %v2291
    %v2328 = vsel %vm2251, %v2327, %v2295
    %v2329 = vsel %vm2253, %v2328, %v2299
    %v2330 = vsel %vm2255, %v2329, %v2303
    %v2331 = vsel %vm2257, %v2330, %v2306
    %v2332 = vsel %vm2259, %v2331, %v2310
    %v2333 = vsel %vm2261, %v2332, %v2314
    %v2334 = vsel %vm2263, %v2333, %v2318
    %v2335 = vrot.slane %v1534, 2
    %2336 = vrot.lane.b32.xlu0 %v2335, 112
    %v2337 = vpop.permute.xlu0 %2336
    %v2339 = vrot.slane %v880, 1
    %2340 = vrot.lane.b32.xlu0 %v2339, 120
    %v2341 = vpop.permute.xlu0 %2340
    %v2343 = vrot.slane %v1534, 3
    %2345 = vrot.lane.b32.xlu0 %v965, 8
    %v2346 = vpop.permute.xlu0 %2345
    %v2348 = vrot.slane %v1454, 2
    %2349 = vrot.lane.b32.xlu0 %v2348, 16
    %v2350 = vpop.permute.xlu0 %2349
    %v2352 = vrot.slane %v965, 1
    %2353 = vrot.lane.b32.xlu0 %v2352, 24
    %v2354 = vpop.permute.xlu0 %2353
    %v2356 = vrot.slane %v1454, 3
    %2357 = vrot.lane.b32.xlu0 %v2356, 32
    %v2358 = vpop.permute.xlu0 %2357
    %2360 = vrot.lane.b32.xlu0 %v1048, 40
    %v2361 = vpop.permute.xlu0 %2360
    %v2363 = vrot.slane %v1373, 2
    %2364 = vrot.lane.b32.xlu0 %v2363, 48
    %v2365 = vpop.permute.xlu0 %2364
    %v2367 = vrot.slane %v1048, 1
    %2368 = vrot.lane.b32.xlu0 %v2367, 56
    %v2369 = vpop.permute.xlu0 %2368
    %v2371 = vrot.slane %v1373, 3
    %2372 = vrot.lane.b32.xlu0 %v2371, 64
    %v2373 = vpop.permute.xlu0 %2372
    %2375 = vrot.lane.b32.xlu0 %v1130, 72
    %v2376 = vpop.permute.xlu0 %2375
    %v2378 = vrot.slane %v1292, 2
    %2379 = vrot.lane.b32.xlu0 %v2378, 80
    %v2380 = vpop.permute.xlu0 %2379
    %v2382 = vrot.slane %v1130, 1
    %2383 = vrot.lane.b32.xlu0 %v2382, 88
    %v2384 = vpop.permute.xlu0 %2383
    %v2386 = vrot.slane %v1292, 3
    %2387 = vrot.lane.b32.xlu0 %v2386, 96
    %v2388 = vpop.permute.xlu0 %2387
    %v2390 = vsel %vm44, %v883, %v2337
    %v2391 = vsel %vm152, %v2390, %v2341
    %v2392 = vsel %vm2239, %v2391, %v2343
    %v2393 = vsel %vm2241, %v2392, %v2346
    %v2394 = vsel %vm2243, %v2393, %v2350
    %v2395 = vsel %vm2245, %v2394, %v2354
    %v2396 = vsel %vm2247, %v2395, %v2358
    %v2397 = vsel %vm2249, %v2396, %v2361
    %v2398 = vsel %vm2251, %v2397, %v2365
    %v2399 = vsel %vm2253, %v2398, %v2369
    %v2400 = vsel %vm2255, %v2399, %v2373
    %v2401 = vsel %vm2257, %v2400, %v2376
    %v2402 = vsel %vm2259, %v2401, %v2380
    %v2403 = vsel %vm2261, %v2402, %v2384
    %v2404 = vsel %vm2263, %v2403, %v2388
    %v2405 = vrot.slane %v1211, 2
    %2406 = vrot.lane.b32.xlu0 %v2405, 112
    %v2407 = vpop.permute.xlu0 %2406
    %v2409 = vsel %vm44, %v1214, %v2407
    %v2410 = vrot.slane %v1292, 7
    %2411 = vrot.lane.b32.xlu0 %v2410, 120
    %v2412 = vpop.permute.xlu0 %2411
    %2415 = vrot.lane.b32.xlu0 %v1292, 8
    %v2416 = vpop.permute.xlu0 %2415
    %v2418 = vrot.slane %v1130, 2
    %2419 = vrot.lane.b32.xlu0 %v2418, 16
    %v2420 = vpop.permute.xlu0 %2419
    %v2422 = vrot.slane %v1373, 7
    %2423 = vrot.lane.b32.xlu0 %v2422, 24
    %v2424 = vpop.permute.xlu0 %2423
    %2426 = vrot.lane.b32.xlu0 %v2367, 32
    %v2427 = vpop.permute.xlu0 %2426
    %2429 = vrot.lane.b32.xlu0 %v1373, 40
    %v2430 = vpop.permute.xlu0 %2429
    %v2432 = vrot.slane %v1048, 2
    %2433 = vrot.lane.b32.xlu0 %v2432, 48
    %v2434 = vpop.permute.xlu0 %2433
    %v2436 = vrot.slane %v1454, 7
    %2437 = vrot.lane.b32.xlu0 %v2436, 56
    %v2438 = vpop.permute.xlu0 %2437
    %2440 = vrot.lane.b32.xlu0 %v2352, 64
    %v2441 = vpop.permute.xlu0 %2440
    %2443 = vrot.lane.b32.xlu0 %v1454, 72
    %v2444 = vpop.permute.xlu0 %2443
    %v2446 = vrot.slane %v965, 2
    %2447 = vrot.lane.b32.xlu0 %v2446, 80
    %v2448 = vpop.permute.xlu0 %2447
    %v2450 = vrot.slane %v1534, 7
    %2451 = vrot.lane.b32.xlu0 %v2450, 88
    %v2452 = vpop.permute.xlu0 %2451
    %2454 = vrot.lane.b32.xlu0 %v2339, 96
    %v2455 = vpop.permute.xlu0 %2454
    %v2457 = vsel %vm152, %v2409, %v2412
    %v2458 = vsel %vm2239, %v2457, %v2382
    %v2459 = vsel %vm2241, %v2458, %v2416
    %v2460 = vsel %vm2243, %v2459, %v2420
    %v2461 = vsel %vm2245, %v2460, %v2424
    %v2462 = vsel %vm2247, %v2461, %v2427
    %v2463 = vsel %vm2249, %v2462, %v2430
    %v2464 = vsel %vm2251, %v2463, %v2434
    %v2465 = vsel %vm2253, %v2464, %v2438
    %v2466 = vsel %vm2255, %v2465, %v2441
    %v2467 = vsel %vm2257, %v2466, %v2444
    %v2468 = vsel %vm2259, %v2467, %v2448
    %v2469 = vsel %vm2261, %v2468, %v2452
    %v2470 = vsel %vm2263, %v2469, %v2455
    %v2471 = vrot.slane %v880, 2
    %2472 = vrot.lane.b32.xlu0 %v2471, 112
    %v2473 = vpop.permute.xlu0 %2472
    %v2475 = vrot.slane %v1615, 7
    %2476 = vrot.lane.b32.xlu0 %v2475, 120
    %v2477 = vpop.permute.xlu0 %2476
    %2480 = vrot.lane.b32.xlu0 %v1615, 8
    %v2481 = vpop.permute.xlu0 %2480
    %v2483 = vrot.slane %v799, 2
    %2484 = vrot.lane.b32.xlu0 %v2483, 16
    %v2485 = vpop.permute.xlu0 %2484
    %v2487 = vrot.slane %v1696, 7
    %2488 = vrot.lane.b32.xlu0 %v2487, 24
    %v2489 = vpop.permute.xlu0 %2488
    %2491 = vrot.lane.b32.xlu0 %v2297, 32
    %v2492 = vpop.permute.xlu0 %2491
    %2494 = vrot.lane.b32.xlu0 %v1696, 40
    %v2495 = vpop.permute.xlu0 %2494
    %v2497 = vrot.slane %v717, 2
    %2498 = vrot.lane.b32.xlu0 %v2497, 48
    %v2499 = vpop.permute.xlu0 %2498
    %v2501 = vrot.slane %v1777, 7
    %2502 = vrot.lane.b32.xlu0 %v2501, 56
    %v2503 = vpop.permute.xlu0 %2502
    %2505 = vrot.lane.b32.xlu0 %v2282, 64
    %v2506 = vpop.permute.xlu0 %2505
    %2508 = vrot.lane.b32.xlu0 %v1777, 72
    %v2509 = vpop.permute.xlu0 %2508
    %v2511 = vrot.slane %v634, 2
    %2512 = vrot.lane.b32.xlu0 %v2511, 80
    %v2513 = vpop.permute.xlu0 %2512
    %v2515 = vrot.slane %v1857, 7
    %2516 = vrot.lane.b32.xlu0 %v2515, 88
    %v2517 = vpop.permute.xlu0 %2516
    %2519 = vrot.lane.b32.xlu0 %v2269, 96
    %v2520 = vpop.permute.xlu0 %2519
    %v2522 = vsel %vm44, %v1537, %v2473
    %v2523 = vsel %vm152, %v2522, %v2477
    %v2524 = vsel %vm2239, %v2523, %v2312
    %v2525 = vsel %vm2241, %v2524, %v2481
    %v2526 = vsel %vm2243, %v2525, %v2485
    %v2527 = vsel %vm2245, %v2526, %v2489
    %v2528 = vsel %vm2247, %v2527, %v2492
    %v2529 = vsel %vm2249, %v2528, %v2495
    %v2530 = vsel %vm2251, %v2529, %v2499
    %v2531 = vsel %vm2253, %v2530, %v2503
    %v2532 = vsel %vm2255, %v2531, %v2506
    %v2533 = vsel %vm2257, %v2532, %v2509
    %v2534 = vsel %vm2259, %v2533, %v2513
    %v2535 = vsel %vm2261, %v2534, %v2517
    %v2536 = vsel %vm2263, %v2535, %v2520
    %v2537 = vrot.slane %v549, 2
    %2538 = vrot.lane.b32.xlu0 %v2537, 112
    %v2539 = vpop.permute.xlu0 %2538
    %v2541 = vrot.slane %v1938, 7
    %2542 = vrot.lane.b32.xlu0 %v2541, 120
    %v2543 = vpop.permute.xlu0 %2542
    %2546 = vrot.lane.b32.xlu0 %v1938, 8
    %v2547 = vpop.permute.xlu0 %2546
    %v2549 = vrot.slane %v468, 2
    %2550 = vrot.lane.b32.xlu0 %v2549, 16
    %v2551 = vpop.permute.xlu0 %2550
    %v2553 = vrot.slane %v2019, 7
    %2554 = vrot.lane.b32.xlu0 %v2553, 24
    %v2555 = vpop.permute.xlu0 %2554
    %2557 = vrot.lane.b32.xlu0 %v2214, 32
    %v2558 = vpop.permute.xlu0 %2557
    %2560 = vrot.lane.b32.xlu0 %v2019, 40
    %v2561 = vpop.permute.xlu0 %2560
    %v2563 = vrot.slane %v386, 2
    %2564 = vrot.lane.b32.xlu0 %v2563, 48
    %v2565 = vpop.permute.xlu0 %2564
    %v2567 = vrot.slane %v2100, 7
    %2568 = vrot.lane.b32.xlu0 %v2567, 56
    %v2569 = vpop.permute.xlu0 %2568
    %2571 = vrot.lane.b32.xlu0 %v2199, 64
    %v2572 = vpop.permute.xlu0 %2571
    %2574 = vrot.lane.b32.xlu0 %v2100, 72
    %v2575 = vpop.permute.xlu0 %2574
    %v2577 = vrot.slane %v303, 2
    %2578 = vrot.lane.b32.xlu0 %v2577, 80
    %v2579 = vpop.permute.xlu0 %2578
    %v2581 = vrot.slane %v2180, 7
    %2582 = vrot.lane.b32.xlu0 %v2581, 88
    %v2583 = vpop.permute.xlu0 %2582
    %2585 = vrot.lane.b32.xlu0 %v2186, 96
    %v2586 = vpop.permute.xlu0 %2585
    %v2588 = vsel %vm44, %v1860, %v2539
    %v2589 = vsel %vm152, %v2588, %v2543
    %v2590 = vsel %vm2239, %v2589, %v2229
    %v2591 = vsel %vm2241, %v2590, %v2547
    %v2592 = vsel %vm2243, %v2591, %v2551
    %v2593 = vsel %vm2245, %v2592, %v2555
    %v2594 = vsel %vm2247, %v2593, %v2558
    %v2595 = vsel %vm2249, %v2594, %v2561
    %v2596 = vsel %vm2251, %v2595, %v2565
    %v2597 = vsel %vm2253, %v2596, %v2569
    %v2598 = vsel %vm2255, %v2597, %v2572
    %v2599 = vsel %vm2257, %v2598, %v2575
    %v2600 = vsel %vm2259, %v2599, %v2579
    %v2601 = vsel %vm2261, %v2600, %v2583
    %v2602 = vsel %vm2263, %v2601, %v2586
    %2603 = vrot.lane.b32.xlu0 %v2180, 104
    %v2604 = vpop.permute.xlu0 %2603
    %v2606 = vrot.slane %v218, 2
    %2607 = vrot.lane.b32.xlu0 %v2606, 112
    %v2608 = vpop.permute.xlu0 %2607
    %v2610 = vsel %vm44, %v2604, %v2608
    %vm2611 = vcmask 1040384
    %v2612 = vsel %vm2611, %v2264, %v2470
    %v2613 = vsel %vm2611, %v2334, %v2536
    %v2614 = vsel %vm2611, %v2404, %v2602
    %v2615 = vsel %vm2611, %v2409, %v2610
    %v2616 = vpack.c.bf16 %v2612, %v2612
    %v2617 = vpack.c.bf16 %v2613, %v2613
    %v2618 = vpack.c.bf16 %v2614, %v2614
    %v2619 = vpack.c.bf16 %v2615, %v2615
    %v2620 = vld [vmem:[%s4] sm:$0xf]
    %v2621 = vld [vmem:[%s4 + $0x4] sm:$0xf]
    %v2622 = vld [vmem:[%s4 + $0x8] sm:$0xf]
    %v2623 = vld [vmem:[%s4 + $0xc] sm:$0xf]
    %v2624 = vld [vmem:[%s4 + $0x10] sm:$0xf]
    %v2625 = vld [vmem:[%s4 + $0x14] sm:$0xf]
    %v2626 = vld [vmem:[%s4 + $0x18] sm:$0xf]
    %v2627 = vld [vmem:[%s4 + $0x1c] sm:$0xf]
    %v2628 = vld [vmem:[%s4 + $0x20] sm:$0xf]
    %v2629 = vld [vmem:[%s4 + $0x24] sm:$0xf]
    %v2630 = vld [vmem:[%s4 + $0x28] sm:$0xf]
    %v2631 = vld [vmem:[%s4 + $0x2c] sm:$0xf]
    %v2632 = vld [vmem:[%s4 + $0x30] sm:$0xf]
    %v2633 = vld [vmem:[%s4 + $0x34] sm:$0xf]
    %v2634 = vld [vmem:[%s4 + $0x38] sm:$0xf]
    %v2635 = vld [vmem:[%s4 + $0x3c] sm:$0xf]
    %v2636 = vld [vmem:[%s4 + $0x40] sm:$0xf]
    %v2637 = vld [vmem:[%s4 + $0x44] sm:$0xf]
    %v2638 = vld [vmem:[%s4 + $0x48] sm:$0xf]
    %v2639 = vld [vmem:[%s4 + $0x4c] sm:$0xf]
    %v2640 = vld [vmem:[%s4 + $0x50] sm:$0xf]
    %v2641 = vld [vmem:[%s4 + $0x54] sm:$0xf]
    %v2642 = vld [vmem:[%s4 + $0x58] sm:$0xf]
    %v2643 = vld [vmem:[%s4 + $0x5c] sm:$0xf]
    %v2644 = vld [vmem:[%s4 + $0x60] sm:$0xf]
    %v2645 = vld [vmem:[%s4 + $0x64] sm:$0xf]
    %v2646 = vld [vmem:[%s4 + $0x68] sm:$0xf]
    %v2647 = vld [vmem:[%s4 + $0x6c] sm:$0xf]
    %v2648 = vld [vmem:[%s4 + $0x70] sm:$0xf]
    %v2649 = vld [vmem:[%s4 + $0x74] sm:$0xf]
    %v2650 = vld [vmem:[%s4 + $0x78] sm:$0xf]
    %v2651 = vld [vmem:[%s4 + $0x7c] sm:$0xf]
    %v2652 = vld [vmem:[%s4 + $0x80] sm:$0xf]
    %v2653 = vld [vmem:[%s4 + $0x84] sm:$0xf]
    %v2654 = vld [vmem:[%s4 + $0x88] sm:$0xf]
    %v2655 = vld [vmem:[%s4 + $0x8c] sm:$0xf]
    %v2656 = vld [vmem:[%s4 + $0x90] sm:$0xf]
    %v2657 = vld [vmem:[%s4 + $0x94] sm:$0xf]
    %v2658 = vld [vmem:[%s4 + $0x98] sm:$0xf]
    %v2659 = vld [vmem:[%s4 + $0x9c] sm:$0xf]
    %v2660 = vld [vmem:[%s4 + $0xa0] sm:$0xf]
    %v2661 = vld [vmem:[%s4 + $0xa4] sm:$0xf]
    %v2662 = vld [vmem:[%s4 + $0xa8] sm:$0xf]
    %v2663 = vld [vmem:[%s4 + $0xac] sm:$0xf]
    %v2664 = vld [vmem:[%s4 + $0xb0] sm:$0xf]
    %v2665 = vld [vmem:[%s4 + $0xb4] sm:$0xf]
    %v2666 = vld [vmem:[%s4 + $0xb8] sm:$0xf]
    %v2667 = vld [vmem:[%s4 + $0xbc] sm:$0xf]
    %v2668 = vld [vmem:[%s4 + $0xc0] sm:$0xf]
    %v2669 = vld [vmem:[%s4 + $0xc4] sm:$0xf]
    %v2670 = vld [vmem:[%s5] sm:$0x1]
    %v2672 = vlaneseq
    %v2673 = vshrl.u32 %v2672, 7
    %v2674 = vsub.s32 0, %v2673
    %v2675 = vrot.slane %v2670, %v2674
    %v2727 = vunpack.c.l.b16 %v2620
    %v2728 = vunpack.c.l.b16 %v2621
    %v2729 = vunpack.c.l.b16 %v2622
    %v2730 = vunpack.c.l.b16 %v2623
    %v2731 = vunpack.c.l.b16 %v2624
    %v2732 = vunpack.c.l.b16 %v2625
    %v2733 = vunpack.c.l.b16 %v2626
    %v2734 = vunpack.c.l.b16 %v2627
    %v2735 = vunpack.c.l.b16 %v2628
    %v2736 = vunpack.c.l.b16 %v2629
    %v2737 = vunpack.c.l.b16 %v2630
    %v2738 = vunpack.c.l.b16 %v2631
    %v2739 = vunpack.c.l.b16 %v2632
    %v2740 = vunpack.c.l.b16 %v2633
    %v2741 = vunpack.c.l.b16 %v2634
    %v2742 = vunpack.c.l.b16 %v2635
    %v2743 = vunpack.c.l.b16 %v2636
    %v2744 = vunpack.c.l.b16 %v2637
    %v2745 = vunpack.c.l.b16 %v2638
    %v2746 = vunpack.c.l.b16 %v2639
    %v2747 = vunpack.c.l.b16 %v2640
    %v2748 = vunpack.c.l.b16 %v2641
    %v2749 = vunpack.c.l.b16 %v2642
    %v2750 = vunpack.c.l.b16 %v2643
    %v2751 = vunpack.c.l.b16 %v2644
    %v2752 = vunpack.c.l.b16 %v2645
    %v2753 = vunpack.c.l.b16 %v2646
    %v2754 = vunpack.c.l.b16 %v2647
    %v2755 = vunpack.c.l.b16 %v2648
    %v2756 = vunpack.c.l.b16 %v2649
    %v2757 = vunpack.c.l.b16 %v2650
    %v2758 = vunpack.c.l.b16 %v2651
    %v2759 = vunpack.c.l.b16 %v2652
    %v2760 = vunpack.c.l.b16 %v2653
    %v2761 = vunpack.c.l.b16 %v2654
    %v2762 = vunpack.c.l.b16 %v2655
    %v2763 = vunpack.c.l.b16 %v2656
    %v2764 = vunpack.c.l.b16 %v2657
    %v2765 = vunpack.c.l.b16 %v2658
    %v2766 = vunpack.c.l.b16 %v2659
    %v2767 = vunpack.c.l.b16 %v2660
    %v2768 = vunpack.c.l.b16 %v2661
    %v2769 = vunpack.c.l.b16 %v2662
    %v2770 = vunpack.c.l.b16 %v2663
    %v2771 = vunpack.c.l.b16 %v2664
    %v2772 = vunpack.c.l.b16 %v2665
    %v2773 = vunpack.c.l.b16 %v2666
    %v2774 = vunpack.c.l.b16 %v2667
    %v2775 = vunpack.c.l.b16 %v2668
    %v2776 = vunpack.c.l.b16 %v2669
    %v2777 = vpack.c.b16 %v2728, %v2727
    %v2778 = vpack.c.b16 %v2730, %v2729
    %v2779 = vpack.c.b16 %v2732, %v2731
    %v2780 = vpack.c.b16 %v2734, %v2733
    %v2781 = vpack.c.b16 %v2736, %v2735
    %v2782 = vpack.c.b16 %v2738, %v2737
    %v2783 = vpack.c.b16 %v2740, %v2739
    %v2784 = vpack.c.b16 %v2742, %v2741
    %v2785 = vpack.c.b16 %v2744, %v2743
    %v2786 = vpack.c.b16 %v2746, %v2745
    %v2787 = vpack.c.b16 %v2748, %v2747
    %v2788 = vpack.c.b16 %v2750, %v2749
    %v2789 = vpack.c.b16 %v2752, %v2751
    %v2790 = vpack.c.b16 %v2754, %v2753
    %v2791 = vpack.c.b16 %v2756, %v2755
    %v2792 = vpack.c.b16 %v2758, %v2757
    %v2793 = vpack.c.b16 %v2760, %v2759
    %v2794 = vpack.c.b16 %v2762, %v2761
    %v2795 = vpack.c.b16 %v2764, %v2763
    %v2796 = vpack.c.b16 %v2766, %v2765
    %v2797 = vpack.c.b16 %v2768, %v2767
    %v2798 = vpack.c.b16 %v2770, %v2769
    %v2799 = vpack.c.b16 %v2772, %v2771
    %v2800 = vpack.c.b16 %v2774, %v2773
    %v2801 = vpack.c.b16 %v2776, %v2775
    %v2828 = vsel %vm152, %v2619, 0
    %2830 = vmatprep.subr.bf16.mxu0 0
    %2831 = vmatpush1.bf16.msra.mxu0 %v2777
    %2832 = vmatprep.subr.bf16.mxu0 0
    %2833 = vmatpush1.bf16.msra.mxu0 %v2778
    %2834 = vmatprep.subr.bf16.mxu0 0
    %2835 = vmatpush1.bf16.msra.mxu0 %v2779
    %2836 = vmatprep.subr.bf16.mxu0 0
    %2837 = vmatpush1.bf16.msra.mxu0 %v2780
    %2838 = vmatprep.subr.bf16.mxu0 0
    %2839 = vmatpush1.bf16.msra.mxu0 %v2781
    %2840 = vmatprep.subr.bf16.mxu0 0
    %2841 = vmatpush1.bf16.msra.mxu0 %v2782
    %2842 = vmatprep.subr.bf16.mxu0 0
    %2843 = vmatpush1.bf16.msra.mxu0 %v2783
    %2844 = vmatprep.subr.bf16.mxu0 0
    %2845 = vmatpush1.bf16.msra.mxu0 %v2784
    %2846 = vmatprep.subr.bf16.mxu0 0
    %2847 = vmatpush1.bf16.msra.mxu0 %v2785
    %2848 = vmatprep.subr.bf16.mxu0 0
    %2849 = vmatpush1.bf16.msra.mxu0 %v2786
    %2850 = vmatprep.subr.bf16.mxu0 0
    %2851 = vmatpush1.bf16.msra.mxu0 %v2787
    %2852 = vmatprep.subr.bf16.mxu0 0
    %2853 = vmatpush1.bf16.msra.mxu0 %v2788
    %2854 = vmatprep.subr.bf16.mxu0 0
    %2855 = vmatpush1.bf16.msra.mxu0 %v2789
    %2856 = vmatprep.subr.bf16.mxu0 0
    %2857 = vmatpush1.bf16.msra.mxu0 %v2790
    %2858 = vmatprep.subr.bf16.mxu0 0
    %2859 = vmatpush1.bf16.msra.mxu0 %v2791
    %2860 = vmatprep.subr.bf16.mxu0 0
    %2861 = vmatpush1.bf16.msra.mxu0 %v2792
    %2862 = vmatprep.mubr.bf16.mxu0 %v2617
    %2863 = vmatmul.mubr.bf16.gmra.mrb[0].mxu0 %v2616
    %v2864 = vpop.f32.mrb[0].mxu0
    %v2865 = vadd.f32 %v2675, %v2864
    %v2866 = vpop.f32.mrb[0].mxu0
    %v2867 = vpop.f32.mrb[0].mxu0
    %v2868 = vpop.f32.mrb[0].mxu0
    %2869 = vdwg.mxu0
    %2870 = vmatprep.subr.bf16.mxu0 0
    %2871 = vmatpush1.bf16.msra.mxu0 %v2793
    %2872 = vmatprep.subr.bf16.mxu0 0
    %2873 = vmatpush1.bf16.msra.mxu0 %v2794
    %2874 = vmatprep.subr.bf16.mxu0 0
    %2875 = vmatpush1.bf16.msra.mxu0 %v2795
    %2876 = vmatprep.subr.bf16.mxu0 0
    %2877 = vmatpush1.bf16.msra.mxu0 %v2796
    %2878 = vmatprep.subr.bf16.mxu0 0
    %2879 = vmatpush1.bf16.msra.mxu0 %v2797
    %2880 = vmatprep.subr.bf16.mxu0 0
    %2881 = vmatpush1.bf16.msra.mxu0 %v2798
    %2882 = vmatprep.subr.bf16.mxu0 0
    %2883 = vmatpush1.bf16.msra.mxu0 %v2799
    %2884 = vmatprep.subr.bf16.mxu0 0
    %2885 = vmatpush1.bf16.msra.mxu0 %v2800
    %2886 = vmatprep.subr.bf16.mxu0 0
    %2887 = vmatpush1.bf16.msra.mxu0 %v2801
    %2888 = vmatprep.subr.bf16.mxu0 0
    %2889 = vmatpush1.bf16.msra.mxu0 0
    %2890 = vmatprep.subr.bf16.mxu0 0
    %2891 = vmatpush1.bf16.msra.mxu0 0
    %2892 = vmatprep.subr.bf16.mxu0 0
    %2893 = vmatpush1.bf16.msra.mxu0 0
    %2894 = vmatprep.subr.bf16.mxu0 0
    %2895 = vmatpush1.bf16.msra.mxu0 0
    %2896 = vmatprep.subr.bf16.mxu0 0
    %2897 = vmatpush1.bf16.msra.mxu0 0
    %2898 = vmatprep.subr.bf16.mxu0 0
    %2899 = vmatpush1.bf16.msra.mxu0 0
    %2900 = vmatprep.subr.bf16.mxu0 0
    %2901 = vmatpush1.bf16.msra.mxu0 0
    %2902 = vmatprep.mubr.bf16.mxu0 %v2828
    %2903 = vmatmul.mubr.bf16.gmra.mrb[0].mxu0 %v2618
    %v2904 = vpop.f32.mrb[0].mxu0
    %v2905 = vadd.f32 %v2865, %v2904
    %v2906 = vpop.f32.mrb[0].mxu0
    %v2907 = vpop.f32.mrb[0].mxu0
    %v2908 = vpop.f32.mrb[0].mxu0
    %2909 = vdwg.mxu0
    %vm2910 = vcmask 123904
    %2911 = vst.msk [vmem:[#allocation2] sm:$0x3] %vm2910, %v2905
    // Predicated region
    $region26: #{model_forward.3} parent=1 // pred_check
      _
    $region27: #{model_forward.3} parent=1 // pred_check_branch
      %2913 = sbr.rel (0) target = $region29
    $region28: #{model_forward.3} parent=1 // pred_region
      %s2915 = ssub.s32 32, 32
      %2916 = vsyncadd [#allocation3], %s2915
      %s2918 = sshll.u32 [#allocation2], 4
      %s2919 = int_to_ptr.vmem [resolvable:$true] %s2918
      %2921 = dma.vmem_to_hbm [thread:$0]  %s2919, 32, %s6, [#allocation3]
    $region29: #{model_forward.3} parent=1 // pred_fallthru
      _
    // Predicated region
    $region30: #{model_forward.3} parent=1 // pred_check
      _
    $region31: #{model_forward.3} parent=1 // pred_check_branch
      %2923 = sbr.rel (0) target = $region33
    $region32: #{model_forward.3} parent=1 // pred_region
      %2924 = dma.done [#allocation3], 32
    $region33: #{model_forward.3} parent=1 // pred_fallthru
      _
    %2925 = vsyncpa [#allocation3], 1

</llo_original>
